<compile_context>
chip_gen: v6e
topology: v6e:2x2x1
jax: 0.10.0
libtpu: 0.0.40
codegen_flags: <defaults>
</compile_context>

<pallas_src>
import math
import functools

import jax
import jax.numpy as jnp
from jax.experimental import pallas as pl
from jax.experimental.pallas import tpu as pltpu


# ----------------------------------------------------------------------------
# Fused Pallas kernel: one grid step = (batch tile, layer).
# Grid = (B // BT  [parallel],  num_layers  [arbitrary, innermost]).
# The running activation is resident in `acc_ref` (VMEM scratch) across layers.
# ----------------------------------------------------------------------------
def _skv_fused_kernel(nhead, eps, BT, S, D,
                      src_ref, key_ref, val_ref,
                      wq_ref, wk_ref, wv_ref, bq_ref, bk_ref, bv_ref,
                      wo_ref, bo_ref,
                      w1_ref, b1_ref, w2_ref, b2_ref,
                      g1_ref, be1_ref, g2_ref, be2_ref,
                      out_ref, acc_ref):
    layer = pl.program_id(1)
    hd = D // nhead
    scale = 1.0 / math.sqrt(hd)

    # --- first layer of this batch tile: load the activation into VMEM scratch ---
    @pl.when(layer == 0)
    def _():
        acc_ref[...] = src_ref[...].astype(jnp.float32)

    # Fold batch into the matmul M dimension.
    x = acc_ref[...].reshape(BT * S, D)                         # query (running act)
    kin = key_ref[...].astype(jnp.float32).reshape(BT * S, D)   # key   (fixed)
    vin = val_ref[...].astype(jnp.float32).reshape(BT * S, D)   # value (fixed)

    # --- multi-head attention: Q/K/V projections on the folded slab ---
    q = jnp.dot(x, wq_ref[0], preferred_element_type=jnp.float32) + bq_ref[0]
    k = jnp.dot(kin, wk_ref[0], preferred_element_type=jnp.float32) + bk_ref[0]
    v = jnp.dot(vin, wv_ref[0], preferred_element_type=jnp.float32) + bv_ref[0]

    q3 = q.reshape(BT, S, D)
    k3 = k.reshape(BT, S, D)
    v3 = v.reshape(BT, S, D)

    # Static unroll over heads; each head is batched over the batch tile and
    # contracts the last dims directly (no explicit transpose of K).
    heads = []
    for h in range(nhead):
        sl = slice(h * hd, (h + 1) * hd)
        s = jnp.einsum('bqd,bkd->bqk', q3[:, :, sl], k3[:, :, sl],
                       preferred_element_type=jnp.float32) * scale
        s = s - jnp.max(s, axis=-1, keepdims=True)
        p = jnp.exp(s)
        # NOTE: pl.reciprocal(approx=True) is the knob when S scales; exact
        # division kept here to preserve f32-exact semantics.
        p = p / jnp.sum(p, axis=-1, keepdims=True)
        heads.append(jnp.einsum('bqk,bkd->bqd', p, v3[:, :, sl],
                                preferred_element_type=jnp.float32))
    ctx = jnp.concatenate(heads, axis=-1).reshape(BT * S, D)

    attn = jnp.dot(ctx, wo_ref[0], preferred_element_type=jnp.float32) + bo_ref[0]

    # --- residual + LayerNorm1 (dropout1 == identity in eval) ---
    y = x + attn
    mu = jnp.mean(y, axis=-1, keepdims=True)
    var = jnp.mean((y - mu) ** 2, axis=-1, keepdims=True)
    y = (y - mu) * jax.lax.rsqrt(var + eps) * g1_ref[0] + be1_ref[0]

    # --- feed-forward (relu; inner dropout == identity in eval) ---
    h1 = jnp.dot(y, w1_ref[0], preferred_element_type=jnp.float32) + b1_ref[0]
    h1 = jnp.maximum(h1, 0.0)
    h2 = jnp.dot(h1, w2_ref[0], preferred_element_type=jnp.float32) + b2_ref[0]

    # --- residual + LayerNorm2 (dropout2 == identity in eval) ---
    z = y + h2
    mu2 = jnp.mean(z, axis=-1, keepdims=True)
    var2 = jnp.mean((z - mu2) ** 2, axis=-1, keepdims=True)
    z = (z - mu2) * jax.lax.rsqrt(var2 + eps) * g2_ref[0] + be2_ref[0]

    z3 = z.reshape(BT, S, D)
    acc_ref[...] = z3                      # activation stays resident for next layer

    # --- last layer: write the final activation to the output block ---
    @pl.when(layer == pl.num_programs(1) - 1)
    def _():
        out_ref[...] = z3.astype(out_ref.dtype)


# ----------------------------------------------------------------------------
# SKVTransformerEncoder forward.
# Public layout follows PyTorch batch_first=False: (S, B, D) in / out.
# ----------------------------------------------------------------------------
def skv_transformer_encoder(src_sbd, key_sbd, value_sbd, layer_params, nhead,
                            eps=1e-5, batch_tile=None):
    # (S, B, D) -> (B, S, D) for the kernel (layout plumbing outside the kernel).
    x = jnp.transpose(src_sbd, (1, 0, 2))
    k = jnp.transpose(key_sbd, (1, 0, 2))
    v = jnp.transpose(value_sbd, (1, 0, 2))
    B, S, D = x.shape
    L = len(layer_params)
    F = layer_params[0]["w1_t"].shape[-1]

    # Default: fold the whole batch into one block (best for single-TC v5e/v6e).
    # On v7x pass batch_tile = B // 2 so the parallel axis feeds both TensorCores.
    BT = B if batch_tile is None else batch_tile
    assert B % BT == 0, "batch must be divisible by batch_tile"

    # Stack per-layer weights along a leading L axis (plain JAX, outside kernel).
    stacked = {name: jnp.stack([p[name] for p in layer_params], axis=0)
               for name in layer_params[0]}

    act_spec = pl.BlockSpec((BT, S, D), lambda b, l: (b, 0, 0))

    def wspec(d0, d1):
        # Per-layer parameter tile, indexed by the layer grid coordinate.
        return pl.BlockSpec((1, d0, d1), lambda b, l: (l, 0, 0))

    in_specs = [
        act_spec, act_spec, act_spec,              # src, key, value
        wspec(D, D), wspec(D, D), wspec(D, D),     # wq, wk, wv
        wspec(1, D), wspec(1, D), wspec(1, D),     # bq, bk, bv
        wspec(D, D), wspec(1, D),                  # wo, bo
        wspec(D, F), wspec(1, F),                  # w1, b1
        wspec(F, D), wspec(1, D),                  # w2, b2
        wspec(1, D), wspec(1, D), wspec(1, D), wspec(1, D),   # g1, be1, g2, be2
    ]

    kernel = functools.partial(_skv_fused_kernel, nhead, eps, BT, S, D)

    out = pl.pallas_call(
        kernel,
        out_shape=jax.ShapeDtypeStruct((B, S, D), x.dtype),
        grid_spec=pltpu.PrefetchScalarGridSpec(
            num_scalar_prefetch=0,
            grid=(B // BT, L),                     # (batch tiles, layers)
            in_specs=in_specs,
            out_specs=act_spec,
            scratch_shapes=[pltpu.VMEM((BT, S, D), jnp.float32)],
        ),
        compiler_params=pltpu.CompilerParams(
            dimension_semantics=("parallel", "arbitrary"),
            vmem_limit_bytes=32 * 1024 * 1024,     # explicit; raise when D/F/S scale
        ),
    )(x, k, v,
      stacked["wq_t"], stacked["wk_t"], stacked["wv_t"],
      stacked["bq"], stacked["bk"], stacked["bv"],
      stacked["wo_t"], stacked["bo"],
      stacked["w1_t"], stacked["b1"], stacked["w2_t"], stacked["b2"],
      stacked["g1"], stacked["be1"], stacked["g2"], stacked["be2"])

    return jnp.transpose(out, (1, 0, 2))           # back to (S, B, D)


# ----------------------------------------------------------------------------
# Pure-JAX reference (same math, no Pallas) for a consistency check.
# ----------------------------------------------------------------------------
def _layer_ref(x, kin, vin, p, nhead, eps=1e-5):
    D = x.shape[-1]
    hd = D // nhead
    scale = 1.0 / math.sqrt(hd)
    q = x @ p["wq_t"] + p["bq"]
    k = kin @ p["wk_t"] + p["bk"]
    v = vin @ p["wv_t"] + p["bv"]
    heads = []
    for h in range(nhead):
        qh, kh, vh = (t[..., h * hd:(h + 1) * hd] for t in (q, k, v))
        s = jnp.einsum("bqd,bkd->bqk", qh, kh) * scale
        pattn = jax.nn.softmax(s, axis=-1)
        heads.append(jnp.einsum("bqk,bkd->bqd", pattn, vh))
    attn = jnp.concatenate(heads, axis=-1) @ p["wo_t"] + p["bo"]
    y = x + attn
    mu = y.mean(-1, keepdims=True)
    var = ((y - mu) ** 2).mean(-1, keepdims=True)
    y = (y - mu) * jax.lax.rsqrt(var + eps) * p["g1"] + p["be1"]
    h1 = jnp.maximum(y @ p["w1_t"] + p["b1"], 0.0)
    z = y + h1 @ p["w2_t"] + p["b2"]
    mu2 = z.mean(-1, keepdims=True)
    var2 = ((z - mu2) ** 2).mean(-1, keepdims=True)
    return (z - mu2) * jax.lax.rsqrt(var2 + eps) * p["g2"] + p["be2"]


def encoder_ref(src_sbd, key_sbd, value_sbd, layer_params, nhead):
    x = jnp.transpose(src_sbd, (1, 0, 2))
    k = jnp.transpose(key_sbd, (1, 0, 2))
    v = jnp.transpose(value_sbd, (1, 0, 2))
    for p in layer_params:
        x = _layer_ref(x, k, v, p, nhead)
    return jnp.transpose(x, (1, 0, 2))


# ----------------------------------------------------------------------------
# Deterministic synthetic parameter init (shapes as in the PyTorch module).
# ----------------------------------------------------------------------------
def init_layer_params(key, d_model, dim_feedforward):
    ks = jax.random.split(key, 8)

    def u(k, shape, fan_in):
        bound = 1.0 / math.sqrt(fan_in)
        return jax.random.uniform(k, shape, jnp.float32, -bound, bound)

    return {
        # attention in-proj (stored pre-transposed: (in, out)); biases zero-init as in torch MHA
        "wq_t": u(ks[0], (d_model, d_model), d_model),
        "wk_t": u(ks[1], (d_model, d_model), d_model),
        "wv_t": u(ks[2], (d_model, d_model), d_model),
        "bq": jnp.zeros((1, d_model), jnp.float32),
        "bk": jnp.zeros((1, d_model), jnp.float32),
        "bv": jnp.zeros((1, d_model), jnp.float32),
        # attention out-proj (bias zero-init as in torch MHA)
        "wo_t": u(ks[3], (d_model, d_model), d_model),
        "bo": jnp.zeros((1, d_model), jnp.float32),
        # feed-forward (nn.Linear default: uniform weight + bias)
        "w1_t": u(ks[4], (d_model, dim_feedforward), d_model),
        "b1": u(ks[5], (1, dim_feedforward), d_model),
        "w2_t": u(ks[6], (dim_feedforward, d_model), dim_feedforward),
        "b2": u(ks[7], (1, d_model), dim_feedforward),
        # layer norms
        "g1": jnp.ones((1, d_model), jnp.float32),
        "be1": jnp.zeros((1, d_model), jnp.float32),
        "g2": jnp.ones((1, d_model), jnp.float32),
        "be2": jnp.zeros((1, d_model), jnp.float32),
    }


if __name__ == "__main__":
    S, B, D = 8, 2, 32          # seq, batch, d_model  (batch_first=False layout)
    NHEAD = 4
    FF = 64
    NUM_LAYERS = 2

    root = jax.random.PRNGKey(0)
    k_src, k_key, k_val, k_par = jax.random.split(root, 4)

    src = jax.random.normal(k_src, (S, B, D), jnp.float32)
    key = jax.random.normal(k_key, (S, B, D), jnp.float32)
    value = jax.random.normal(k_val, (S, B, D), jnp.float32)

    layer_keys = jax.random.split(k_par, NUM_LAYERS)
    layer_params = [init_layer_params(k, D, FF) for k in layer_keys]

    out = skv_transformer_encoder(src, key, value, layer_params, NHEAD)
    out = jax.block_until_ready(out)

    ref = encoder_ref(src, key, value, layer_params, NHEAD)
    assert out.shape == (S, B, D)
    assert jnp.allclose(out, ref, atol=2e-3, rtol=2e-3)

    print("KERNEL_OK")
</pallas_src>

<mosaic_0001>
module attributes {stable_mosaic.version = 11 : i64} {
  func.func @_skv_fused_kernel(%arg0: i32, %arg1: i32, %arg2: memref<2x8x32xf32, #tpu.memory_space<vmem>>, %arg3: memref<2x8x32xf32, #tpu.memory_space<vmem>>, %arg4: memref<2x8x32xf32, #tpu.memory_space<vmem>>, %arg5: memref<1x32x32xf32, #tpu.memory_space<vmem>>, %arg6: memref<1x32x32xf32, #tpu.memory_space<vmem>>, %arg7: memref<1x32x32xf32, #tpu.memory_space<vmem>>, %arg8: memref<1x1x32xf32, #tpu.memory_space<vmem>>, %arg9: memref<1x1x32xf32, #tpu.memory_space<vmem>>, %arg10: memref<1x1x32xf32, #tpu.memory_space<vmem>>, %arg11: memref<1x32x32xf32, #tpu.memory_space<vmem>>, %arg12: memref<1x1x32xf32, #tpu.memory_space<vmem>>, %arg13: memref<1x32x64xf32, #tpu.memory_space<vmem>>, %arg14: memref<1x1x64xf32, #tpu.memory_space<vmem>>, %arg15: memref<1x64x32xf32, #tpu.memory_space<vmem>>, %arg16: memref<1x1x32xf32, #tpu.memory_space<vmem>>, %arg17: memref<1x1x32xf32, #tpu.memory_space<vmem>>, %arg18: memref<1x1x32xf32, #tpu.memory_space<vmem>>, %arg19: memref<1x1x32xf32, #tpu.memory_space<vmem>>, %arg20: memref<1x1x32xf32, #tpu.memory_space<vmem>>, %arg21: memref<2x8x32xf32, #tpu.memory_space<vmem>>, %arg22: memref<2x8x32xf32, #tpu.memory_space<vmem>>) attributes {dimension_semantics = [#tpu.dimension_semantics<parallel>, #tpu.dimension_semantics<arbitrary>], iteration_bounds = array<i64: 1, 2>, scalar_prefetch = 0 : i64, scratch_operands = 1 : i64, tpu.core_type = #tpu.core_type<tc>, window_params = [{transform_indices = @transform_0, window_bounds = array<i64: 2, 8, 32>}, {transform_indices = @transform_1, window_bounds = array<i64: 2, 8, 32>}, {transform_indices = @transform_2, window_bounds = array<i64: 2, 8, 32>}, {transform_indices = @transform_3, window_bounds = array<i64: 1, 32, 32>}, {transform_indices = @transform_4, window_bounds = array<i64: 1, 32, 32>}, {transform_indices = @transform_5, window_bounds = array<i64: 1, 32, 32>}, {transform_indices = @transform_6, window_bounds = array<i64: 1, 1, 32>}, {transform_indices = @transform_7, window_bounds = array<i64: 1, 1, 32>}, {transform_indices = @transform_8, window_bounds = array<i64: 1, 1, 32>}, {transform_indices = @transform_9, window_bounds = array<i64: 1, 32, 32>}, {transform_indices = @transform_10, window_bounds = array<i64: 1, 1, 32>}, {transform_indices = @transform_11, window_bounds = array<i64: 1, 32, 64>}, {transform_indices = @transform_12, window_bounds = array<i64: 1, 1, 64>}, {transform_indices = @transform_13, window_bounds = array<i64: 1, 64, 32>}, {transform_indices = @transform_14, window_bounds = array<i64: 1, 1, 32>}, {transform_indices = @transform_15, window_bounds = array<i64: 1, 1, 32>}, {transform_indices = @transform_16, window_bounds = array<i64: 1, 1, 32>}, {transform_indices = @transform_17, window_bounds = array<i64: 1, 1, 32>}, {transform_indices = @transform_18, window_bounds = array<i64: 1, 1, 32>}, {transform_indices = @transform_19, window_bounds = array<i64: 2, 8, 32>}]} {
    %c0_i32 = arith.constant 0 : i32
    %0 = arith.cmpi eq, %arg1, %c0_i32 : i32
    %1 = arith.extui %0 : i1 to i32
    %c0_i32_0 = arith.constant 0 : i32
    %2 = arith.cmpi ne, %1, %c0_i32_0 : i32
    scf.if %2 {
      %c0_97 = arith.constant 0 : index
      %c0_98 = arith.constant 0 : index
      %c0_99 = arith.constant 0 : index
      %181 = vector.load %arg2[%c0_97, %c0_98, %c0_99] : memref<2x8x32xf32, #tpu.memory_space<vmem>>, vector<2x8x32xf32>
      %c0_100 = arith.constant 0 : index
      %c0_101 = arith.constant 0 : index
      %c0_102 = arith.constant 0 : index
      %182 = vector.load %arg22[%c0_100, %c0_101, %c0_102] : memref<2x8x32xf32, #tpu.memory_space<vmem>>, vector<2x8x32xf32>
      tpu.vector_store %arg22[%c0_100, %c0_101, %c0_102], %181 {strides = array<i32>} : memref<2x8x32xf32, #tpu.memory_space<vmem>>, vector<2x8x32xf32>,
    } else {
    }
    %c0 = arith.constant 0 : index
    %c0_1 = arith.constant 0 : index
    %c0_2 = arith.constant 0 : index
    %3 = vector.load %arg22[%c0, %c0_1, %c0_2] : memref<2x8x32xf32, #tpu.memory_space<vmem>>, vector<2x8x32xf32>
    %4 = vector.shape_cast %3 : vector<2x8x32xf32> to vector<16x32xf32>
    %c0_3 = arith.constant 0 : index
    %c0_4 = arith.constant 0 : index
    %c0_5 = arith.constant 0 : index
    %5 = vector.load %arg3[%c0_3, %c0_4, %c0_5] : memref<2x8x32xf32, #tpu.memory_space<vmem>>, vector<2x8x32xf32>
    %6 = vector.shape_cast %5 : vector<2x8x32xf32> to vector<16x32xf32>
    %c0_6 = arith.constant 0 : index
    %c0_7 = arith.constant 0 : index
    %c0_8 = arith.constant 0 : index
    %7 = vector.load %arg4[%c0_6, %c0_7, %c0_8] : memref<2x8x32xf32, #tpu.memory_space<vmem>>, vector<2x8x32xf32>
    %8 = vector.shape_cast %7 : vector<2x8x32xf32> to vector<16x32xf32>
    %c0_9 = arith.constant 0 : index
    %c0_10 = arith.constant 0 : index
    %c0_11 = arith.constant 0 : index
    %9 = vector.load %arg5[%c0_9, %c0_10, %c0_11] : memref<1x32x32xf32, #tpu.memory_space<vmem>>, vector<1x32x32xf32>
    %10 = vector.shape_cast %9 : vector<1x32x32xf32> to vector<32x32xf32>
    %cst = arith.constant dense<0.000000e+00> : vector<16x32xf32>
    %11 = tpu.matmul %4, %10, %cst {dimension_numbers = #tpu.dot_dimension_numbers<[1], [0], [0], [1], [0, 0, 1, 1], [], []>} : vector<16x32xf32>, vector<32x32xf32>, vector<16x32xf32> -> vector<16x32xf32>
    %c0_12 = arith.constant 0 : index
    %c0_13 = arith.constant 0 : index
    %c0_14 = arith.constant 0 : index
    %12 = vector.load %arg8[%c0_12, %c0_13, %c0_14] : memref<1x1x32xf32, #tpu.memory_space<vmem>>, vector<1x1x32xf32>
    %13 = vector.shape_cast %12 : vector<1x1x32xf32> to vector<1x32xf32>
    %14 = vector.broadcast %13 : vector<1x32xf32> to vector<16x32xf32>
    %15 = arith.addf %11, %14 : vector<16x32xf32>
    %c0_15 = arith.constant 0 : index
    %c0_16 = arith.constant 0 : index
    %c0_17 = arith.constant 0 : index
    %16 = vector.load %arg6[%c0_15, %c0_16, %c0_17] : memref<1x32x32xf32, #tpu.memory_space<vmem>>, vector<1x32x32xf32>
    %17 = vector.shape_cast %16 : vector<1x32x32xf32> to vector<32x32xf32>
    %cst_18 = arith.constant dense<0.000000e+00> : vector<16x32xf32>
    %18 = tpu.matmul %6, %17, %cst_18 {dimension_numbers = #tpu.dot_dimension_numbers<[1], [0], [0], [1], [0, 0, 1, 1], [], []>} : vector<16x32xf32>, vector<32x32xf32>, vector<16x32xf32> -> vector<16x32xf32>
    %c0_19 = arith.constant 0 : index
    %c0_20 = arith.constant 0 : index
    %c0_21 = arith.constant 0 : index
    %19 = vector.load %arg9[%c0_19, %c0_20, %c0_21] : memref<1x1x32xf32, #tpu.memory_space<vmem>>, vector<1x1x32xf32>
    %20 = vector.shape_cast %19 : vector<1x1x32xf32> to vector<1x32xf32>
    %21 = vector.broadcast %20 : vector<1x32xf32> to vector<16x32xf32>
    %22 = arith.addf %18, %21 : vector<16x32xf32>
    %c0_22 = arith.constant 0 : index
    %c0_23 = arith.constant 0 : index
    %c0_24 = arith.constant 0 : index
    %23 = vector.load %arg7[%c0_22, %c0_23, %c0_24] : memref<1x32x32xf32, #tpu.memory_space<vmem>>, vector<1x32x32xf32>
    %24 = vector.shape_cast %23 : vector<1x32x32xf32> to vector<32x32xf32>
    %cst_25 = arith.constant dense<0.000000e+00> : vector<16x32xf32>
    %25 = tpu.matmul %8, %24, %cst_25 {dimension_numbers = #tpu.dot_dimension_numbers<[1], [0], [0], [1], [0, 0, 1, 1], [], []>} : vector<16x32xf32>, vector<32x32xf32>, vector<16x32xf32> -> vector<16x32xf32>
    %c0_26 = arith.constant 0 : index
    %c0_27 = arith.constant 0 : index
    %c0_28 = arith.constant 0 : index
    %26 = vector.load %arg10[%c0_26, %c0_27, %c0_28] : memref<1x1x32xf32, #tpu.memory_space<vmem>>, vector<1x1x32xf32>
    %27 = vector.shape_cast %26 : vector<1x1x32xf32> to vector<1x32xf32>
    %28 = vector.broadcast %27 : vector<1x32xf32> to vector<16x32xf32>
    %29 = arith.addf %25, %28 : vector<16x32xf32>
    %30 = vector.shape_cast %15 : vector<16x32xf32> to vector<2x8x32xf32>
    %31 = vector.shape_cast %22 : vector<16x32xf32> to vector<2x8x32xf32>
    %32 = vector.shape_cast %29 : vector<16x32xf32> to vector<2x8x32xf32>
    %33 = vector.extract_strided_slice %30 {offsets = [0, 0, 0], sizes = [2, 8, 8], strides = [1, 1, 1]} : vector<2x8x32xf32> to vector<2x8x8xf32>
    %34 = vector.extract_strided_slice %31 {offsets = [0, 0, 0], sizes = [2, 8, 8], strides = [1, 1, 1]} : vector<2x8x32xf32> to vector<2x8x8xf32>
    "tpu.trace_start"() <{level = 10 : i32, message = "bqd,bkd->bqk"}> : () -> ()
    %cst_29 = arith.constant dense<0.000000e+00> : vector<2x8x8xf32>
    %35 = tpu.matmul %33, %34, %cst_29 {dimension_numbers = #tpu.dot_dimension_numbers<[2], [2], [1], [1], [0, 0, 0, 1, 1, 1], [0], [0]>} : vector<2x8x8xf32>, vector<2x8x8xf32>, vector<2x8x8xf32> -> vector<2x8x8xf32>
    "tpu.trace_stop"() : () -> ()
    %cst_30 = arith.constant 0.353553385 : f32
    %36 = vector.broadcast %cst_30 : f32 to vector<2x8x8xf32>
    %37 = arith.mulf %35, %36 : vector<2x8x8xf32>
    %cst_31 = arith.constant dense<0xFF800000> : vector<2x8xf32>
    %38 = vector.multi_reduction <maximumf>, %37, %cst_31 [2] : vector<2x8x8xf32> to vector<2x8xf32>
    %39 = vector.shape_cast %38 : vector<2x8xf32> to vector<2x8x1xf32>
    %40 = vector.broadcast %39 : vector<2x8x1xf32> to vector<2x8x8xf32>
    %41 = arith.subf %37, %40 : vector<2x8x8xf32>
    %42 = math.exp %41 : vector<2x8x8xf32>
    %cst_32 = arith.constant dense<0.000000e+00> : vector<2x8xf32>
    %43 = vector.multi_reduction <add>, %42, %cst_32 [2] : vector<2x8x8xf32> to vector<2x8xf32>
    %44 = vector.shape_cast %43 : vector<2x8xf32> to vector<2x8x1xf32>
    %45 = vector.broadcast %44 : vector<2x8x1xf32> to vector<2x8x8xf32>
    %46 = arith.divf %42, %45 : vector<2x8x8xf32>
    %47 = vector.extract_strided_slice %32 {offsets = [0, 0, 0], sizes = [2, 8, 8], strides = [1, 1, 1]} : vector<2x8x32xf32> to vector<2x8x8xf32>
    "tpu.trace_start"() <{level = 10 : i32, message = "bqk,bkd->bqd"}> : () -> ()
    %cst_33 = arith.constant dense<0.000000e+00> : vector<2x8x8xf32>
    %48 = tpu.matmul %46, %47, %cst_33 {dimension_numbers = #tpu.dot_dimension_numbers<[2], [1], [1], [2], [0, 0, 0, 1, 1, 2], [0], [0]>} : vector<2x8x8xf32>, vector<2x8x8xf32>, vector<2x8x8xf32> -> vector<2x8x8xf32>
    "tpu.trace_stop"() : () -> ()
    %49 = vector.extract_strided_slice %30 {offsets = [0, 0, 8], sizes = [2, 8, 8], strides = [1, 1, 1]} : vector<2x8x32xf32> to vector<2x8x8xf32>
    %50 = vector.extract_strided_slice %31 {offsets = [0, 0, 8], sizes = [2, 8, 8], strides = [1, 1, 1]} : vector<2x8x32xf32> to vector<2x8x8xf32>
    "tpu.trace_start"() <{level = 10 : i32, message = "bqd,bkd->bqk"}> : () -> ()
    %cst_34 = arith.constant dense<0.000000e+00> : vector<2x8x8xf32>
    %51 = tpu.matmul %49, %50, %cst_34 {dimension_numbers = #tpu.dot_dimension_numbers<[2], [2], [1], [1], [0, 0, 0, 1, 1, 1], [0], [0]>} : vector<2x8x8xf32>, vector<2x8x8xf32>, vector<2x8x8xf32> -> vector<2x8x8xf32>
    "tpu.trace_stop"() : () -> ()
    %cst_35 = arith.constant 0.353553385 : f32
    %52 = vector.broadcast %cst_35 : f32 to vector<2x8x8xf32>
    %53 = arith.mulf %51, %52 : vector<2x8x8xf32>
    %cst_36 = arith.constant dense<0xFF800000> : vector<2x8xf32>
    %54 = vector.multi_reduction <maximumf>, %53, %cst_36 [2] : vector<2x8x8xf32> to vector<2x8xf32>
    %55 = vector.shape_cast %54 : vector<2x8xf32> to vector<2x8x1xf32>
    %56 = vector.broadcast %55 : vector<2x8x1xf32> to vector<2x8x8xf32>
    %57 = arith.subf %53, %56 : vector<2x8x8xf32>
    %58 = math.exp %57 : vector<2x8x8xf32>
    %cst_37 = arith.constant dense<0.000000e+00> : vector<2x8xf32>
    %59 = vector.multi_reduction <add>, %58, %cst_37 [2] : vector<2x8x8xf32> to vector<2x8xf32>
    %60 = vector.shape_cast %59 : vector<2x8xf32> to vector<2x8x1xf32>
    %61 = vector.broadcast %60 : vector<2x8x1xf32> to vector<2x8x8xf32>
    %62 = arith.divf %58, %61 : vector<2x8x8xf32>
    %63 = vector.extract_strided_slice %32 {offsets = [0, 0, 8], sizes = [2, 8, 8], strides = [1, 1, 1]} : vector<2x8x32xf32> to vector<2x8x8xf32>
    "tpu.trace_start"() <{level = 10 : i32, message = "bqk,bkd->bqd"}> : () -> ()
    %cst_38 = arith.constant dense<0.000000e+00> : vector<2x8x8xf32>
    %64 = tpu.matmul %62, %63, %cst_38 {dimension_numbers = #tpu.dot_dimension_numbers<[2], [1], [1], [2], [0, 0, 0, 1, 1, 2], [0], [0]>} : vector<2x8x8xf32>, vector<2x8x8xf32>, vector<2x8x8xf32> -> vector<2x8x8xf32>
    "tpu.trace_stop"() : () -> ()
    %65 = vector.extract_strided_slice %30 {offsets = [0, 0, 16], sizes = [2, 8, 8], strides = [1, 1, 1]} : vector<2x8x32xf32> to vector<2x8x8xf32>
    %66 = vector.extract_strided_slice %31 {offsets = [0, 0, 16], sizes = [2, 8, 8], strides = [1, 1, 1]} : vector<2x8x32xf32> to vector<2x8x8xf32>
    "tpu.trace_start"() <{level = 10 : i32, message = "bqd,bkd->bqk"}> : () -> ()
    %cst_39 = arith.constant dense<0.000000e+00> : vector<2x8x8xf32>
    %67 = tpu.matmul %65, %66, %cst_39 {dimension_numbers = #tpu.dot_dimension_numbers<[2], [2], [1], [1], [0, 0, 0, 1, 1, 1], [0], [0]>} : vector<2x8x8xf32>, vector<2x8x8xf32>, vector<2x8x8xf32> -> vector<2x8x8xf32>
    "tpu.trace_stop"() : () -> ()
    %cst_40 = arith.constant 0.353553385 : f32
    %68 = vector.broadcast %cst_40 : f32 to vector<2x8x8xf32>
    %69 = arith.mulf %67, %68 : vector<2x8x8xf32>
    %cst_41 = arith.constant dense<0xFF800000> : vector<2x8xf32>
    %70 = vector.multi_reduction <maximumf>, %69, %cst_41 [2] : vector<2x8x8xf32> to vector<2x8xf32>
    %71 = vector.shape_cast %70 : vector<2x8xf32> to vector<2x8x1xf32>
    %72 = vector.broadcast %71 : vector<2x8x1xf32> to vector<2x8x8xf32>
    %73 = arith.subf %69, %72 : vector<2x8x8xf32>
    %74 = math.exp %73 : vector<2x8x8xf32>
    %cst_42 = arith.constant dense<0.000000e+00> : vector<2x8xf32>
    %75 = vector.multi_reduction <add>, %74, %cst_42 [2] : vector<2x8x8xf32> to vector<2x8xf32>
    %76 = vector.shape_cast %75 : vector<2x8xf32> to vector<2x8x1xf32>
    %77 = vector.broadcast %76 : vector<2x8x1xf32> to vector<2x8x8xf32>
    %78 = arith.divf %74, %77 : vector<2x8x8xf32>
    %79 = vector.extract_strided_slice %32 {offsets = [0, 0, 16], sizes = [2, 8, 8], strides = [1, 1, 1]} : vector<2x8x32xf32> to vector<2x8x8xf32>
    "tpu.trace_start"() <{level = 10 : i32, message = "bqk,bkd->bqd"}> : () -> ()
    %cst_43 = arith.constant dense<0.000000e+00> : vector<2x8x8xf32>
    %80 = tpu.matmul %78, %79, %cst_43 {dimension_numbers = #tpu.dot_dimension_numbers<[2], [1], [1], [2], [0, 0, 0, 1, 1, 2], [0], [0]>} : vector<2x8x8xf32>, vector<2x8x8xf32>, vector<2x8x8xf32> -> vector<2x8x8xf32>
    "tpu.trace_stop"() : () -> ()
    %81 = vector.extract_strided_slice %30 {offsets = [0, 0, 24], sizes = [2, 8, 8], strides = [1, 1, 1]} : vector<2x8x32xf32> to vector<2x8x8xf32>
    %82 = vector.extract_strided_slice %31 {offsets = [0, 0, 24], sizes = [2, 8, 8], strides = [1, 1, 1]} : vector<2x8x32xf32> to vector<2x8x8xf32>
    "tpu.trace_start"() <{level = 10 : i32, message = "bqd,bkd->bqk"}> : () -> ()
    %cst_44 = arith.constant dense<0.000000e+00> : vector<2x8x8xf32>
    %83 = tpu.matmul %81, %82, %cst_44 {dimension_numbers = #tpu.dot_dimension_numbers<[2], [2], [1], [1], [0, 0, 0, 1, 1, 1], [0], [0]>} : vector<2x8x8xf32>, vector<2x8x8xf32>, vector<2x8x8xf32> -> vector<2x8x8xf32>
    "tpu.trace_stop"() : () -> ()
    %cst_45 = arith.constant 0.353553385 : f32
    %84 = vector.broadcast %cst_45 : f32 to vector<2x8x8xf32>
    %85 = arith.mulf %83, %84 : vector<2x8x8xf32>
    %cst_46 = arith.constant dense<0xFF800000> : vector<2x8xf32>
    %86 = vector.multi_reduction <maximumf>, %85, %cst_46 [2] : vector<2x8x8xf32> to vector<2x8xf32>
    %87 = vector.shape_cast %86 : vector<2x8xf32> to vector<2x8x1xf32>
    %88 = vector.broadcast %87 : vector<2x8x1xf32> to vector<2x8x8xf32>
    %89 = arith.subf %85, %88 : vector<2x8x8xf32>
    %90 = math.exp %89 : vector<2x8x8xf32>
    %cst_47 = arith.constant dense<0.000000e+00> : vector<2x8xf32>
    %91 = vector.multi_reduction <add>, %90, %cst_47 [2] : vector<2x8x8xf32> to vector<2x8xf32>
    %92 = vector.shape_cast %91 : vector<2x8xf32> to vector<2x8x1xf32>
    %93 = vector.broadcast %92 : vector<2x8x1xf32> to vector<2x8x8xf32>
    %94 = arith.divf %90, %93 : vector<2x8x8xf32>
    %95 = vector.extract_strided_slice %32 {offsets = [0, 0, 24], sizes = [2, 8, 8], strides = [1, 1, 1]} : vector<2x8x32xf32> to vector<2x8x8xf32>
    "tpu.trace_start"() <{level = 10 : i32, message = "bqk,bkd->bqd"}> : () -> ()
    %cst_48 = arith.constant dense<0.000000e+00> : vector<2x8x8xf32>
    %96 = tpu.matmul %94, %95, %cst_48 {dimension_numbers = #tpu.dot_dimension_numbers<[2], [1], [1], [2], [0, 0, 0, 1, 1, 2], [0], [0]>} : vector<2x8x8xf32>, vector<2x8x8xf32>, vector<2x8x8xf32> -> vector<2x8x8xf32>
    "tpu.trace_stop"() : () -> ()
    %97 = tpu.concatenate %48, %64, %80, %96 in 2 : vector<2x8x8xf32>, vector<2x8x8xf32>, vector<2x8x8xf32>, vector<2x8x8xf32> -> vector<2x8x32xf32>
    %98 = vector.shape_cast %97 : vector<2x8x32xf32> to vector<16x32xf32>
    %c0_49 = arith.constant 0 : index
    %c0_50 = arith.constant 0 : index
    %c0_51 = arith.constant 0 : index
    %99 = vector.load %arg11[%c0_49, %c0_50, %c0_51] : memref<1x32x32xf32, #tpu.memory_space<vmem>>, vector<1x32x32xf32>
    %100 = vector.shape_cast %99 : vector<1x32x32xf32> to vector<32x32xf32>
    %cst_52 = arith.constant dense<0.000000e+00> : vector<16x32xf32>
    %101 = tpu.matmul %98, %100, %cst_52 {dimension_numbers = #tpu.dot_dimension_numbers<[1], [0], [0], [1], [0, 0, 1, 1], [], []>} : vector<16x32xf32>, vector<32x32xf32>, vector<16x32xf32> -> vector<16x32xf32>
    %c0_53 = arith.constant 0 : index
    %c0_54 = arith.constant 0 : index
    %c0_55 = arith.constant 0 : index
    %102 = vector.load %arg12[%c0_53, %c0_54, %c0_55] : memref<1x1x32xf32, #tpu.memory_space<vmem>>, vector<1x1x32xf32>
    %103 = vector.shape_cast %102 : vector<1x1x32xf32> to vector<1x32xf32>
    %104 = vector.broadcast %103 : vector<1x32xf32> to vector<16x32xf32>
    %105 = arith.addf %101, %104 : vector<16x32xf32>
    %106 = arith.addf %4, %105 : vector<16x32xf32>
    %cst_56 = arith.constant dense<0.000000e+00> : vector<16xf32>
    %107 = vector.multi_reduction <add>, %106, %cst_56 [1] : vector<16x32xf32> to vector<16xf32>
    %108 = vector.shape_cast %107 : vector<16xf32> to vector<16x1xf32>
    %cst_57 = arith.constant 3.200000e+01 : f32
    %109 = vector.broadcast %cst_57 : f32 to vector<16x1xf32>
    %110 = arith.divf %108, %109 : vector<16x1xf32>
    %111 = vector.broadcast %110 : vector<16x1xf32> to vector<16x32xf32>
    %112 = arith.subf %106, %111 : vector<16x32xf32>
    %113 = arith.mulf %112, %112 : vector<16x32xf32>
    %cst_58 = arith.constant dense<0.000000e+00> : vector<16xf32>
    %114 = vector.multi_reduction <add>, %113, %cst_58 [1] : vector<16x32xf32> to vector<16xf32>
    %115 = vector.shape_cast %114 : vector<16xf32> to vector<16x1xf32>
    %cst_59 = arith.constant 3.200000e+01 : f32
    %116 = vector.broadcast %cst_59 : f32 to vector<16x1xf32>
    %117 = arith.divf %115, %116 : vector<16x1xf32>
    %118 = vector.broadcast %110 : vector<16x1xf32> to vector<16x32xf32>
    %119 = arith.subf %106, %118 : vector<16x32xf32>
    %cst_60 = arith.constant 9.99999974E-6 : f32
    %120 = vector.broadcast %cst_60 : f32 to vector<16x1xf32>
    %121 = arith.addf %117, %120 : vector<16x1xf32>
    %122 = math.rsqrt %121 : vector<16x1xf32>
    %123 = vector.broadcast %122 : vector<16x1xf32> to vector<16x32xf32>
    %124 = arith.mulf %119, %123 : vector<16x32xf32>
    %c0_61 = arith.constant 0 : index
    %c0_62 = arith.constant 0 : index
    %c0_63 = arith.constant 0 : index
    %125 = vector.load %arg17[%c0_61, %c0_62, %c0_63] : memref<1x1x32xf32, #tpu.memory_space<vmem>>, vector<1x1x32xf32>
    %126 = vector.shape_cast %125 : vector<1x1x32xf32> to vector<1x32xf32>
    %127 = vector.broadcast %126 : vector<1x32xf32> to vector<16x32xf32>
    %128 = arith.mulf %124, %127 : vector<16x32xf32>
    %c0_64 = arith.constant 0 : index
    %c0_65 = arith.constant 0 : index
    %c0_66 = arith.constant 0 : index
    %129 = vector.load %arg18[%c0_64, %c0_65, %c0_66] : memref<1x1x32xf32, #tpu.memory_space<vmem>>, vector<1x1x32xf32>
    %130 = vector.shape_cast %129 : vector<1x1x32xf32> to vector<1x32xf32>
    %131 = vector.broadcast %130 : vector<1x32xf32> to vector<16x32xf32>
    %132 = arith.addf %128, %131 : vector<16x32xf32>
    %c0_67 = arith.constant 0 : index
    %c0_68 = arith.constant 0 : index
    %c0_69 = arith.constant 0 : index
    %133 = vector.load %arg13[%c0_67, %c0_68, %c0_69] : memref<1x32x64xf32, #tpu.memory_space<vmem>>, vector<1x32x64xf32>
    %134 = vector.shape_cast %133 : vector<1x32x64xf32> to vector<32x64xf32>
    %cst_70 = arith.constant dense<0.000000e+00> : vector<16x64xf32>
    %135 = tpu.matmul %132, %134, %cst_70 {dimension_numbers = #tpu.dot_dimension_numbers<[1], [0], [0], [1], [0, 0, 1, 1], [], []>} : vector<16x32xf32>, vector<32x64xf32>, vector<16x64xf32> -> vector<16x64xf32>
    %c0_71 = arith.constant 0 : index
    %c0_72 = arith.constant 0 : index
    %c0_73 = arith.constant 0 : index
    %136 = vector.load %arg14[%c0_71, %c0_72, %c0_73] : memref<1x1x64xf32, #tpu.memory_space<vmem>>, vector<1x1x64xf32>
    %137 = vector.shape_cast %136 : vector<1x1x64xf32> to vector<1x64xf32>
    %138 = vector.broadcast %137 : vector<1x64xf32> to vector<16x64xf32>
    %139 = arith.addf %135, %138 : vector<16x64xf32>
    %cst_74 = arith.constant 0.000000e+00 : f32
    %140 = vector.broadcast %cst_74 : f32 to vector<16x64xf32>
    %141 = arith.maximumf %139, %140 : vector<16x64xf32>
    %c0_75 = arith.constant 0 : index
    %c0_76 = arith.constant 0 : index
    %c0_77 = arith.constant 0 : index
    %142 = vector.load %arg15[%c0_75, %c0_76, %c0_77] : memref<1x64x32xf32, #tpu.memory_space<vmem>>, vector<1x64x32xf32>
    %143 = vector.shape_cast %142 : vector<1x64x32xf32> to vector<64x32xf32>
    %cst_78 = arith.constant dense<0.000000e+00> : vector<16x32xf32>
    %144 = tpu.matmul %141, %143, %cst_78 {dimension_numbers = #tpu.dot_dimension_numbers<[1], [0], [0], [1], [0, 0, 1, 1], [], []>} : vector<16x64xf32>, vector<64x32xf32>, vector<16x32xf32> -> vector<16x32xf32>
    %c0_79 = arith.constant 0 : index
    %c0_80 = arith.constant 0 : index
    %c0_81 = arith.constant 0 : index
    %145 = vector.load %arg16[%c0_79, %c0_80, %c0_81] : memref<1x1x32xf32, #tpu.memory_space<vmem>>, vector<1x1x32xf32>
    %146 = vector.shape_cast %145 : vector<1x1x32xf32> to vector<1x32xf32>
    %147 = vector.broadcast %146 : vector<1x32xf32> to vector<16x32xf32>
    %148 = arith.addf %144, %147 : vector<16x32xf32>
    %149 = arith.addf %132, %148 : vector<16x32xf32>
    %cst_82 = arith.constant dense<0.000000e+00> : vector<16xf32>
    %150 = vector.multi_reduction <add>, %149, %cst_82 [1] : vector<16x32xf32> to vector<16xf32>
    %151 = vector.shape_cast %150 : vector<16xf32> to vector<16x1xf32>
    %cst_83 = arith.constant 3.200000e+01 : f32
    %152 = vector.broadcast %cst_83 : f32 to vector<16x1xf32>
    %153 = arith.divf %151, %152 : vector<16x1xf32>
    %154 = vector.broadcast %153 : vector<16x1xf32> to vector<16x32xf32>
    %155 = arith.subf %149, %154 : vector<16x32xf32>
    %156 = arith.mulf %155, %155 : vector<16x32xf32>
    %cst_84 = arith.constant dense<0.000000e+00> : vector<16xf32>
    %157 = vector.multi_reduction <add>, %156, %cst_84 [1] : vector<16x32xf32> to vector<16xf32>
    %158 = vector.shape_cast %157 : vector<16xf32> to vector<16x1xf32>
    %cst_85 = arith.constant 3.200000e+01 : f32
    %159 = vector.broadcast %cst_85 : f32 to vector<16x1xf32>
    %160 = arith.divf %158, %159 : vector<16x1xf32>
    %161 = vector.broadcast %153 : vector<16x1xf32> to vector<16x32xf32>
    %162 = arith.subf %149, %161 : vector<16x32xf32>
    %cst_86 = arith.constant 9.99999974E-6 : f32
    %163 = vector.broadcast %cst_86 : f32 to vector<16x1xf32>
    %164 = arith.addf %160, %163 : vector<16x1xf32>
    %165 = math.rsqrt %164 : vector<16x1xf32>
    %166 = vector.broadcast %165 : vector<16x1xf32> to vector<16x32xf32>
    %167 = arith.mulf %162, %166 : vector<16x32xf32>
    %c0_87 = arith.constant 0 : index
    %c0_88 = arith.constant 0 : index
    %c0_89 = arith.constant 0 : index
    %168 = vector.load %arg19[%c0_87, %c0_88, %c0_89] : memref<1x1x32xf32, #tpu.memory_space<vmem>>, vector<1x1x32xf32>
    %169 = vector.shape_cast %168 : vector<1x1x32xf32> to vector<1x32xf32>
    %170 = vector.broadcast %169 : vector<1x32xf32> to vector<16x32xf32>
    %171 = arith.mulf %167, %170 : vector<16x32xf32>
    %c0_90 = arith.constant 0 : index
    %c0_91 = arith.constant 0 : index
    %c0_92 = arith.constant 0 : index
    %172 = vector.load %arg20[%c0_90, %c0_91, %c0_92] : memref<1x1x32xf32, #tpu.memory_space<vmem>>, vector<1x1x32xf32>
    %173 = vector.shape_cast %172 : vector<1x1x32xf32> to vector<1x32xf32>
    %174 = vector.broadcast %173 : vector<1x32xf32> to vector<16x32xf32>
    %175 = arith.addf %171, %174 : vector<16x32xf32>
    %176 = vector.shape_cast %175 : vector<16x32xf32> to vector<2x8x32xf32>
    %c0_93 = arith.constant 0 : index
    %c0_94 = arith.constant 0 : index
    %c0_95 = arith.constant 0 : index
    %177 = vector.load %arg22[%c0_93, %c0_94, %c0_95] : memref<2x8x32xf32, #tpu.memory_space<vmem>>, vector<2x8x32xf32>
    tpu.vector_store %arg22[%c0_93, %c0_94, %c0_95], %176 {strides = array<i32>} : memref<2x8x32xf32, #tpu.memory_space<vmem>>, vector<2x8x32xf32>,
    %c1_i32 = arith.constant 1 : i32
    %178 = arith.cmpi eq, %arg1, %c1_i32 : i32
    %179 = arith.extui %178 : i1 to i32
    %c0_i32_96 = arith.constant 0 : i32
    %180 = arith.cmpi ne, %179, %c0_i32_96 : i32
    scf.if %180 {
      %c0_97 = arith.constant 0 : index
      %c0_98 = arith.constant 0 : index
      %c0_99 = arith.constant 0 : index
      %181 = vector.load %arg21[%c0_97, %c0_98, %c0_99] : memref<2x8x32xf32, #tpu.memory_space<vmem>>, vector<2x8x32xf32>
      tpu.vector_store %arg21[%c0_97, %c0_98, %c0_99], %176 {strides = array<i32>} : memref<2x8x32xf32, #tpu.memory_space<vmem>>, vector<2x8x32xf32>,
    } else {
    }
    return
  }
  func.func @transform_0(%arg0: i32, %arg1: i32) -> (i32, i32, i32) {
    %c0_i32 = arith.constant 0 : i32
    %c0_i32_0 = arith.constant 0 : i32
    %c0_i32_1 = arith.constant 0 : i32
    return %arg0, %c0_i32, %c0_i32_0 : i32, i32, i32
  }
  func.func @transform_1(%arg0: i32, %arg1: i32) -> (i32, i32, i32) {
    %c0_i32 = arith.constant 0 : i32
    %c0_i32_0 = arith.constant 0 : i32
    %c0_i32_1 = arith.constant 0 : i32
    return %arg0, %c0_i32, %c0_i32_0 : i32, i32, i32
  }
  func.func @transform_2(%arg0: i32, %arg1: i32) -> (i32, i32, i32) {
    %c0_i32 = arith.constant 0 : i32
    %c0_i32_0 = arith.constant 0 : i32
    %c0_i32_1 = arith.constant 0 : i32
    return %arg0, %c0_i32, %c0_i32_0 : i32, i32, i32
  }
  func.func @transform_3(%arg0: i32, %arg1: i32) -> (i32, i32, i32) {
    %c0_i32 = arith.constant 0 : i32
    %c0_i32_0 = arith.constant 0 : i32
    %c0_i32_1 = arith.constant 0 : i32
    return %arg1, %c0_i32, %c0_i32_0 : i32, i32, i32
  }
  func.func @transform_4(%arg0: i32, %arg1: i32) -> (i32, i32, i32) {
    %c0_i32 = arith.constant 0 : i32
    %c0_i32_0 = arith.constant 0 : i32
    %c0_i32_1 = arith.constant 0 : i32
    return %arg1, %c0_i32, %c0_i32_0 : i32, i32, i32
  }
  func.func @transform_5(%arg0: i32, %arg1: i32) -> (i32, i32, i32) {
    %c0_i32 = arith.constant 0 : i32
    %c0_i32_0 = arith.constant 0 : i32
    %c0_i32_1 = arith.constant 0 : i32
    return %arg1, %c0_i32, %c0_i32_0 : i32, i32, i32
  }
  func.func @transform_6(%arg0: i32, %arg1: i32) -> (i32, i32, i32) {
    %c0_i32 = arith.constant 0 : i32
    %c0_i32_0 = arith.constant 0 : i32
    %c0_i32_1 = arith.constant 0 : i32
    return %arg1, %c0_i32, %c0_i32_0 : i32, i32, i32
  }
  func.func @transform_7(%arg0: i32, %arg1: i32) -> (i32, i32, i32) {
    %c0_i32 = arith.constant 0 : i32
    %c0_i32_0 = arith.constant 0 : i32
    %c0_i32_1 = arith.constant 0 : i32
    return %arg1, %c0_i32, %c0_i32_0 : i32, i32, i32
  }
  func.func @transform_8(%arg0: i32, %arg1: i32) -> (i32, i32, i32) {
    %c0_i32 = arith.constant 0 : i32
    %c0_i32_0 = arith.constant 0 : i32
    %c0_i32_1 = arith.constant 0 : i32
    return %arg1, %c0_i32, %c0_i32_0 : i32, i32, i32
  }
  func.func @transform_9(%arg0: i32, %arg1: i32) -> (i32, i32, i32) {
    %c0_i32 = arith.constant 0 : i32
    %c0_i32_0 = arith.constant 0 : i32
    %c0_i32_1 = arith.constant 0 : i32
    return %arg1, %c0_i32, %c0_i32_0 : i32, i32, i32
  }
  func.func @transform_10(%arg0: i32, %arg1: i32) -> (i32, i32, i32) {
    %c0_i32 = arith.constant 0 : i32
    %c0_i32_0 = arith.constant 0 : i32
    %c0_i32_1 = arith.constant 0 : i32
    return %arg1, %c0_i32, %c0_i32_0 : i32, i32, i32
  }
  func.func @transform_11(%arg0: i32, %arg1: i32) -> (i32, i32, i32) {
    %c0_i32 = arith.constant 0 : i32
    %c0_i32_0 = arith.constant 0 : i32
    %c0_i32_1 = arith.constant 0 : i32
    return %arg1, %c0_i32, %c0_i32_0 : i32, i32, i32
  }
  func.func @transform_12(%arg0: i32, %arg1: i32) -> (i32, i32, i32) {
    %c0_i32 = arith.constant 0 : i32
    %c0_i32_0 = arith.constant 0 : i32
    %c0_i32_1 = arith.constant 0 : i32
    return %arg1, %c0_i32, %c0_i32_0 : i32, i32, i32
  }
  func.func @transform_13(%arg0: i32, %arg1: i32) -> (i32, i32, i32) {
    %c0_i32 = arith.constant 0 : i32
    %c0_i32_0 = arith.constant 0 : i32
    %c0_i32_1 = arith.constant 0 : i32
    return %arg1, %c0_i32, %c0_i32_0 : i32, i32, i32
  }
  func.func @transform_14(%arg0: i32, %arg1: i32) -> (i32, i32, i32) {
    %c0_i32 = arith.constant 0 : i32
    %c0_i32_0 = arith.constant 0 : i32
    %c0_i32_1 = arith.constant 0 : i32
    return %arg1, %c0_i32, %c0_i32_0 : i32, i32, i32
  }
  func.func @transform_15(%arg0: i32, %arg1: i32) -> (i32, i32, i32) {
    %c0_i32 = arith.constant 0 : i32
    %c0_i32_0 = arith.constant 0 : i32
    %c0_i32_1 = arith.constant 0 : i32
    return %arg1, %c0_i32, %c0_i32_0 : i32, i32, i32
  }
  func.func @transform_16(%arg0: i32, %arg1: i32) -> (i32, i32, i32) {
    %c0_i32 = arith.constant 0 : i32
    %c0_i32_0 = arith.constant 0 : i32
    %c0_i32_1 = arith.constant 0 : i32
    return %arg1, %c0_i32, %c0_i32_0 : i32, i32, i32
  }
  func.func @transform_17(%arg0: i32, %arg1: i32) -> (i32, i32, i32) {
    %c0_i32 = arith.constant 0 : i32
    %c0_i32_0 = arith.constant 0 : i32
    %c0_i32_1 = arith.constant 0 : i32
    return %arg1, %c0_i32, %c0_i32_0 : i32, i32, i32
  }
  func.func @transform_18(%arg0: i32, %arg1: i32) -> (i32, i32, i32) {
    %c0_i32 = arith.constant 0 : i32
    %c0_i32_0 = arith.constant 0 : i32
    %c0_i32_1 = arith.constant 0 : i32
    return %arg1, %c0_i32, %c0_i32_0 : i32, i32, i32
  }
  func.func @transform_19(%arg0: i32, %arg1: i32) -> (i32, i32, i32) {
    %c0_i32 = arith.constant 0 : i32
    %c0_i32_0 = arith.constant 0 : i32
    %c0_i32_1 = arith.constant 0 : i32
    return %arg0, %c0_i32, %c0_i32_0 : i32, i32, i32
  }
}

</mosaic_0001>

<llo_original>
// kernel: tpu_custom_call.1
$region0: #{tpu_custom_call.1}
  #allocation0 [shape = 'u32[]', space=smem, size = 0x4, offset = 0x4, fixed_abs, tag = 'smem constant byte address 0x4 - core index']
  #allocation1 [shape = 'u32[144,128]{1,0:T(1,128)}', space=vmem, size = 0x12000, scoped, tag = 'internal scratch']
  #allocation2 [shape = 'f32[2,8,32]{2,1,0:T(8,128)}', space=vmem, size = 0x2000, scoped, tag = 'scratch operand']
  %s0 = inlined_call_operand.hbm [shape: f32[2,8,32], index: 0, kind: input, shape index: {}]
  %s1 = inlined_call_operand.hbm [shape: f32[2,8,32], index: 1, kind: input, shape index: {}]
  %s2 = inlined_call_operand.hbm [shape: f32[2,8,32], index: 2, kind: input, shape index: {}]
  %s3 = inlined_call_operand.vmem [shape: f32[2,32,32], index: 3, kind: input, shape index: {}]
  %s4 = inlined_call_operand.vmem [shape: f32[2,32,32], index: 4, kind: input, shape index: {}]
  %s5 = inlined_call_operand.vmem [shape: f32[2,32,32], index: 5, kind: input, shape index: {}]
  %s6 = inlined_call_operand.vmem [shape: f32[2,1,32], index: 6, kind: input, shape index: {}]
  %s7 = inlined_call_operand.vmem [shape: f32[2,1,32], index: 7, kind: input, shape index: {}]
  %s8 = inlined_call_operand.vmem [shape: f32[2,1,32], index: 8, kind: input, shape index: {}]
  %s9 = inlined_call_operand.hbm [shape: f32[2,32,32], index: 9, kind: input, shape index: {}]
  %s10 = inlined_call_operand.vmem [shape: f32[2,1,32], index: 10, kind: input, shape index: {}]
  %s11 = inlined_call_operand.hbm [shape: f32[2,32,64], index: 11, kind: input, shape index: {}]
  %s12 = inlined_call_operand.vmem [shape: f32[2,1,64], index: 12, kind: input, shape index: {}]
  %s13 = inlined_call_operand.vmem [shape: f32[2,64,32], index: 13, kind: input, shape index: {}]
  %s14 = inlined_call_operand.vmem [shape: f32[2,1,32], index: 14, kind: input, shape index: {}]
  %s15 = inlined_call_operand.vmem [shape: f32[2,1,32], index: 15, kind: input, shape index: {}]
  %s16 = inlined_call_operand.vmem [shape: f32[2,1,32], index: 16, kind: input, shape index: {}]
  %s17 = inlined_call_operand.vmem [shape: f32[2,1,32], index: 17, kind: input, shape index: {}]
  %s18 = inlined_call_operand.vmem [shape: f32[2,1,32], index: 18, kind: input, shape index: {}]
  %s19 = inlined_call_operand.hbm [shape: f32[2,8,32], index: 19, kind: output, shape index: {}]
  %s20 = sld [smem:[#allocation0]]
  $region137: #{tpu_custom_call.1} parent=0
    _
  %s22 = ssub.s32 1, %s20
  %s23 = scalar_select 0, %s22, %s20
  $region1: #{tpu_custom_call.1} parent=0
    #allocation3 [shape = 'u8[8192]{0}', space=vmem, size = 0x2000, scoped, tag = 'input window, operand 0, single buffered']
    #allocation4 [shape = 's32[2]{0}', space=sflag, size = 0x8, scoped, tag = 'scoped memory for tpu_custom_call.1']
    #allocation5 [shape = 's32[2]{0}', space=sflag, size = 0x8, scoped, tag = 'scoped memory for tpu_custom_call.1']
    #allocation6 [shape = 'u8[8192]{0}', space=vmem, size = 0x2000, scoped, tag = 'input window, operand 1, single buffered']
    #allocation7 [shape = 's32[1]{0}', space=sflag, size = 0x4, scoped, tag = 'scoped memory for tpu_custom_call.1']
    #allocation8 [shape = 'u8[8192]{0}', space=vmem, size = 0x2000, scoped, tag = 'input window, operand 2, single buffered']
    #allocation9 [shape = 'u8[32768]{0}', space=vmem, size = 0x8000, scoped, tag = 'input window, operand 9']
    #allocation10 [shape = 's32[2]{0}', space=sflag, size = 0x8, scoped, tag = 'scoped memory for tpu_custom_call.1']
    #allocation11 [shape = 'u8[32768]{0}', space=vmem, size = 0x8000, scoped, tag = 'input window, operand 11']
    #allocation12 [shape = 'u8[8192]{0}', space=vmem, size = 0x2000, scoped, tag = 'output window, operand 0, single buffered']
    %24 = vsyncpa [#allocation4], 0
    %25 = vsyncpa [#allocation7], 0
    %26 = vsyncpa [#allocation10], 0
    %s27 = scalar_lea.sflag [#allocation10], 1
    %28 = vsyncpa %s27, 0
    %29 = vsyncpa [#allocation5], 0
    loop: start=0, step=1, limit=4
    $region2: #{tpu_custom_call.1} parent=1 // loop_pre_header
      _
    $region3: #{tpu_custom_call.1} parent=1 // loop_header
      %s31 = sphi 0, %s35
      %p32 = scmp.ge.s32.totalorder %s31, 4
      %s38 = sphi 0, %s50
      %s39 = sphi 0, %s46
      %s40 = sphi 0, %s38
      %s41 = sphi 0, %s39
      %s42 = sphi 0, %s40
      %s43 = sphi 0, %s41
      %s53 = sphi 0, %s55
      %s56 = sphi 0, %s53
      %s57 = sphi 0, %s56
      %s73 = sphi 0, %s57
      %s79 = sphi 0, %s81
      %s82 = sphi 0, %s79
      %s83 = sphi 0, %s82
      %s99 = sphi 0, %s83
      %s105 = sphi 0, %s107
      %s108 = sphi 0, %s105
      %s109 = sphi 0, %s108
      %s125 = sphi 0, %s109
      %s131 = sphi 0, %s133
      %s134 = sphi 0, %s131
      %s135 = sphi 0, %s134
      %s151 = sphi 0, %s135
      %s157 = sphi 0, %s159
      %s160 = sphi 0, %s157
      %s161 = sphi 0, %s160
      %s177 = sphi 0, %s161
      %s183 = sphi 0, %s185
      %s186 = sphi 0, %s183
      %s187 = sphi 0, %s186
      %s203 = sphi 0, %s187
      %s209 = sphi 0, %s211
      %s212 = sphi 0, %s209
      %s213 = sphi 0, %s212
      %s229 = sphi 0, %s213
      %s235 = sphi 0, %s237
      %s238 = sphi 0, %s235
      %s239 = sphi 0, %s238
      %s255 = sphi 0, %s239
      %s261 = sphi 0, %s263
      %s264 = sphi 0, %s261
      %s265 = sphi 0, %s264
      %s281 = sphi 0, %s265
      %s287 = sphi 0, %s289
      %s290 = sphi 0, %s287
      %s291 = sphi 0, %s290
      %s307 = sphi 0, %s291
      %s313 = sphi 0, %s315
      %s316 = sphi 0, %s313
      %s317 = sphi 0, %s316
      %s333 = sphi 0, %s317
      %s339 = sphi 0, %s341
      %s342 = sphi 0, %s339
      %s343 = sphi 0, %s342
      %s359 = sphi 0, %s343
      %s365 = sphi 0, %s367
      %s368 = sphi 0, %s365
      %s369 = sphi 0, %s368
      %s385 = sphi 0, %s369
      %s391 = sphi 0, %s393
      %s394 = sphi 0, %s391
      %s395 = sphi 0, %s394
      %s411 = sphi 0, %s395
      %s417 = sphi 0, %s419
      %s420 = sphi 0, %s417
      %s421 = sphi 0, %s420
      %s437 = sphi 0, %s421
      %s443 = sphi 0, %s445
      %s446 = sphi 0, %s443
      %s447 = sphi 0, %s446
      %s463 = sphi 0, %s447
      %s469 = sphi 0, %s471
      %s472 = sphi 0, %s469
      %s473 = sphi 0, %s472
      %s489 = sphi 0, %s473
      %s495 = sphi 0, %s497
      %s498 = sphi 0, %s495
      %s499 = sphi 0, %s498
      %s515 = sphi 0, %s499
      %s521 = sphi 0, %s523
      %s524 = sphi 0, %s521
      %s525 = sphi 0, %s524
      %s541 = sphi 0, %s525
      %s547 = sphi 0, %s549
      %s550 = sphi 0, %s547
      %s551 = sphi 0, %s550
      %s567 = sphi 0, %s551
    $region4: #{tpu_custom_call.1} parent=1 // loop_header_branch
      %34 = sbr.rel (%p32) target = $region8
    $region5: #{tpu_custom_call.1} parent=1 // loop_body
      %s36 = ssub.s32 %s31, 1
      %s37 = ssub.s32 %s31, 2
      %s44 = sadd.s32 1, %s39
      %p45 = scmp.ge.s32.totalorder %s44, 2
      %s46 = scalar_select %p45, 0, %s44
      %s47 = sadd.s32 1, %s38
      %s48 = scalar_select %p45, %s47, %s38
      %p49 = scmp.ge.s32.totalorder %s48, 1
      %s50 = scalar_select %p49, 0, %s48
      %s51 = ssub.s32 %s38, %s50
      %p52 = scmp.eq.s32.totalorder %s51, 0
      %s54 = sadd.s32 %s53, 1
      %s55 = scalar_select %p52, %s53, %s54
      %p58 = pneg %p52
      %p59 = scmp.eq.s32.totalorder %s31, 1
      %p60 = por %p58, %p59
      %p61 = scmp.ne.s32.totalorder %s53, %s56
      %p62 = scmp.eq.s32.totalorder %s31, 0
      %p63 = por %p61, %p62
      %p64 = scmp.ne.s32.totalorder %s53, %s56
      %p65 = scmp.eq.s32.totalorder %s36, 1
      %p66 = por %p64, %p65
      %p67 = scmp.ne.s32.totalorder %s56, %s57
      %p68 = scmp.eq.s32.totalorder %s36, 0
      %p69 = por %p67, %p68
      %p70 = scmp.ne.s32.totalorder %s56, %s57
      %p71 = scmp.eq.s32.totalorder %s37, 1
      %p72 = por %p70, %p71
      %p74 = scmp.ne.s32.totalorder %s57, %s73
      %p75 = scmp.eq.s32.totalorder %s37, 0
      %p76 = por %p74, %p75
      %s77 = ssub.s32 %s38, %s50
      %p78 = scmp.eq.s32.totalorder %s77, 0
      %s80 = sadd.s32 %s79, 1
      %s81 = scalar_select %p78, %s79, %s80
      %p84 = pneg %p78
      %p85 = scmp.eq.s32.totalorder %s31, 1
      %p86 = por %p84, %p85
      %p87 = scmp.ne.s32.totalorder %s79, %s82
      %p88 = scmp.eq.s32.totalorder %s31, 0
      %p89 = por %p87, %p88
      %p90 = scmp.ne.s32.totalorder %s79, %s82
      %p91 = scmp.eq.s32.totalorder %s36, 1
      %p92 = por %p90, %p91
      %p93 = scmp.ne.s32.totalorder %s82, %s83
      %p94 = scmp.eq.s32.totalorder %s36, 0
      %p95 = por %p93, %p94
      %p96 = scmp.ne.s32.totalorder %s82, %s83
      %p97 = scmp.eq.s32.totalorder %s37, 1
      %p98 = por %p96, %p97
      %p100 = scmp.ne.s32.totalorder %s83, %s99
      %p101 = scmp.eq.s32.totalorder %s37, 0
      %p102 = por %p100, %p101
      %s103 = ssub.s32 %s38, %s50
      %p104 = scmp.eq.s32.totalorder %s103, 0
      %s106 = sadd.s32 %s105, 1
      %s107 = scalar_select %p104, %s105, %s106
      %p110 = pneg %p104
      %p111 = scmp.eq.s32.totalorder %s31, 1
      %p112 = por %p110, %p111
      %p113 = scmp.ne.s32.totalorder %s105, %s108
      %p114 = scmp.eq.s32.totalorder %s31, 0
      %p115 = por %p113, %p114
      %p116 = scmp.ne.s32.totalorder %s105, %s108
      %p117 = scmp.eq.s32.totalorder %s36, 1
      %p118 = por %p116, %p117
      %p119 = scmp.ne.s32.totalorder %s108, %s109
      %p120 = scmp.eq.s32.totalorder %s36, 0
      %p121 = por %p119, %p120
      %p122 = scmp.ne.s32.totalorder %s108, %s109
      %p123 = scmp.eq.s32.totalorder %s37, 1
      %p124 = por %p122, %p123
      %p126 = scmp.ne.s32.totalorder %s109, %s125
      %p127 = scmp.eq.s32.totalorder %s37, 0
      %p128 = por %p126, %p127
      %s129 = ssub.s32 %s39, %s46
      %p130 = scmp.eq.s32.totalorder %s129, 0
      %s132 = sadd.s32 %s131, 1
      %s133 = scalar_select %p130, %s131, %s132
      %p136 = pneg %p130
      %p137 = scmp.eq.s32.totalorder %s31, 1
      %p138 = por %p136, %p137
      %p139 = scmp.ne.s32.totalorder %s131, %s134
      %p140 = scmp.eq.s32.totalorder %s31, 0
      %p141 = por %p139, %p140
      %p142 = scmp.ne.s32.totalorder %s131, %s134
      %p143 = scmp.eq.s32.totalorder %s36, 1
      %p144 = por %p142, %p143
      %p145 = scmp.ne.s32.totalorder %s134, %s135
      %p146 = scmp.eq.s32.totalorder %s36, 0
      %p147 = por %p145, %p146
      %p148 = scmp.ne.s32.totalorder %s134, %s135
      %p149 = scmp.eq.s32.totalorder %s37, 1
      %p150 = por %p148, %p149
      %p152 = scmp.ne.s32.totalorder %s135, %s151
      %p153 = scmp.eq.s32.totalorder %s37, 0
      %p154 = por %p152, %p153
      %s155 = ssub.s32 %s39, %s46
      %p156 = scmp.eq.s32.totalorder %s155, 0
      %s158 = sadd.s32 %s157, 1
      %s159 = scalar_select %p156, %s157, %s158
      %p162 = pneg %p156
      %p163 = scmp.eq.s32.totalorder %s31, 1
      %p164 = por %p162, %p163
      %p165 = scmp.ne.s32.totalorder %s157, %s160
      %p166 = scmp.eq.s32.totalorder %s31, 0
      %p167 = por %p165, %p166
      %p168 = scmp.ne.s32.totalorder %s157, %s160
      %p169 = scmp.eq.s32.totalorder %s36, 1
      %p170 = por %p168, %p169
      %p171 = scmp.ne.s32.totalorder %s160, %s161
      %p172 = scmp.eq.s32.totalorder %s36, 0
      %p173 = por %p171, %p172
      %p174 = scmp.ne.s32.totalorder %s160, %s161
      %p175 = scmp.eq.s32.totalorder %s37, 1
      %p176 = por %p174, %p175
      %p178 = scmp.ne.s32.totalorder %s161, %s177
      %p179 = scmp.eq.s32.totalorder %s37, 0
      %p180 = por %p178, %p179
      %s181 = ssub.s32 %s39, %s46
      %p182 = scmp.eq.s32.totalorder %s181, 0
      %s184 = sadd.s32 %s183, 1
      %s185 = scalar_select %p182, %s183, %s184
      %p188 = pneg %p182
      %p189 = scmp.eq.s32.totalorder %s31, 1
      %p190 = por %p188, %p189
      %p191 = scmp.ne.s32.totalorder %s183, %s186
      %p192 = scmp.eq.s32.totalorder %s31, 0
      %p193 = por %p191, %p192
      %p194 = scmp.ne.s32.totalorder %s183, %s186
      %p195 = scmp.eq.s32.totalorder %s36, 1
      %p196 = por %p194, %p195
      %p197 = scmp.ne.s32.totalorder %s186, %s187
      %p198 = scmp.eq.s32.totalorder %s36, 0
      %p199 = por %p197, %p198
      %p200 = scmp.ne.s32.totalorder %s186, %s187
      %p201 = scmp.eq.s32.totalorder %s37, 1
      %p202 = por %p200, %p201
      %p204 = scmp.ne.s32.totalorder %s187, %s203
      %p205 = scmp.eq.s32.totalorder %s37, 0
      %p206 = por %p204, %p205
      %s207 = ssub.s32 %s39, %s46
      %p208 = scmp.eq.s32.totalorder %s207, 0
      %s210 = sadd.s32 %s209, 1
      %s211 = scalar_select %p208, %s209, %s210
      %p214 = pneg %p208
      %p215 = scmp.eq.s32.totalorder %s31, 1
      %p216 = por %p214, %p215
      %p217 = scmp.ne.s32.totalorder %s209, %s212
      %p218 = scmp.eq.s32.totalorder %s31, 0
      %p219 = por %p217, %p218
      %p220 = scmp.ne.s32.totalorder %s209, %s212
      %p221 = scmp.eq.s32.totalorder %s36, 1
      %p222 = por %p220, %p221
      %p223 = scmp.ne.s32.totalorder %s212, %s213
      %p224 = scmp.eq.s32.totalorder %s36, 0
      %p225 = por %p223, %p224
      %p226 = scmp.ne.s32.totalorder %s212, %s213
      %p227 = scmp.eq.s32.totalorder %s37, 1
      %p228 = por %p226, %p227
      %p230 = scmp.ne.s32.totalorder %s213, %s229
      %p231 = scmp.eq.s32.totalorder %s37, 0
      %p232 = por %p230, %p231
      %s233 = ssub.s32 %s39, %s46
      %p234 = scmp.eq.s32.totalorder %s233, 0
      %s236 = sadd.s32 %s235, 1
      %s237 = scalar_select %p234, %s235, %s236
      %p240 = pneg %p234
      %p241 = scmp.eq.s32.totalorder %s31, 1
      %p242 = por %p240, %p241
      %p243 = scmp.ne.s32.totalorder %s235, %s238
      %p244 = scmp.eq.s32.totalorder %s31, 0
      %p245 = por %p243, %p244
      %p246 = scmp.ne.s32.totalorder %s235, %s238
      %p247 = scmp.eq.s32.totalorder %s36, 1
      %p248 = por %p246, %p247
      %p249 = scmp.ne.s32.totalorder %s238, %s239
      %p250 = scmp.eq.s32.totalorder %s36, 0
      %p251 = por %p249, %p250
      %p252 = scmp.ne.s32.totalorder %s238, %s239
      %p253 = scmp.eq.s32.totalorder %s37, 1
      %p254 = por %p252, %p253
      %p256 = scmp.ne.s32.totalorder %s239, %s255
      %p257 = scmp.eq.s32.totalorder %s37, 0
      %p258 = por %p256, %p257
      %s259 = ssub.s32 %s39, %s46
      %p260 = scmp.eq.s32.totalorder %s259, 0
      %s262 = sadd.s32 %s261, 1
      %s263 = scalar_select %p260, %s261, %s262
      %p266 = pneg %p260
      %p267 = scmp.eq.s32.totalorder %s31, 1
      %p268 = por %p266, %p267
      %p269 = scmp.ne.s32.totalorder %s261, %s264
      %p270 = scmp.eq.s32.totalorder %s31, 0
      %p271 = por %p269, %p270
      %p272 = scmp.ne.s32.totalorder %s261, %s264
      %p273 = scmp.eq.s32.totalorder %s36, 1
      %p274 = por %p272, %p273
      %p275 = scmp.ne.s32.totalorder %s264, %s265
      %p276 = scmp.eq.s32.totalorder %s36, 0
      %p277 = por %p275, %p276
      %p278 = scmp.ne.s32.totalorder %s264, %s265
      %p279 = scmp.eq.s32.totalorder %s37, 1
      %p280 = por %p278, %p279
      %p282 = scmp.ne.s32.totalorder %s265, %s281
      %p283 = scmp.eq.s32.totalorder %s37, 0
      %p284 = por %p282, %p283
      %s285 = ssub.s32 %s39, %s46
      %p286 = scmp.eq.s32.totalorder %s285, 0
      %s288 = sadd.s32 %s287, 1
      %s289 = scalar_select %p286, %s287, %s288
      %p292 = pneg %p286
      %p293 = scmp.eq.s32.totalorder %s31, 1
      %p294 = por %p292, %p293
      %p295 = scmp.ne.s32.totalorder %s287, %s290
      %p296 = scmp.eq.s32.totalorder %s31, 0
      %p297 = por %p295, %p296
      %p298 = scmp.ne.s32.totalorder %s287, %s290
      %p299 = scmp.eq.s32.totalorder %s36, 1
      %p300 = por %p298, %p299
      %p301 = scmp.ne.s32.totalorder %s290, %s291
      %p302 = scmp.eq.s32.totalorder %s36, 0
      %p303 = por %p301, %p302
      %p304 = scmp.ne.s32.totalorder %s290, %s291
      %p305 = scmp.eq.s32.totalorder %s37, 1
      %p306 = por %p304, %p305
      %p308 = scmp.ne.s32.totalorder %s291, %s307
      %p309 = scmp.eq.s32.totalorder %s37, 0
      %p310 = por %p308, %p309
      %s311 = ssub.s32 %s39, %s46
      %p312 = scmp.eq.s32.totalorder %s311, 0
      %s314 = sadd.s32 %s313, 1
      %s315 = scalar_select %p312, %s313, %s314
      %p318 = pneg %p312
      %p319 = scmp.eq.s32.totalorder %s31, 1
      %p320 = por %p318, %p319
      %p321 = scmp.ne.s32.totalorder %s313, %s316
      %p322 = scmp.eq.s32.totalorder %s31, 0
      %p323 = por %p321, %p322
      %p324 = scmp.ne.s32.totalorder %s313, %s316
      %p325 = scmp.eq.s32.totalorder %s36, 1
      %p326 = por %p324, %p325
      %p327 = scmp.ne.s32.totalorder %s316, %s317
      %p328 = scmp.eq.s32.totalorder %s36, 0
      %p329 = por %p327, %p328
      %p330 = scmp.ne.s32.totalorder %s316, %s317
      %p331 = scmp.eq.s32.totalorder %s37, 1
      %p332 = por %p330, %p331
      %p334 = scmp.ne.s32.totalorder %s317, %s333
      %p335 = scmp.eq.s32.totalorder %s37, 0
      %p336 = por %p334, %p335
      %s337 = ssub.s32 %s39, %s46
      %p338 = scmp.eq.s32.totalorder %s337, 0
      %s340 = sadd.s32 %s339, 1
      %s341 = scalar_select %p338, %s339, %s340
      %p344 = pneg %p338
      %p345 = scmp.eq.s32.totalorder %s31, 1
      %p346 = por %p344, %p345
      %p347 = scmp.ne.s32.totalorder %s339, %s342
      %p348 = scmp.eq.s32.totalorder %s31, 0
      %p349 = por %p347, %p348
      %p350 = scmp.ne.s32.totalorder %s339, %s342
      %p351 = scmp.eq.s32.totalorder %s36, 1
      %p352 = por %p350, %p351
      %p353 = scmp.ne.s32.totalorder %s342, %s343
      %p354 = scmp.eq.s32.totalorder %s36, 0
      %p355 = por %p353, %p354
      %p356 = scmp.ne.s32.totalorder %s342, %s343
      %p357 = scmp.eq.s32.totalorder %s37, 1
      %p358 = por %p356, %p357
      %p360 = scmp.ne.s32.totalorder %s343, %s359
      %p361 = scmp.eq.s32.totalorder %s37, 0
      %p362 = por %p360, %p361
      %s363 = ssub.s32 %s39, %s46
      %p364 = scmp.eq.s32.totalorder %s363, 0
      %s366 = sadd.s32 %s365, 1
      %s367 = scalar_select %p364, %s365, %s366
      %p370 = pneg %p364
      %p371 = scmp.eq.s32.totalorder %s31, 1
      %p372 = por %p370, %p371
      %p373 = scmp.ne.s32.totalorder %s365, %s368
      %p374 = scmp.eq.s32.totalorder %s31, 0
      %p375 = por %p373, %p374
      %p376 = scmp.ne.s32.totalorder %s365, %s368
      %p377 = scmp.eq.s32.totalorder %s36, 1
      %p378 = por %p376, %p377
      %p379 = scmp.ne.s32.totalorder %s368, %s369
      %p380 = scmp.eq.s32.totalorder %s36, 0
      %p381 = por %p379, %p380
      %p382 = scmp.ne.s32.totalorder %s368, %s369
      %p383 = scmp.eq.s32.totalorder %s37, 1
      %p384 = por %p382, %p383
      %p386 = scmp.ne.s32.totalorder %s369, %s385
      %p387 = scmp.eq.s32.totalorder %s37, 0
      %p388 = por %p386, %p387
      %s389 = ssub.s32 %s39, %s46
      %p390 = scmp.eq.s32.totalorder %s389, 0
      %s392 = sadd.s32 %s391, 1
      %s393 = scalar_select %p390, %s391, %s392
      %p396 = pneg %p390
      %p397 = scmp.eq.s32.totalorder %s31, 1
      %p398 = por %p396, %p397
      %p399 = scmp.ne.s32.totalorder %s391, %s394
      %p400 = scmp.eq.s32.totalorder %s31, 0
      %p401 = por %p399, %p400
      %p402 = scmp.ne.s32.totalorder %s391, %s394
      %p403 = scmp.eq.s32.totalorder %s36, 1
      %p404 = por %p402, %p403
      %p405 = scmp.ne.s32.totalorder %s394, %s395
      %p406 = scmp.eq.s32.totalorder %s36, 0
      %p407 = por %p405, %p406
      %p408 = scmp.ne.s32.totalorder %s394, %s395
      %p409 = scmp.eq.s32.totalorder %s37, 1
      %p410 = por %p408, %p409
      %p412 = scmp.ne.s32.totalorder %s395, %s411
      %p413 = scmp.eq.s32.totalorder %s37, 0
      %p414 = por %p412, %p413
      %s415 = ssub.s32 %s39, %s46
      %p416 = scmp.eq.s32.totalorder %s415, 0
      %s418 = sadd.s32 %s417, 1
      %s419 = scalar_select %p416, %s417, %s418
      %p422 = pneg %p416
      %p423 = scmp.eq.s32.totalorder %s31, 1
      %p424 = por %p422, %p423
      %p425 = scmp.ne.s32.totalorder %s417, %s420
      %p426 = scmp.eq.s32.totalorder %s31, 0
      %p427 = por %p425, %p426
      %p428 = scmp.ne.s32.totalorder %s417, %s420
      %p429 = scmp.eq.s32.totalorder %s36, 1
      %p430 = por %p428, %p429
      %p431 = scmp.ne.s32.totalorder %s420, %s421
      %p432 = scmp.eq.s32.totalorder %s36, 0
      %p433 = por %p431, %p432
      %p434 = scmp.ne.s32.totalorder %s420, %s421
      %p435 = scmp.eq.s32.totalorder %s37, 1
      %p436 = por %p434, %p435
      %p438 = scmp.ne.s32.totalorder %s421, %s437
      %p439 = scmp.eq.s32.totalorder %s37, 0
      %p440 = por %p438, %p439
      %s441 = ssub.s32 %s39, %s46
      %p442 = scmp.eq.s32.totalorder %s441, 0
      %s444 = sadd.s32 %s443, 1
      %s445 = scalar_select %p442, %s443, %s444
      %p448 = pneg %p442
      %p449 = scmp.eq.s32.totalorder %s31, 1
      %p450 = por %p448, %p449
      %p451 = scmp.ne.s32.totalorder %s443, %s446
      %p452 = scmp.eq.s32.totalorder %s31, 0
      %p453 = por %p451, %p452
      %p454 = scmp.ne.s32.totalorder %s443, %s446
      %p455 = scmp.eq.s32.totalorder %s36, 1
      %p456 = por %p454, %p455
      %p457 = scmp.ne.s32.totalorder %s446, %s447
      %p458 = scmp.eq.s32.totalorder %s36, 0
      %p459 = por %p457, %p458
      %p460 = scmp.ne.s32.totalorder %s446, %s447
      %p461 = scmp.eq.s32.totalorder %s37, 1
      %p462 = por %p460, %p461
      %p464 = scmp.ne.s32.totalorder %s447, %s463
      %p465 = scmp.eq.s32.totalorder %s37, 0
      %p466 = por %p464, %p465
      %s467 = ssub.s32 %s39, %s46
      %p468 = scmp.eq.s32.totalorder %s467, 0
      %s470 = sadd.s32 %s469, 1
      %s471 = scalar_select %p468, %s469, %s470
      %p474 = pneg %p468
      %p475 = scmp.eq.s32.totalorder %s31, 1
      %p476 = por %p474, %p475
      %p477 = scmp.ne.s32.totalorder %s469, %s472
      %p478 = scmp.eq.s32.totalorder %s31, 0
      %p479 = por %p477, %p478
      %p480 = scmp.ne.s32.totalorder %s469, %s472
      %p481 = scmp.eq.s32.totalorder %s36, 1
      %p482 = por %p480, %p481
      %p483 = scmp.ne.s32.totalorder %s472, %s473
      %p484 = scmp.eq.s32.totalorder %s36, 0
      %p485 = por %p483, %p484
      %p486 = scmp.ne.s32.totalorder %s472, %s473
      %p487 = scmp.eq.s32.totalorder %s37, 1
      %p488 = por %p486, %p487
      %p490 = scmp.ne.s32.totalorder %s473, %s489
      %p491 = scmp.eq.s32.totalorder %s37, 0
      %p492 = por %p490, %p491
      %s493 = ssub.s32 %s39, %s46
      %p494 = scmp.eq.s32.totalorder %s493, 0
      %s496 = sadd.s32 %s495, 1
      %s497 = scalar_select %p494, %s495, %s496
      %p500 = pneg %p494
      %p501 = scmp.eq.s32.totalorder %s31, 1
      %p502 = por %p500, %p501
      %p503 = scmp.ne.s32.totalorder %s495, %s498
      %p504 = scmp.eq.s32.totalorder %s31, 0
      %p505 = por %p503, %p504
      %p506 = scmp.ne.s32.totalorder %s495, %s498
      %p507 = scmp.eq.s32.totalorder %s36, 1
      %p508 = por %p506, %p507
      %p509 = scmp.ne.s32.totalorder %s498, %s499
      %p510 = scmp.eq.s32.totalorder %s36, 0
      %p511 = por %p509, %p510
      %p512 = scmp.ne.s32.totalorder %s498, %s499
      %p513 = scmp.eq.s32.totalorder %s37, 1
      %p514 = por %p512, %p513
      %p516 = scmp.ne.s32.totalorder %s499, %s515
      %p517 = scmp.eq.s32.totalorder %s37, 0
      %p518 = por %p516, %p517
      %s519 = ssub.s32 %s39, %s46
      %p520 = scmp.eq.s32.totalorder %s519, 0
      %s522 = sadd.s32 %s521, 1
      %s523 = scalar_select %p520, %s521, %s522
      %p526 = pneg %p520
      %p527 = scmp.eq.s32.totalorder %s31, 1
      %p528 = por %p526, %p527
      %p529 = scmp.ne.s32.totalorder %s521, %s524
      %p530 = scmp.eq.s32.totalorder %s31, 0
      %p531 = por %p529, %p530
      %p532 = scmp.ne.s32.totalorder %s521, %s524
      %p533 = scmp.eq.s32.totalorder %s36, 1
      %p534 = por %p532, %p533
      %p535 = scmp.ne.s32.totalorder %s524, %s525
      %p536 = scmp.eq.s32.totalorder %s36, 0
      %p537 = por %p535, %p536
      %p538 = scmp.ne.s32.totalorder %s524, %s525
      %p539 = scmp.eq.s32.totalorder %s37, 1
      %p540 = por %p538, %p539
      %p542 = scmp.ne.s32.totalorder %s525, %s541
      %p543 = scmp.eq.s32.totalorder %s37, 0
      %p544 = por %p542, %p543
      %s545 = ssub.s32 %s38, %s50
      %p546 = scmp.eq.s32.totalorder %s545, 0
      %s548 = sadd.s32 %s547, 1
      %s549 = scalar_select %p546, %s547, %s548
      %p552 = pneg %p546
      %p553 = scmp.eq.s32.totalorder %s31, 1
      %p554 = por %p552, %p553
      %p555 = scmp.ne.s32.totalorder %s547, %s550
      %p556 = scmp.eq.s32.totalorder %s31, 0
      %p557 = por %p555, %p556
      %p558 = scmp.ne.s32.totalorder %s547, %s550
      %p559 = scmp.eq.s32.totalorder %s36, 1
      %p560 = por %p558, %p559
      %p561 = scmp.ne.s32.totalorder %s550, %s551
      %p562 = scmp.eq.s32.totalorder %s36, 0
      %p563 = por %p561, %p562
      %p564 = scmp.ne.s32.totalorder %s550, %s551
      %p565 = scmp.eq.s32.totalorder %s37, 1
      %p566 = por %p564, %p565
      %p568 = scmp.ne.s32.totalorder %s551, %s567
      %p569 = scmp.eq.s32.totalorder %s37, 0
      %p570 = por %p568, %p569
      %p571 = scmp.le.s32.totalorder 1, %s31
      %p572 = scmp.lt.s32.totalorder %s31, 3
      %p573 = pnand %p571, %p572
      %p574 = pneg %p573
      // Predicated region
      $region9: #{tpu_custom_call.1} parent=5 // pred_check
        _
      $region10: #{tpu_custom_call.1} parent=5 // pred_check_branch
        %576 = sbr.rel (%p573) target = $region12
      $region11: #{tpu_custom_call.1} parent=5 // pred_region
        %s577 = ssub.s32 %s31, 1
        // Predicated region
        $region13: #{tpu_custom_call.1} parent=11 // pred_check
          %p578 = pneg %p69
        $region14: #{tpu_custom_call.1} parent=11 // pred_check_branch
          %580 = sbr.rel (%p578) target = $region16
        $region15: #{tpu_custom_call.1} parent=11 // pred_region
          %s581 = smul.u32 2, %s40
          %s583 = ssub.s32 256, 256
          %584 = vsyncadd [#allocation4], %s583
          %s585 = smul.addr %s581, 128
          %s586 = scalar_lea.hbm %s0, %s585
          %s587 = sshll.u32 [#allocation3], 4
          %s588 = int_to_ptr.vmem [resolvable:$true] %s587
          %593 = dma.hbm_to_vmem [thread:$0]  %s586, 256, %s588, [#allocation4], 128, 128, 8
        $region16: #{tpu_custom_call.1} parent=11 // pred_fallthru
          _
        // Predicated region
        $region17: #{tpu_custom_call.1} parent=11 // pred_check
          %p594 = pneg %p95
        $region18: #{tpu_custom_call.1} parent=11 // pred_check_branch
          %596 = sbr.rel (%p594) target = $region20
        $region19: #{tpu_custom_call.1} parent=11 // pred_region
          %s597 = smul.u32 2, %s40
          %s599 = ssub.s32 256, 256
          %600 = vsyncadd [#allocation7], %s599
          %s601 = smul.addr %s597, 128
          %s602 = scalar_lea.hbm %s1, %s601
          %s603 = sshll.u32 [#allocation6], 4
          %s604 = int_to_ptr.vmem [resolvable:$true] %s603
          %609 = dma.hbm_to_vmem [thread:$0]  %s602, 256, %s604, [#allocation7], 128, 128, 8
        $region20: #{tpu_custom_call.1} parent=11 // pred_fallthru
          _
        // Predicated region
        $region21: #{tpu_custom_call.1} parent=11 // pred_check
          %p610 = pneg %p121
        $region22: #{tpu_custom_call.1} parent=11 // pred_check_branch
          %612 = sbr.rel (%p610) target = $region24
        $region23: #{tpu_custom_call.1} parent=11 // pred_region
          %s613 = smul.u32 2, %s40
          %s615 = ssub.s32 256, 256
          %616 = vsyncadd [#allocation7], %s615
          %s617 = smul.addr %s613, 128
          %s618 = scalar_lea.hbm %s2, %s617
          %s619 = sshll.u32 [#allocation8], 4
          %s620 = int_to_ptr.vmem [resolvable:$true] %s619
          %625 = dma.hbm_to_vmem [thread:$0]  %s618, 256, %s620, [#allocation7], 128, 128, 8
        $region24: #{tpu_custom_call.1} parent=11 // pred_fallthru
          _
      $region12: #{tpu_custom_call.1} parent=5 // pred_fallthru
        _
      %p626 = scmp.lt.s32.totalorder %s31, 2
      // Predicated region
      $region25: #{tpu_custom_call.1} parent=5 // pred_check
        %p627 = pneg %p626
      $region26: #{tpu_custom_call.1} parent=5 // pred_check_branch
        %629 = sbr.rel (%p627) target = $region28
      $region27: #{tpu_custom_call.1} parent=5 // pred_region
        // Predicated region
        $region29: #{tpu_custom_call.1} parent=27 // pred_check
          %p630 = pneg %p141
        $region30: #{tpu_custom_call.1} parent=27 // pred_check_branch
          %632 = sbr.rel (%p630) target = $region32
        $region31: #{tpu_custom_call.1} parent=27 // pred_region
          %p633 = scmp.lt.s32.totalorder %s39, 1
          %s634 = scalar_select %p633, %s39, 1
          %s635 = smul.addr %s634, 4
          %s636 = smul.addr %s635, 8
          %s637 = scalar_lea.vmem %s3, %s636
        $region32: #{tpu_custom_call.1} parent=27 // pred_fallthru
          _
        // Predicated region
        $region33: #{tpu_custom_call.1} parent=27 // pred_check
          %p638 = pneg %p167
        $region34: #{tpu_custom_call.1} parent=27 // pred_check_branch
          %640 = sbr.rel (%p638) target = $region36
        $region35: #{tpu_custom_call.1} parent=27 // pred_region
          %p641 = scmp.lt.s32.totalorder %s39, 1
          %s642 = scalar_select %p641, %s39, 1
          %s643 = smul.addr %s642, 4
          %s644 = smul.addr %s643, 8
          %s645 = scalar_lea.vmem %s4, %s644
        $region36: #{tpu_custom_call.1} parent=27 // pred_fallthru
          _
        // Predicated region
        $region37: #{tpu_custom_call.1} parent=27 // pred_check
          %p646 = pneg %p193
        $region38: #{tpu_custom_call.1} parent=27 // pred_check_branch
          %648 = sbr.rel (%p646) target = $region40
        $region39: #{tpu_custom_call.1} parent=27 // pred_region
          %p649 = scmp.lt.s32.totalorder %s39, 1
          %s650 = scalar_select %p649, %s39, 1
          %s651 = smul.addr %s650, 4
          %s652 = smul.addr %s651, 8
          %s653 = scalar_lea.vmem %s5, %s652
        $region40: #{tpu_custom_call.1} parent=27 // pred_fallthru
          _
        // Predicated region
        $region41: #{tpu_custom_call.1} parent=27 // pred_check
          %p654 = pneg %p219
        $region42: #{tpu_custom_call.1} parent=27 // pred_check_branch
          %656 = sbr.rel (%p654) target = $region44
        $region43: #{tpu_custom_call.1} parent=27 // pred_region
          %p657 = scmp.lt.s32.totalorder %s39, 1
          %s658 = scalar_select %p657, %s39, 1
          %s659 = scalar_lea.vmem %s6, %s658
        $region44: #{tpu_custom_call.1} parent=27 // pred_fallthru
          _
        // Predicated region
        $region45: #{tpu_custom_call.1} parent=27 // pred_check
          %p660 = pneg %p245
        $region46: #{tpu_custom_call.1} parent=27 // pred_check_branch
          %662 = sbr.rel (%p660) target = $region48
        $region47: #{tpu_custom_call.1} parent=27 // pred_region
          %p663 = scmp.lt.s32.totalorder %s39, 1
          %s664 = scalar_select %p663, %s39, 1
          %s665 = scalar_lea.vmem %s7, %s664
        $region48: #{tpu_custom_call.1} parent=27 // pred_fallthru
          _
        // Predicated region
        $region49: #{tpu_custom_call.1} parent=27 // pred_check
          %p666 = pneg %p271
        $region50: #{tpu_custom_call.1} parent=27 // pred_check_branch
          %668 = sbr.rel (%p666) target = $region52
        $region51: #{tpu_custom_call.1} parent=27 // pred_region
          %p669 = scmp.lt.s32.totalorder %s39, 1
          %s670 = scalar_select %p669, %s39, 1
          %s671 = scalar_lea.vmem %s8, %s670
        $region52: #{tpu_custom_call.1} parent=27 // pred_fallthru
          _
        // Predicated region
        $region53: #{tpu_custom_call.1} parent=27 // pred_check
          %p672 = pneg %p297
        $region54: #{tpu_custom_call.1} parent=27 // pred_check_branch
          %674 = sbr.rel (%p672) target = $region56
        $region55: #{tpu_custom_call.1} parent=27 // pred_region
          %s675 = sand.u32 %s31, 1
          %s676 = scalar_lea.sflag [#allocation10], %s675
          %s677 = sand.u32 %s287, 1
          %s678 = smul.addr %s677, 32
          %s679 = scalar_lea.vmem [#allocation9], %s678
          %s681 = ssub.s32 512, 512
          %682 = vsyncadd %s676, %s681
          %s683 = smul.addr %s39, 4
          %s684 = smul.addr %s683, 128
          %s685 = scalar_lea.hbm %s9, %s684
          %s686 = sshll.u32 %s679, 4
          %s687 = int_to_ptr.vmem [resolvable:$true] %s686
          %692 = dma.hbm_to_vmem [thread:$0]  %s685, 512, %s687, %s676, 128, 128, 8
        $region56: #{tpu_custom_call.1} parent=27 // pred_fallthru
          _
        // Predicated region
        $region57: #{tpu_custom_call.1} parent=27 // pred_check
          %p693 = pneg %p323
        $region58: #{tpu_custom_call.1} parent=27 // pred_check_branch
          %695 = sbr.rel (%p693) target = $region60
        $region59: #{tpu_custom_call.1} parent=27 // pred_region
          %p696 = scmp.lt.s32.totalorder %s39, 1
          %s697 = scalar_select %p696, %s39, 1
          %s698 = scalar_lea.vmem %s10, %s697
        $region60: #{tpu_custom_call.1} parent=27 // pred_fallthru
          _
        // Predicated region
        $region61: #{tpu_custom_call.1} parent=27 // pred_check
          %p699 = pneg %p349
        $region62: #{tpu_custom_call.1} parent=27 // pred_check_branch
          %701 = sbr.rel (%p699) target = $region64
        $region63: #{tpu_custom_call.1} parent=27 // pred_region
          %s702 = sand.u32 %s31, 1
          %s703 = scalar_lea.sflag [#allocation10], %s702
          %s704 = sand.u32 %s339, 1
          %s705 = smul.addr %s704, 32
          %s706 = scalar_lea.vmem [#allocation11], %s705
          %s708 = ssub.s32 512, 512
          %709 = vsyncadd %s703, %s708
          %s710 = smul.addr %s39, 4
          %s711 = smul.addr %s710, 128
          %s712 = scalar_lea.hbm %s11, %s711
          %s713 = sshll.u32 %s706, 4
          %s714 = int_to_ptr.vmem [resolvable:$true] %s713
          %719 = dma.hbm_to_vmem [thread:$0]  %s712, 512, %s714, %s703, 128, 128, 8
        $region64: #{tpu_custom_call.1} parent=27 // pred_fallthru
          _
        // Predicated region
        $region65: #{tpu_custom_call.1} parent=27 // pred_check
          %p720 = pneg %p375
        $region66: #{tpu_custom_call.1} parent=27 // pred_check_branch
          %722 = sbr.rel (%p720) target = $region68
        $region67: #{tpu_custom_call.1} parent=27 // pred_region
          %p723 = scmp.lt.s32.totalorder %s39, 1
          %s724 = scalar_select %p723, %s39, 1
          %s725 = scalar_lea.vmem %s12, %s724
        $region68: #{tpu_custom_call.1} parent=27 // pred_fallthru
          _
        // Predicated region
        $region69: #{tpu_custom_call.1} parent=27 // pred_check
          %p726 = pneg %p401
        $region70: #{tpu_custom_call.1} parent=27 // pred_check_branch
          %728 = sbr.rel (%p726) target = $region72
        $region71: #{tpu_custom_call.1} parent=27 // pred_region
          %p729 = scmp.lt.s32.totalorder %s39, 1
          %s730 = scalar_select %p729, %s39, 1
          %s731 = smul.addr %s730, 8
          %s732 = smul.addr %s731, 8
          %s733 = scalar_lea.vmem %s13, %s732
        $region72: #{tpu_custom_call.1} parent=27 // pred_fallthru
          _
        // Predicated region
        $region73: #{tpu_custom_call.1} parent=27 // pred_check
          %p734 = pneg %p427
        $region74: #{tpu_custom_call.1} parent=27 // pred_check_branch
          %736 = sbr.rel (%p734) target = $region76
        $region75: #{tpu_custom_call.1} parent=27 // pred_region
          %p737 = scmp.lt.s32.totalorder %s39, 1
          %s738 = scalar_select %p737, %s39, 1
          %s739 = scalar_lea.vmem %s14, %s738
        $region76: #{tpu_custom_call.1} parent=27 // pred_fallthru
          _
        // Predicated region
        $region77: #{tpu_custom_call.1} parent=27 // pred_check
          %p740 = pneg %p453
        $region78: #{tpu_custom_call.1} parent=27 // pred_check_branch
          %742 = sbr.rel (%p740) target = $region80
        $region79: #{tpu_custom_call.1} parent=27 // pred_region
          %p743 = scmp.lt.s32.totalorder %s39, 1
          %s744 = scalar_select %p743, %s39, 1
          %s745 = scalar_lea.vmem %s15, %s744
        $region80: #{tpu_custom_call.1} parent=27 // pred_fallthru
          _
        // Predicated region
        $region81: #{tpu_custom_call.1} parent=27 // pred_check
          %p746 = pneg %p479
        $region82: #{tpu_custom_call.1} parent=27 // pred_check_branch
          %748 = sbr.rel (%p746) target = $region84
        $region83: #{tpu_custom_call.1} parent=27 // pred_region
          %p749 = scmp.lt.s32.totalorder %s39, 1
          %s750 = scalar_select %p749, %s39, 1
          %s751 = scalar_lea.vmem %s16, %s750
        $region84: #{tpu_custom_call.1} parent=27 // pred_fallthru
          _
        // Predicated region
        $region85: #{tpu_custom_call.1} parent=27 // pred_check
          %p752 = pneg %p505
        $region86: #{tpu_custom_call.1} parent=27 // pred_check_branch
          %754 = sbr.rel (%p752) target = $region88
        $region87: #{tpu_custom_call.1} parent=27 // pred_region
          %p755 = scmp.lt.s32.totalorder %s39, 1
          %s756 = scalar_select %p755, %s39, 1
          %s757 = scalar_lea.vmem %s17, %s756
        $region88: #{tpu_custom_call.1} parent=27 // pred_fallthru
          _
        // Predicated region
        $region89: #{tpu_custom_call.1} parent=27 // pred_check
          %p758 = pneg %p531
        $region90: #{tpu_custom_call.1} parent=27 // pred_check_branch
          %760 = sbr.rel (%p758) target = $region92
        $region91: #{tpu_custom_call.1} parent=27 // pred_region
          %p761 = scmp.lt.s32.totalorder %s39, 1
          %s762 = scalar_select %p761, %s39, 1
          %s763 = scalar_lea.vmem %s18, %s762
        $region92: #{tpu_custom_call.1} parent=27 // pred_fallthru
          _
      $region28: #{tpu_custom_call.1} parent=5 // pred_fallthru
        _
      %p764 = scmp.le.s32.totalorder 1, %s31
      %p765 = scmp.lt.s32.totalorder %s31, 3
      %p766 = pnand %p764, %p765
      %p767 = pneg %p766
      // Predicated region
      $region93: #{tpu_custom_call.1} parent=5 // pred_check
        _
      $region94: #{tpu_custom_call.1} parent=5 // pred_check_branch
        %769 = sbr.rel (%p766) target = $region96
      $region95: #{tpu_custom_call.1} parent=5 // pred_region
        %s770 = ssub.s32 %s31, 1
        // Predicated region
        $region97: #{tpu_custom_call.1} parent=95 // pred_check
          %p771 = pneg %p69
        $region98: #{tpu_custom_call.1} parent=95 // pred_check_branch
          %773 = sbr.rel (%p771) target = $region100
        $region99: #{tpu_custom_call.1} parent=95 // pred_region
          %774 = dma.done [#allocation4], 256
        $region100: #{tpu_custom_call.1} parent=95 // pred_fallthru
          _
        // Predicated region
        $region101: #{tpu_custom_call.1} parent=95 // pred_check
          %p775 = pneg %p95
        $region102: #{tpu_custom_call.1} parent=95 // pred_check_branch
          %777 = sbr.rel (%p775) target = $region104
        $region103: #{tpu_custom_call.1} parent=95 // pred_region
          %778 = dma.done [#allocation7], 256
        $region104: #{tpu_custom_call.1} parent=95 // pred_fallthru
          _
        // Predicated region
        $region105: #{tpu_custom_call.1} parent=95 // pred_check
          %p779 = pneg %p121
        $region106: #{tpu_custom_call.1} parent=95 // pred_check_branch
          %781 = sbr.rel (%p779) target = $region108
        $region107: #{tpu_custom_call.1} parent=95 // pred_region
          %782 = dma.done [#allocation7], 256
        $region108: #{tpu_custom_call.1} parent=95 // pred_fallthru
          _
        %s783 = sand.u32 %s36, 1
        %s784 = scalar_lea.sflag [#allocation10], %s783
        %s785 = sand.u32 %s290, 1
        %s786 = smul.addr %s785, 32
        %s787 = scalar_lea.vmem [#allocation9], %s786
        // Predicated region
        $region109: #{tpu_custom_call.1} parent=95 // pred_check
          %p788 = pneg %p303
        $region110: #{tpu_custom_call.1} parent=95 // pred_check_branch
          %790 = sbr.rel (%p788) target = $region112
        $region111: #{tpu_custom_call.1} parent=95 // pred_region
          %791 = dma.done %s784, 512
        $region112: #{tpu_custom_call.1} parent=95 // pred_fallthru
          _
        %s792 = sand.u32 %s36, 1
        %s793 = scalar_lea.sflag [#allocation10], %s792
        %s794 = sand.u32 %s342, 1
        %s795 = smul.addr %s794, 32
        %s796 = scalar_lea.vmem [#allocation11], %s795
        // Predicated region
        $region113: #{tpu_custom_call.1} parent=95 // pred_check
          %p797 = pneg %p355
        $region114: #{tpu_custom_call.1} parent=95 // pred_check_branch
          %799 = sbr.rel (%p797) target = $region116
        $region115: #{tpu_custom_call.1} parent=95 // pred_region
          %800 = dma.done %s793, 512
        $region116: #{tpu_custom_call.1} parent=95 // pred_fallthru
          _
        %p801 = pneg %p69
        %p802 = pneg %p66
        %p803 = pneg %p95
        %p804 = pneg %p92
        %p805 = pneg %p121
        %p806 = pneg %p118
        %p807 = scmp.lt.s32.totalorder %s41, 1
        %s808 = scalar_select %p807, %s41, 1
        %s809 = smul.addr %s808, 4
        %s810 = smul.addr %s809, 8
        %s811 = scalar_lea.vmem %s3, %s810
        %p812 = pneg %p147
        %p813 = pneg %p144
        %p814 = scmp.lt.s32.totalorder %s41, 1
        %s815 = scalar_select %p814, %s41, 1
        %s816 = smul.addr %s815, 4
        %s817 = smul.addr %s816, 8
        %s818 = scalar_lea.vmem %s4, %s817
        %p819 = pneg %p173
        %p820 = pneg %p170
        %p821 = scmp.lt.s32.totalorder %s41, 1
        %s822 = scalar_select %p821, %s41, 1
        %s823 = smul.addr %s822, 4
        %s824 = smul.addr %s823, 8
        %s825 = scalar_lea.vmem %s5, %s824
        %p826 = pneg %p199
        %p827 = pneg %p196
        %p828 = scmp.lt.s32.totalorder %s41, 1
        %s829 = scalar_select %p828, %s41, 1
        %s830 = scalar_lea.vmem %s6, %s829
        %p831 = pneg %p225
        %p832 = pneg %p222
        %p833 = scmp.lt.s32.totalorder %s41, 1
        %s834 = scalar_select %p833, %s41, 1
        %s835 = scalar_lea.vmem %s7, %s834
        %p836 = pneg %p251
        %p837 = pneg %p248
        %p838 = scmp.lt.s32.totalorder %s41, 1
        %s839 = scalar_select %p838, %s41, 1
        %s840 = scalar_lea.vmem %s8, %s839
        %p841 = pneg %p277
        %p842 = pneg %p274
        %s843 = sand.u32 %s36, 1
        %s844 = scalar_lea.sflag [#allocation10], %s843
        %s845 = sand.u32 %s290, 1
        %s846 = smul.addr %s845, 32
        %s847 = scalar_lea.vmem [#allocation9], %s846
        %p848 = pneg %p303
        %p849 = pneg %p300
        %p850 = scmp.lt.s32.totalorder %s41, 1
        %s851 = scalar_select %p850, %s41, 1
        %s852 = scalar_lea.vmem %s10, %s851
        %p853 = pneg %p329
        %p854 = pneg %p326
        %s855 = sand.u32 %s36, 1
        %s856 = scalar_lea.sflag [#allocation10], %s855
        %s857 = sand.u32 %s342, 1
        %s858 = smul.addr %s857, 32
        %s859 = scalar_lea.vmem [#allocation11], %s858
        %p860 = pneg %p355
        %p861 = pneg %p352
        %p862 = scmp.lt.s32.totalorder %s41, 1
        %s863 = scalar_select %p862, %s41, 1
        %s864 = scalar_lea.vmem %s12, %s863
        %p865 = pneg %p381
        %p866 = pneg %p378
        %p867 = scmp.lt.s32.totalorder %s41, 1
        %s868 = scalar_select %p867, %s41, 1
        %s869 = smul.addr %s868, 8
        %s870 = smul.addr %s869, 8
        %s871 = scalar_lea.vmem %s13, %s870
        %p872 = pneg %p407
        %p873 = pneg %p404
        %p874 = scmp.lt.s32.totalorder %s41, 1
        %s875 = scalar_select %p874, %s41, 1
        %s876 = scalar_lea.vmem %s14, %s875
        %p877 = pneg %p433
        %p878 = pneg %p430
        %p879 = scmp.lt.s32.totalorder %s41, 1
        %s880 = scalar_select %p879, %s41, 1
        %s881 = scalar_lea.vmem %s15, %s880
        %p882 = pneg %p459
        %p883 = pneg %p456
        %p884 = scmp.lt.s32.totalorder %s41, 1
        %s885 = scalar_select %p884, %s41, 1
        %s886 = scalar_lea.vmem %s16, %s885
        %p887 = pneg %p485
        %p888 = pneg %p482
        %p889 = scmp.lt.s32.totalorder %s41, 1
        %s890 = scalar_select %p889, %s41, 1
        %s891 = scalar_lea.vmem %s17, %s890
        %p892 = pneg %p511
        %p893 = pneg %p508
        %p894 = scmp.lt.s32.totalorder %s41, 1
        %s895 = scalar_select %p894, %s41, 1
        %s896 = scalar_lea.vmem %s18, %s895
        %p897 = pneg %p537
        %p898 = pneg %p534
        %p899 = pneg %p563
        %p900 = pneg %p560
        %s901 = smul.u32 2, %s40
        %s902 = smul.u32 2, %s40
        %s903 = smul.u32 2, %s40
        %p904 = scmp.lt.s32.totalorder %s41, 1
        %s905 = scalar_select %p904, %s41, 1
        %s906 = smul.addr %s905, 4
        %s907 = smul.addr %s906, 8
        %s908 = scalar_lea.vmem %s3, %s907
        %p909 = scmp.lt.s32.totalorder %s41, 1
        %s910 = scalar_select %p909, %s41, 1
        %s911 = smul.addr %s910, 4
        %s912 = smul.addr %s911, 8
        %s913 = scalar_lea.vmem %s4, %s912
        %p914 = scmp.lt.s32.totalorder %s41, 1
        %s915 = scalar_select %p914, %s41, 1
        %s916 = smul.addr %s915, 4
        %s917 = smul.addr %s916, 8
        %s918 = scalar_lea.vmem %s5, %s917
        %p919 = scmp.lt.s32.totalorder %s41, 1
        %s920 = scalar_select %p919, %s41, 1
        %s921 = scalar_lea.vmem %s6, %s920
        %p922 = scmp.lt.s32.totalorder %s41, 1
        %s923 = scalar_select %p922, %s41, 1
        %s924 = scalar_lea.vmem %s7, %s923
        %p925 = scmp.lt.s32.totalorder %s41, 1
        %s926 = scalar_select %p925, %s41, 1
        %s927 = scalar_lea.vmem %s8, %s926
        %p928 = scmp.lt.s32.totalorder %s41, 1
        %s929 = scalar_select %p928, %s41, 1
        %s930 = scalar_lea.vmem %s10, %s929
        %p931 = scmp.lt.s32.totalorder %s41, 1
        %s932 = scalar_select %p931, %s41, 1
        %s933 = scalar_lea.vmem %s12, %s932
        %p934 = scmp.lt.s32.totalorder %s41, 1
        %s935 = scalar_select %p934, %s41, 1
        %s936 = smul.addr %s935, 8
        %s937 = smul.addr %s936, 8
        %s938 = scalar_lea.vmem %s13, %s937
        %p939 = scmp.lt.s32.totalorder %s41, 1
        %s940 = scalar_select %p939, %s41, 1
        %s941 = scalar_lea.vmem %s14, %s940
        %p942 = scmp.lt.s32.totalorder %s41, 1
        %s943 = scalar_select %p942, %s41, 1
        %s944 = scalar_lea.vmem %s15, %s943
        %p945 = scmp.lt.s32.totalorder %s41, 1
        %s946 = scalar_select %p945, %s41, 1
        %s947 = scalar_lea.vmem %s16, %s946
        %p948 = scmp.lt.s32.totalorder %s41, 1
        %s949 = scalar_select %p948, %s41, 1
        %s950 = scalar_lea.vmem %s17, %s949
        %p951 = scmp.lt.s32.totalorder %s41, 1
        %s952 = scalar_select %p951, %s41, 1
        %s953 = scalar_lea.vmem %s18, %s952
        %s954 = smul.u32 2, %s40
        %p955 = scmp.eq.s32.totalorder %s41, 0
        // Predicated region
        $region117: #{tpu_custom_call.1} parent=95 // pred_check
          %p956 = pneg %p955
        $region118: #{tpu_custom_call.1} parent=95 // pred_check_branch
          %958 = sbr.rel (%p956) target = $region120
        $region119: #{tpu_custom_call.1} parent=95 // pred_region
          %v959 = vld [vmem:[#allocation3] sm:$0xff]
          %v960 = vld [vmem:[#allocation3 + $0x8] sm:$0xff]
          %vm961 = vcmask 261120
          %962 = vst.msk [vmem:[#allocation2] sm:$0xff] %vm961, %v959
          %963 = vst.msk [vmem:[#allocation2 + $0x8] sm:$0xff] %vm961, %v960
        $region120: #{tpu_custom_call.1} parent=95 // pred_fallthru
          _
        %v964 = vld [vmem:[#allocation2] sm:$0xff]
        %v965 = vld [vmem:[#allocation2 + $0x8] sm:$0xff]
        %v966 = vld [vmem:[#allocation6] sm:$0xff]
        %v967 = vld [vmem:[#allocation6 + $0x8] sm:$0xff]
        %v968 = vld [vmem:[#allocation8] sm:$0xff]
        %v969 = vld [vmem:[#allocation8 + $0x8] sm:$0xff]
        %v970 = vld [vmem:[%s908] sm:$0xff]
        %v971 = vld [vmem:[%s908 + $0x8] sm:$0xff]
        %v972 = vld [vmem:[%s908 + $0x10] sm:$0xff]
        %v973 = vld [vmem:[%s908 + $0x18] sm:$0xff]
        %v974 = vld [vmem:[%s921] sm:$0x1]
        %v976 = vlaneseq
        %v977 = vshrl.u32 %v976, 7
        %v978 = vsub.s32 0, %v977
        %v979 = vrot.slane %v974, %v978
        %vm981 = vcmask 261120
        %v983 = vsel %vm981, %v964, 0
        %v986 = vsel %vm981, %v965, 0
        %988 = vmatprep.subr.mxu0 0.0
        %989 = vmatpush1.msra.mxu0 0.0
        %990 = vmatprep.subr.mxu0 0.0
        %991 = vmatpush1.msra.mxu0 0.0
        %992 = vmatprep.subr.mxu0 0.0
        %993 = vmatpush1.msra.mxu0 0.0
        %994 = vmatprep.subr.mxu0 0.0
        %995 = vmatpush1.msra.mxu0 0.0
        %996 = vmatprep.subr.mxu0 0.0
        %997 = vmatpush1.msra.mxu0 0.0
        %998 = vmatprep.subr.mxu0 0.0
        %999 = vmatpush1.msra.mxu0 0.0
        %1000 = vmatprep.subr.mxu0 0.0
        %1001 = vmatpush1.msra.mxu0 0.0
        %1002 = vmatprep.subr.mxu0 0.0
        %1003 = vmatpush1.msra.mxu0 0.0
        %1004 = vmatprep.subr.mxu0 0.0
        %1005 = vmatpush1.msra.mxu0 0.0
        %1006 = vmatprep.subr.mxu0 0.0
        %1007 = vmatpush1.msra.mxu0 0.0
        %1008 = vmatprep.subr.mxu0 0.0
        %1009 = vmatpush1.msra.mxu0 0.0
        %1010 = vmatprep.subr.mxu0 0.0
        %1011 = vmatpush1.msra.mxu0 0.0
        %1012 = vmatprep.subr.mxu0 0.0
        %1013 = vmatpush1.msra.mxu0 %v973
        %1014 = vmatprep.subr.mxu0 0.0
        %1015 = vmatpush1.msra.mxu0 %v972
        %1016 = vmatprep.subr.mxu0 0.0
        %1017 = vmatpush1.msra.mxu0 %v971
        %1018 = vmatprep.subr.mxu0 0.0
        %1019 = vmatpush1.msra.mxu0 %v970
        %1020 = vmatprep.subr.mxu0 0.0
        %1021 = vmatpush2.msra.mxu0 0.0
        %1022 = vmatprep.subr.mxu0 0.0
        %1023 = vmatpush2.msra.mxu0 0.0
        %1024 = vmatprep.subr.mxu0 0.0
        %1025 = vmatpush2.msra.mxu0 0.0
        %1026 = vmatprep.subr.mxu0 0.0
        %1027 = vmatpush2.msra.mxu0 0.0
        %1028 = vmatprep.subr.mxu0 0.0
        %1029 = vmatpush2.msra.mxu0 0.0
        %1030 = vmatprep.subr.mxu0 0.0
        %1031 = vmatpush2.msra.mxu0 0.0
        %1032 = vmatprep.subr.mxu0 0.0
        %1033 = vmatpush2.msra.mxu0 0.0
        %1034 = vmatprep.subr.mxu0 0.0
        %1035 = vmatpush2.msra.mxu0 0.0
        %1036 = vmatprep.subr.mxu0 0.0
        %1037 = vmatpush2.msra.mxu0 0.0
        %1038 = vmatprep.subr.mxu0 0.0
        %1039 = vmatpush2.msra.mxu0 0.0
        %1040 = vmatprep.subr.mxu0 0.0
        %1041 = vmatpush2.msra.mxu0 0.0
        %1042 = vmatprep.subr.mxu0 0.0
        %1043 = vmatpush2.msra.mxu0 0.0
        %1044 = vmatprep.subr.mxu0 0.0
        %1045 = vmatpush2.msra.mxu0 0.0
        %1046 = vmatprep.subr.mxu0 0.0
        %1047 = vmatpush2.msra.mxu0 0.0
        %1048 = vmatprep.subr.mxu0 0.0
        %1049 = vmatpush2.msra.mxu0 0.0
        %1050 = vmatprep.subr.mxu0 0.0
        %1051 = vmatpush2.msra.mxu0 0.0
        %1052 = vmatprep.mubr.f32.mxu0 0.0
        %1053 = vmatmul.mubr.f32.gmra.mxu0 %v983
        %v1054 = vpop.f32.mrf.mxu0
        %v1055 = vadd.f32 %v979, %v1054
        %v1056 = vpop.f32.mrf.mxu0
        %1057 = vmatprep.mubr.f32.mxu0 0.0
        %1058 = vmatmul.mubr.f32.gmra.mxu0 %v986
        %v1059 = vpop.f32.mrf.mxu0
        %v1060 = vadd.f32 %v979, %v1059
        %v1061 = vpop.f32.mrf.mxu0
        %1062 = vdwg.mxu0
        %v1063 = vld [vmem:[%s913] sm:$0xff]
        %v1064 = vld [vmem:[%s913 + $0x8] sm:$0xff]
        %v1065 = vld [vmem:[%s913 + $0x10] sm:$0xff]
        %v1066 = vld [vmem:[%s913 + $0x18] sm:$0xff]
        %v1067 = vld [vmem:[%s924] sm:$0x1]
        %v1069 = vlaneseq
        %v1070 = vshrl.u32 %v1069, 7
        %v1071 = vsub.s32 0, %v1070
        %v1072 = vrot.slane %v1067, %v1071
        %v1075 = vsel %vm981, %v966, 0
        %v1078 = vsel %vm981, %v967, 0
        %1080 = vmatprep.subr.mxu0 0.0
        %1081 = vmatpush1.msra.mxu0 0.0
        %1082 = vmatprep.subr.mxu0 0.0
        %1083 = vmatpush1.msra.mxu0 0.0
        %1084 = vmatprep.subr.mxu0 0.0
        %1085 = vmatpush1.msra.mxu0 0.0
        %1086 = vmatprep.subr.mxu0 0.0
        %1087 = vmatpush1.msra.mxu0 0.0
        %1088 = vmatprep.subr.mxu0 0.0
        %1089 = vmatpush1.msra.mxu0 0.0
        %1090 = vmatprep.subr.mxu0 0.0
        %1091 = vmatpush1.msra.mxu0 0.0
        %1092 = vmatprep.subr.mxu0 0.0
        %1093 = vmatpush1.msra.mxu0 0.0
        %1094 = vmatprep.subr.mxu0 0.0
        %1095 = vmatpush1.msra.mxu0 0.0
        %1096 = vmatprep.subr.mxu0 0.0
        %1097 = vmatpush1.msra.mxu0 0.0
        %1098 = vmatprep.subr.mxu0 0.0
        %1099 = vmatpush1.msra.mxu0 0.0
        %1100 = vmatprep.subr.mxu0 0.0
        %1101 = vmatpush1.msra.mxu0 0.0
        %1102 = vmatprep.subr.mxu0 0.0
        %1103 = vmatpush1.msra.mxu0 0.0
        %1104 = vmatprep.subr.mxu0 0.0
        %1105 = vmatpush1.msra.mxu0 %v1066
        %1106 = vmatprep.subr.mxu0 0.0
        %1107 = vmatpush1.msra.mxu0 %v1065
        %1108 = vmatprep.subr.mxu0 0.0
        %1109 = vmatpush1.msra.mxu0 %v1064
        %1110 = vmatprep.subr.mxu0 0.0
        %1111 = vmatpush1.msra.mxu0 %v1063
        %1112 = vmatprep.subr.mxu0 0.0
        %1113 = vmatpush2.msra.mxu0 0.0
        %1114 = vmatprep.subr.mxu0 0.0
        %1115 = vmatpush2.msra.mxu0 0.0
        %1116 = vmatprep.subr.mxu0 0.0
        %1117 = vmatpush2.msra.mxu0 0.0
        %1118 = vmatprep.subr.mxu0 0.0
        %1119 = vmatpush2.msra.mxu0 0.0
        %1120 = vmatprep.subr.mxu0 0.0
        %1121 = vmatpush2.msra.mxu0 0.0
        %1122 = vmatprep.subr.mxu0 0.0
        %1123 = vmatpush2.msra.mxu0 0.0
        %1124 = vmatprep.subr.mxu0 0.0
        %1125 = vmatpush2.msra.mxu0 0.0
        %1126 = vmatprep.subr.mxu0 0.0
        %1127 = vmatpush2.msra.mxu0 0.0
        %1128 = vmatprep.subr.mxu0 0.0
        %1129 = vmatpush2.msra.mxu0 0.0
        %1130 = vmatprep.subr.mxu0 0.0
        %1131 = vmatpush2.msra.mxu0 0.0
        %1132 = vmatprep.subr.mxu0 0.0
        %1133 = vmatpush2.msra.mxu0 0.0
        %1134 = vmatprep.subr.mxu0 0.0
        %1135 = vmatpush2.msra.mxu0 0.0
        %1136 = vmatprep.subr.mxu0 0.0
        %1137 = vmatpush2.msra.mxu0 0.0
        %1138 = vmatprep.subr.mxu0 0.0
        %1139 = vmatpush2.msra.mxu0 0.0
        %1140 = vmatprep.subr.mxu0 0.0
        %1141 = vmatpush2.msra.mxu0 0.0
        %1142 = vmatprep.subr.mxu0 0.0
        %1143 = vmatpush2.msra.mxu0 0.0
        %1144 = vmatprep.mubr.f32.mxu0 0.0
        %1145 = vmatmul.mubr.f32.gmra.mxu0 %v1075
        %v1146 = vpop.f32.mrf.mxu0
        %v1147 = vadd.f32 %v1072, %v1146
        %v1148 = vpop.f32.mrf.mxu0
        %1149 = vmatprep.mubr.f32.mxu0 0.0
        %1150 = vmatmul.mubr.f32.gmra.mxu0 %v1078
        %v1151 = vpop.f32.mrf.mxu0
        %v1152 = vadd.f32 %v1072, %v1151
        %v1153 = vpop.f32.mrf.mxu0
        %1154 = vdwg.mxu0
        %v1155 = vld [vmem:[%s918] sm:$0xff]
        %v1156 = vld [vmem:[%s918 + $0x8] sm:$0xff]
        %v1157 = vld [vmem:[%s918 + $0x10] sm:$0xff]
        %v1158 = vld [vmem:[%s918 + $0x18] sm:$0xff]
        %v1159 = vld [vmem:[%s927] sm:$0x1]
        %v1161 = vlaneseq
        %v1162 = vshrl.u32 %v1161, 7
        %v1163 = vsub.s32 0, %v1162
        %v1164 = vrot.slane %v1159, %v1163
        %v1167 = vsel %vm981, %v968, 0
        %v1170 = vsel %vm981, %v969, 0
        %1172 = vmatprep.subr.mxu0 0.0
        %1173 = vmatpush1.msra.mxu0 0.0
        %1174 = vmatprep.subr.mxu0 0.0
        %1175 = vmatpush1.msra.mxu0 0.0
        %1176 = vmatprep.subr.mxu0 0.0
        %1177 = vmatpush1.msra.mxu0 0.0
        %1178 = vmatprep.subr.mxu0 0.0
        %1179 = vmatpush1.msra.mxu0 0.0
        %1180 = vmatprep.subr.mxu0 0.0
        %1181 = vmatpush1.msra.mxu0 0.0
        %1182 = vmatprep.subr.mxu0 0.0
        %1183 = vmatpush1.msra.mxu0 0.0
        %1184 = vmatprep.subr.mxu0 0.0
        %1185 = vmatpush1.msra.mxu0 0.0
        %1186 = vmatprep.subr.mxu0 0.0
        %1187 = vmatpush1.msra.mxu0 0.0
        %1188 = vmatprep.subr.mxu0 0.0
        %1189 = vmatpush1.msra.mxu0 0.0
        %1190 = vmatprep.subr.mxu0 0.0
        %1191 = vmatpush1.msra.mxu0 0.0
        %1192 = vmatprep.subr.mxu0 0.0
        %1193 = vmatpush1.msra.mxu0 0.0
        %1194 = vmatprep.subr.mxu0 0.0
        %1195 = vmatpush1.msra.mxu0 0.0
        %1196 = vmatprep.subr.mxu0 0.0
        %1197 = vmatpush1.msra.mxu0 %v1158
        %1198 = vmatprep.subr.mxu0 0.0
        %1199 = vmatpush1.msra.mxu0 %v1157
        %1200 = vmatprep.subr.mxu0 0.0
        %1201 = vmatpush1.msra.mxu0 %v1156
        %1202 = vmatprep.subr.mxu0 0.0
        %1203 = vmatpush1.msra.mxu0 %v1155
        %1204 = vmatprep.subr.mxu0 0.0
        %1205 = vmatpush2.msra.mxu0 0.0
        %1206 = vmatprep.subr.mxu0 0.0
        %1207 = vmatpush2.msra.mxu0 0.0
        %1208 = vmatprep.subr.mxu0 0.0
        %1209 = vmatpush2.msra.mxu0 0.0
        %1210 = vmatprep.subr.mxu0 0.0
        %1211 = vmatpush2.msra.mxu0 0.0
        %1212 = vmatprep.subr.mxu0 0.0
        %1213 = vmatpush2.msra.mxu0 0.0
        %1214 = vmatprep.subr.mxu0 0.0
        %1215 = vmatpush2.msra.mxu0 0.0
        %1216 = vmatprep.subr.mxu0 0.0
        %1217 = vmatpush2.msra.mxu0 0.0
        %1218 = vmatprep.subr.mxu0 0.0
        %1219 = vmatpush2.msra.mxu0 0.0
        %1220 = vmatprep.subr.mxu0 0.0
        %1221 = vmatpush2.msra.mxu0 0.0
        %1222 = vmatprep.subr.mxu0 0.0
        %1223 = vmatpush2.msra.mxu0 0.0
        %1224 = vmatprep.subr.mxu0 0.0
        %1225 = vmatpush2.msra.mxu0 0.0
        %1226 = vmatprep.subr.mxu0 0.0
        %1227 = vmatpush2.msra.mxu0 0.0
        %1228 = vmatprep.subr.mxu0 0.0
        %1229 = vmatpush2.msra.mxu0 0.0
        %1230 = vmatprep.subr.mxu0 0.0
        %1231 = vmatpush2.msra.mxu0 0.0
        %1232 = vmatprep.subr.mxu0 0.0
        %1233 = vmatpush2.msra.mxu0 0.0
        %1234 = vmatprep.subr.mxu0 0.0
        %1235 = vmatpush2.msra.mxu0 0.0
        %1236 = vmatprep.mubr.f32.mxu0 0.0
        %1237 = vmatmul.mubr.f32.gmra.mxu0 %v1167
        %v1238 = vpop.f32.mrf.mxu0
        %v1239 = vadd.f32 %v1164, %v1238
        %v1240 = vpop.f32.mrf.mxu0
        %1241 = vmatprep.mubr.f32.mxu0 0.0
        %1242 = vmatmul.mubr.f32.gmra.mxu0 %v1170
        %v1243 = vpop.f32.mrf.mxu0
        %v1244 = vadd.f32 %v1164, %v1243
        %v1245 = vpop.f32.mrf.mxu0
        %1246 = vdwg.mxu0
        %vm1247 = vcmask 64512
        %v1249 = vsel %vm1247, %v1055, 0
        %v1252 = vsel %vm1247, %v1147, 0
        %1254 = vmatprep.subr.mxu0 0.0
        %1255 = vmatpush1.xpose.msra.mxu0 0.0
        %1256 = vmatprep.subr.mxu0 0.0
        %1257 = vmatpush1.xpose.msra.mxu0 0.0
        %1258 = vmatprep.subr.mxu0 0.0
        %1259 = vmatpush1.xpose.msra.mxu0 0.0
        %1260 = vmatprep.subr.mxu0 0.0
        %1261 = vmatpush1.xpose.msra.mxu0 0.0
        %1262 = vmatprep.subr.mxu0 0.0
        %1263 = vmatpush1.xpose.msra.mxu0 0.0
        %1264 = vmatprep.subr.mxu0 0.0
        %1265 = vmatpush1.xpose.msra.mxu0 0.0
        %1266 = vmatprep.subr.mxu0 0.0
        %1267 = vmatpush1.xpose.msra.mxu0 0.0
        %1268 = vmatprep.subr.mxu0 0.0
        %1269 = vmatpush1.xpose.msra.mxu0 0.0
        %1270 = vmatprep.subr.mxu0 0.0
        %1271 = vmatpush1.xpose.msra.mxu0 0.0
        %1272 = vmatprep.subr.mxu0 0.0
        %1273 = vmatpush1.xpose.msra.mxu0 0.0
        %1274 = vmatprep.subr.mxu0 0.0
        %1275 = vmatpush1.xpose.msra.mxu0 0.0
        %1276 = vmatprep.subr.mxu0 0.0
        %1277 = vmatpush1.xpose.msra.mxu0 0.0
        %1278 = vmatprep.subr.mxu0 0.0
        %1279 = vmatpush1.xpose.msra.mxu0 0.0
        %1280 = vmatprep.subr.mxu0 0.0
        %1281 = vmatpush1.xpose.msra.mxu0 0.0
        %1282 = vmatprep.subr.mxu0 0.0
        %1283 = vmatpush1.xpose.msra.mxu0 0.0
        %1284 = vmatprep.subr.mxu0 0.0
        %1285 = vmatpush1.xpose.msra.mxu0 %v1252
        %1286 = vmatprep.subr.mxu0 0.0
        %1287 = vmatpush2.xpose.msra.mxu0 0.0
        %1288 = vmatprep.subr.mxu0 0.0
        %1289 = vmatpush2.xpose.msra.mxu0 0.0
        %1290 = vmatprep.subr.mxu0 0.0
        %1291 = vmatpush2.xpose.msra.mxu0 0.0
        %1292 = vmatprep.subr.mxu0 0.0
        %1293 = vmatpush2.xpose.msra.mxu0 0.0
        %1294 = vmatprep.subr.mxu0 0.0
        %1295 = vmatpush2.xpose.msra.mxu0 0.0
        %1296 = vmatprep.subr.mxu0 0.0
        %1297 = vmatpush2.xpose.msra.mxu0 0.0
        %1298 = vmatprep.subr.mxu0 0.0
        %1299 = vmatpush2.xpose.msra.mxu0 0.0
        %1300 = vmatprep.subr.mxu0 0.0
        %1301 = vmatpush2.xpose.msra.mxu0 0.0
        %1302 = vmatprep.subr.mxu0 0.0
        %1303 = vmatpush2.xpose.msra.mxu0 0.0
        %1304 = vmatprep.subr.mxu0 0.0
        %1305 = vmatpush2.xpose.msra.mxu0 0.0
        %1306 = vmatprep.subr.mxu0 0.0
        %1307 = vmatpush2.xpose.msra.mxu0 0.0
        %1308 = vmatprep.subr.mxu0 0.0
        %1309 = vmatpush2.xpose.msra.mxu0 0.0
        %1310 = vmatprep.subr.mxu0 0.0
        %1311 = vmatpush2.xpose.msra.mxu0 0.0
        %1312 = vmatprep.subr.mxu0 0.0
        %1313 = vmatpush2.xpose.msra.mxu0 0.0
        %1314 = vmatprep.subr.mxu0 0.0
        %1315 = vmatpush2.xpose.msra.mxu0 0.0
        %1316 = vmatprep.subr.mxu0 0.0
        %1317 = vmatpush2.xpose.msra.mxu0 0.0
        %1318 = vmatprep.mubr.f32.mxu0 0.0
        %1319 = vmatmul.mubr.f32.gmra.mxu0 %v1249
        %v1320 = vpop.f32.mrf.mxu0
        %v1321 = vadd.f32 0.0, %v1320
        %v1322 = vpop.f32.mrf.mxu0
        %1323 = vdwg.mxu0
        %v1325 = vsel %vm1247, %v1060, 0
        %v1328 = vsel %vm1247, %v1152, 0
        %1330 = vmatprep.subr.mxu0 0.0
        %1331 = vmatpush1.xpose.msra.mxu0 0.0
        %1332 = vmatprep.subr.mxu0 0.0
        %1333 = vmatpush1.xpose.msra.mxu0 0.0
        %1334 = vmatprep.subr.mxu0 0.0
        %1335 = vmatpush1.xpose.msra.mxu0 0.0
        %1336 = vmatprep.subr.mxu0 0.0
        %1337 = vmatpush1.xpose.msra.mxu0 0.0
        %1338 = vmatprep.subr.mxu0 0.0
        %1339 = vmatpush1.xpose.msra.mxu0 0.0
        %1340 = vmatprep.subr.mxu0 0.0
        %1341 = vmatpush1.xpose.msra.mxu0 0.0
        %1342 = vmatprep.subr.mxu0 0.0
        %1343 = vmatpush1.xpose.msra.mxu0 0.0
        %1344 = vmatprep.subr.mxu0 0.0
        %1345 = vmatpush1.xpose.msra.mxu0 0.0
        %1346 = vmatprep.subr.mxu0 0.0
        %1347 = vmatpush1.xpose.msra.mxu0 0.0
        %1348 = vmatprep.subr.mxu0 0.0
        %1349 = vmatpush1.xpose.msra.mxu0 0.0
        %1350 = vmatprep.subr.mxu0 0.0
        %1351 = vmatpush1.xpose.msra.mxu0 0.0
        %1352 = vmatprep.subr.mxu0 0.0
        %1353 = vmatpush1.xpose.msra.mxu0 0.0
        %1354 = vmatprep.subr.mxu0 0.0
        %1355 = vmatpush1.xpose.msra.mxu0 0.0
        %1356 = vmatprep.subr.mxu0 0.0
        %1357 = vmatpush1.xpose.msra.mxu0 0.0
        %1358 = vmatprep.subr.mxu0 0.0
        %1359 = vmatpush1.xpose.msra.mxu0 0.0
        %1360 = vmatprep.subr.mxu0 0.0
        %1361 = vmatpush1.xpose.msra.mxu0 %v1328
        %1362 = vmatprep.subr.mxu0 0.0
        %1363 = vmatpush2.xpose.msra.mxu0 0.0
        %1364 = vmatprep.subr.mxu0 0.0
        %1365 = vmatpush2.xpose.msra.mxu0 0.0
        %1366 = vmatprep.subr.mxu0 0.0
        %1367 = vmatpush2.xpose.msra.mxu0 0.0
        %1368 = vmatprep.subr.mxu0 0.0
        %1369 = vmatpush2.xpose.msra.mxu0 0.0
        %1370 = vmatprep.subr.mxu0 0.0
        %1371 = vmatpush2.xpose.msra.mxu0 0.0
        %1372 = vmatprep.subr.mxu0 0.0
        %1373 = vmatpush2.xpose.msra.mxu0 0.0
        %1374 = vmatprep.subr.mxu0 0.0
        %1375 = vmatpush2.xpose.msra.mxu0 0.0
        %1376 = vmatprep.subr.mxu0 0.0
        %1377 = vmatpush2.xpose.msra.mxu0 0.0
        %1378 = vmatprep.subr.mxu0 0.0
        %1379 = vmatpush2.xpose.msra.mxu0 0.0
        %1380 = vmatprep.subr.mxu0 0.0
        %1381 = vmatpush2.xpose.msra.mxu0 0.0
        %1382 = vmatprep.subr.mxu0 0.0
        %1383 = vmatpush2.xpose.msra.mxu0 0.0
        %1384 = vmatprep.subr.mxu0 0.0
        %1385 = vmatpush2.xpose.msra.mxu0 0.0
        %1386 = vmatprep.subr.mxu0 0.0
        %1387 = vmatpush2.xpose.msra.mxu0 0.0
        %1388 = vmatprep.subr.mxu0 0.0
        %1389 = vmatpush2.xpose.msra.mxu0 0.0
        %1390 = vmatprep.subr.mxu0 0.0
        %1391 = vmatpush2.xpose.msra.mxu0 0.0
        %1392 = vmatprep.subr.mxu0 0.0
        %1393 = vmatpush2.xpose.msra.mxu0 0.0
        %1394 = vmatprep.mubr.f32.mxu0 0.0
        %1395 = vmatmul.mubr.f32.gmra.mxu0 %v1325
        %v1396 = vpop.f32.mrf.mxu0
        %v1397 = vadd.f32 0.0, %v1396
        %v1398 = vpop.f32.mrf.mxu0
        %1399 = vdwg.mxu0
        %v1400 = vmul.f32 %v1321, 0.35355338
        %v1401 = vmul.f32 %v1397, 0.35355338
        %v1402 = vsel %vm1247, %v1400, -inf
        %1403 = vmax.xlane.f32.xlu0 %v1402
        %v1404 = vpop.xlane.xlu0 %1403
        %v1405 = vsel %vm1247, %v1401, -inf
        %1406 = vmax.xlane.f32.xlu0 %v1405
        %v1407 = vpop.xlane.xlu0 %1406
        %v1408 = vsub.f32 %v1400, %v1404
        %v1409 = vsub.f32 %v1401, %v1407
        %v1410 = vmul.f32 %v1408, 1.442695
        %v1411 = vpow.pop %v1410
        %v1412 = vmul.f32 %v1409, 1.442695
        %v1413 = vpow.pop %v1412
        %v1414 = vsel %vm1247, %v1411, 0.0
        %1415 = vadd.xlane.f32.xlu0 %v1414
        %v1416 = vpop.xlane.xlu0 %1415
        %v1417 = vsel %vm1247, %v1413, 0.0
        %1418 = vadd.xlane.f32.xlu0 %v1417
        %v1419 = vpop.xlane.xlu0 %1418
        %v1420 = vrcp.pop %v1416
        %v1421 = vmul.f32 %v1411, %v1420
        %v1422 = vrcp.pop %v1419
        %v1423 = vmul.f32 %v1413, %v1422
        %v1425 = vsel %vm1247, %v1421, 0
        %1427 = vmatprep.subr.mxu0 0.0
        %1428 = vmatpush1.msra.mxu0 0.0
        %1429 = vmatprep.subr.mxu0 0.0
        %1430 = vmatpush1.msra.mxu0 0.0
        %1431 = vmatprep.subr.mxu0 0.0
        %1432 = vmatpush1.msra.mxu0 0.0
        %1433 = vmatprep.subr.mxu0 0.0
        %1434 = vmatpush1.msra.mxu0 0.0
        %1435 = vmatprep.subr.mxu0 0.0
        %1436 = vmatpush1.msra.mxu0 0.0
        %1437 = vmatprep.subr.mxu0 0.0
        %1438 = vmatpush1.msra.mxu0 0.0
        %1439 = vmatprep.subr.mxu0 0.0
        %1440 = vmatpush1.msra.mxu0 0.0
        %1441 = vmatprep.subr.mxu0 0.0
        %1442 = vmatpush1.msra.mxu0 0.0
        %1443 = vmatprep.subr.mxu0 0.0
        %1444 = vmatpush1.msra.mxu0 0.0
        %1445 = vmatprep.subr.mxu0 0.0
        %1446 = vmatpush1.msra.mxu0 0.0
        %1447 = vmatprep.subr.mxu0 0.0
        %1448 = vmatpush1.msra.mxu0 0.0
        %1449 = vmatprep.subr.mxu0 0.0
        %1450 = vmatpush1.msra.mxu0 0.0
        %1451 = vmatprep.subr.mxu0 0.0
        %1452 = vmatpush1.msra.mxu0 0.0
        %1453 = vmatprep.subr.mxu0 0.0
        %1454 = vmatpush1.msra.mxu0 0.0
        %1455 = vmatprep.subr.mxu0 0.0
        %1456 = vmatpush1.msra.mxu0 0.0
        %1457 = vmatprep.subr.mxu0 0.0
        %1458 = vmatpush1.msra.mxu0 %v1239
        %1459 = vmatprep.subr.mxu0 0.0
        %1460 = vmatpush2.msra.mxu0 0.0
        %1461 = vmatprep.subr.mxu0 0.0
        %1462 = vmatpush2.msra.mxu0 0.0
        %1463 = vmatprep.subr.mxu0 0.0
        %1464 = vmatpush2.msra.mxu0 0.0
        %1465 = vmatprep.subr.mxu0 0.0
        %1466 = vmatpush2.msra.mxu0 0.0
        %1467 = vmatprep.subr.mxu0 0.0
        %1468 = vmatpush2.msra.mxu0 0.0
        %1469 = vmatprep.subr.mxu0 0.0
        %1470 = vmatpush2.msra.mxu0 0.0
        %1471 = vmatprep.subr.mxu0 0.0
        %1472 = vmatpush2.msra.mxu0 0.0
        %1473 = vmatprep.subr.mxu0 0.0
        %1474 = vmatpush2.msra.mxu0 0.0
        %1475 = vmatprep.subr.mxu0 0.0
        %1476 = vmatpush2.msra.mxu0 0.0
        %1477 = vmatprep.subr.mxu0 0.0
        %1478 = vmatpush2.msra.mxu0 0.0
        %1479 = vmatprep.subr.mxu0 0.0
        %1480 = vmatpush2.msra.mxu0 0.0
        %1481 = vmatprep.subr.mxu0 0.0
        %1482 = vmatpush2.msra.mxu0 0.0
        %1483 = vmatprep.subr.mxu0 0.0
        %1484 = vmatpush2.msra.mxu0 0.0
        %1485 = vmatprep.subr.mxu0 0.0
        %1486 = vmatpush2.msra.mxu0 0.0
        %1487 = vmatprep.subr.mxu0 0.0
        %1488 = vmatpush2.msra.mxu0 0.0
        %1489 = vmatprep.subr.mxu0 0.0
        %1490 = vmatpush2.msra.mxu0 0.0
        %1491 = vmatprep.mubr.f32.mxu0 0.0
        %1492 = vmatmul.mubr.f32.gmra.mxu0 %v1425
        %v1493 = vpop.f32.mrf.mxu0
        %v1494 = vadd.f32 0.0, %v1493
        %v1495 = vpop.f32.mrf.mxu0
        %1496 = vdwg.mxu0
        %v1498 = vsel %vm1247, %v1423, 0
        %1500 = vmatprep.subr.mxu0 0.0
        %1501 = vmatpush1.msra.mxu0 0.0
        %1502 = vmatprep.subr.mxu0 0.0
        %1503 = vmatpush1.msra.mxu0 0.0
        %1504 = vmatprep.subr.mxu0 0.0
        %1505 = vmatpush1.msra.mxu0 0.0
        %1506 = vmatprep.subr.mxu0 0.0
        %1507 = vmatpush1.msra.mxu0 0.0
        %1508 = vmatprep.subr.mxu0 0.0
        %1509 = vmatpush1.msra.mxu0 0.0
        %1510 = vmatprep.subr.mxu0 0.0
        %1511 = vmatpush1.msra.mxu0 0.0
        %1512 = vmatprep.subr.mxu0 0.0
        %1513 = vmatpush1.msra.mxu0 0.0
        %1514 = vmatprep.subr.mxu0 0.0
        %1515 = vmatpush1.msra.mxu0 0.0
        %1516 = vmatprep.subr.mxu0 0.0
        %1517 = vmatpush1.msra.mxu0 0.0
        %1518 = vmatprep.subr.mxu0 0.0
        %1519 = vmatpush1.msra.mxu0 0.0
        %1520 = vmatprep.subr.mxu0 0.0
        %1521 = vmatpush1.msra.mxu0 0.0
        %1522 = vmatprep.subr.mxu0 0.0
        %1523 = vmatpush1.msra.mxu0 0.0
        %1524 = vmatprep.subr.mxu0 0.0
        %1525 = vmatpush1.msra.mxu0 0.0
        %1526 = vmatprep.subr.mxu0 0.0
        %1527 = vmatpush1.msra.mxu0 0.0
        %1528 = vmatprep.subr.mxu0 0.0
        %1529 = vmatpush1.msra.mxu0 0.0
        %1530 = vmatprep.subr.mxu0 0.0
        %1531 = vmatpush1.msra.mxu0 %v1244
        %1532 = vmatprep.subr.mxu0 0.0
        %1533 = vmatpush2.msra.mxu0 0.0
        %1534 = vmatprep.subr.mxu0 0.0
        %1535 = vmatpush2.msra.mxu0 0.0
        %1536 = vmatprep.subr.mxu0 0.0
        %1537 = vmatpush2.msra.mxu0 0.0
        %1538 = vmatprep.subr.mxu0 0.0
        %1539 = vmatpush2.msra.mxu0 0.0
        %1540 = vmatprep.subr.mxu0 0.0
        %1541 = vmatpush2.msra.mxu0 0.0
        %1542 = vmatprep.subr.mxu0 0.0
        %1543 = vmatpush2.msra.mxu0 0.0
        %1544 = vmatprep.subr.mxu0 0.0
        %1545 = vmatpush2.msra.mxu0 0.0
        %1546 = vmatprep.subr.mxu0 0.0
        %1547 = vmatpush2.msra.mxu0 0.0
        %1548 = vmatprep.subr.mxu0 0.0
        %1549 = vmatpush2.msra.mxu0 0.0
        %1550 = vmatprep.subr.mxu0 0.0
        %1551 = vmatpush2.msra.mxu0 0.0
        %1552 = vmatprep.subr.mxu0 0.0
        %1553 = vmatpush2.msra.mxu0 0.0
        %1554 = vmatprep.subr.mxu0 0.0
        %1555 = vmatpush2.msra.mxu0 0.0
        %1556 = vmatprep.subr.mxu0 0.0
        %1557 = vmatpush2.msra.mxu0 0.0
        %1558 = vmatprep.subr.mxu0 0.0
        %1559 = vmatpush2.msra.mxu0 0.0
        %1560 = vmatprep.subr.mxu0 0.0
        %1561 = vmatpush2.msra.mxu0 0.0
        %1562 = vmatprep.subr.mxu0 0.0
        %1563 = vmatpush2.msra.mxu0 0.0
        %1564 = vmatprep.mubr.f32.mxu0 0.0
        %1565 = vmatmul.mubr.f32.gmra.mxu0 %v1498
        %v1566 = vpop.f32.mrf.mxu0
        %v1567 = vadd.f32 0.0, %v1566
        %v1568 = vpop.f32.mrf.mxu0
        %1569 = vdwg.mxu0
        %1570 = vrot.lane.b32.xlu0 %v1055, 120
        %v1571 = vpop.permute.xlu0 %1570
        %1572 = vrot.lane.b32.xlu0 %v1147, 120
        %v1573 = vpop.permute.xlu0 %1572
        %v1574 = vsel %vm1247, %v1571, 0
        %v1576 = vsel %vm1247, %v1573, 0
        %1578 = vmatprep.subr.mxu0 0.0
        %1579 = vmatpush1.xpose.msra.mxu0 0.0
        %1580 = vmatprep.subr.mxu0 0.0
        %1581 = vmatpush1.xpose.msra.mxu0 0.0
        %1582 = vmatprep.subr.mxu0 0.0
        %1583 = vmatpush1.xpose.msra.mxu0 0.0
        %1584 = vmatprep.subr.mxu0 0.0
        %1585 = vmatpush1.xpose.msra.mxu0 0.0
        %1586 = vmatprep.subr.mxu0 0.0
        %1587 = vmatpush1.xpose.msra.mxu0 0.0
        %1588 = vmatprep.subr.mxu0 0.0
        %1589 = vmatpush1.xpose.msra.mxu0 0.0
        %1590 = vmatprep.subr.mxu0 0.0
        %1591 = vmatpush1.xpose.msra.mxu0 0.0
        %1592 = vmatprep.subr.mxu0 0.0
        %1593 = vmatpush1.xpose.msra.mxu0 0.0
        %1594 = vmatprep.subr.mxu0 0.0
        %1595 = vmatpush1.xpose.msra.mxu0 0.0
        %1596 = vmatprep.subr.mxu0 0.0
        %1597 = vmatpush1.xpose.msra.mxu0 0.0
        %1598 = vmatprep.subr.mxu0 0.0
        %1599 = vmatpush1.xpose.msra.mxu0 0.0
        %1600 = vmatprep.subr.mxu0 0.0
        %1601 = vmatpush1.xpose.msra.mxu0 0.0
        %1602 = vmatprep.subr.mxu0 0.0
        %1603 = vmatpush1.xpose.msra.mxu0 0.0
        %1604 = vmatprep.subr.mxu0 0.0
        %1605 = vmatpush1.xpose.msra.mxu0 0.0
        %1606 = vmatprep.subr.mxu0 0.0
        %1607 = vmatpush1.xpose.msra.mxu0 0.0
        %1608 = vmatprep.subr.mxu0 0.0
        %1609 = vmatpush1.xpose.msra.mxu0 %v1576
        %1610 = vmatprep.subr.mxu0 0.0
        %1611 = vmatpush2.xpose.msra.mxu0 0.0
        %1612 = vmatprep.subr.mxu0 0.0
        %1613 = vmatpush2.xpose.msra.mxu0 0.0
        %1614 = vmatprep.subr.mxu0 0.0
        %1615 = vmatpush2.xpose.msra.mxu0 0.0
        %1616 = vmatprep.subr.mxu0 0.0
        %1617 = vmatpush2.xpose.msra.mxu0 0.0
        %1618 = vmatprep.subr.mxu0 0.0
        %1619 = vmatpush2.xpose.msra.mxu0 0.0
        %1620 = vmatprep.subr.mxu0 0.0
        %1621 = vmatpush2.xpose.msra.mxu0 0.0
        %1622 = vmatprep.subr.mxu0 0.0
        %1623 = vmatpush2.xpose.msra.mxu0 0.0
        %1624 = vmatprep.subr.mxu0 0.0
        %1625 = vmatpush2.xpose.msra.mxu0 0.0
        %1626 = vmatprep.subr.mxu0 0.0
        %1627 = vmatpush2.xpose.msra.mxu0 0.0
        %1628 = vmatprep.subr.mxu0 0.0
        %1629 = vmatpush2.xpose.msra.mxu0 0.0
        %1630 = vmatprep.subr.mxu0 0.0
        %1631 = vmatpush2.xpose.msra.mxu0 0.0
        %1632 = vmatprep.subr.mxu0 0.0
        %1633 = vmatpush2.xpose.msra.mxu0 0.0
        %1634 = vmatprep.subr.mxu0 0.0
        %1635 = vmatpush2.xpose.msra.mxu0 0.0
        %1636 = vmatprep.subr.mxu0 0.0
        %1637 = vmatpush2.xpose.msra.mxu0 0.0
        %1638 = vmatprep.subr.mxu0 0.0
        %1639 = vmatpush2.xpose.msra.mxu0 0.0
        %1640 = vmatprep.subr.mxu0 0.0
        %1641 = vmatpush2.xpose.msra.mxu0 0.0
        %1642 = vmatprep.mubr.f32.mxu0 0.0
        %1643 = vmatmul.mubr.f32.gmra.mxu0 %v1574
        %v1644 = vpop.f32.mrf.mxu0
        %v1645 = vadd.f32 0.0, %v1644
        %v1646 = vpop.f32.mrf.mxu0
        %1647 = vdwg.mxu0
        %1648 = vrot.lane.b32.xlu0 %v1060, 120
        %v1649 = vpop.permute.xlu0 %1648
        %1650 = vrot.lane.b32.xlu0 %v1152, 120
        %v1651 = vpop.permute.xlu0 %1650
        %v1652 = vsel %vm1247, %v1649, 0
        %v1654 = vsel %vm1247, %v1651, 0
        %1656 = vmatprep.subr.mxu0 0.0
        %1657 = vmatpush1.xpose.msra.mxu0 0.0
        %1658 = vmatprep.subr.mxu0 0.0
        %1659 = vmatpush1.xpose.msra.mxu0 0.0
        %1660 = vmatprep.subr.mxu0 0.0
        %1661 = vmatpush1.xpose.msra.mxu0 0.0
        %1662 = vmatprep.subr.mxu0 0.0
        %1663 = vmatpush1.xpose.msra.mxu0 0.0
        %1664 = vmatprep.subr.mxu0 0.0
        %1665 = vmatpush1.xpose.msra.mxu0 0.0
        %1666 = vmatprep.subr.mxu0 0.0
        %1667 = vmatpush1.xpose.msra.mxu0 0.0
        %1668 = vmatprep.subr.mxu0 0.0
        %1669 = vmatpush1.xpose.msra.mxu0 0.0
        %1670 = vmatprep.subr.mxu0 0.0
        %1671 = vmatpush1.xpose.msra.mxu0 0.0
        %1672 = vmatprep.subr.mxu0 0.0
        %1673 = vmatpush1.xpose.msra.mxu0 0.0
        %1674 = vmatprep.subr.mxu0 0.0
        %1675 = vmatpush1.xpose.msra.mxu0 0.0
        %1676 = vmatprep.subr.mxu0 0.0
        %1677 = vmatpush1.xpose.msra.mxu0 0.0
        %1678 = vmatprep.subr.mxu0 0.0
        %1679 = vmatpush1.xpose.msra.mxu0 0.0
        %1680 = vmatprep.subr.mxu0 0.0
        %1681 = vmatpush1.xpose.msra.mxu0 0.0
        %1682 = vmatprep.subr.mxu0 0.0
        %1683 = vmatpush1.xpose.msra.mxu0 0.0
        %1684 = vmatprep.subr.mxu0 0.0
        %1685 = vmatpush1.xpose.msra.mxu0 0.0
        %1686 = vmatprep.subr.mxu0 0.0
        %1687 = vmatpush1.xpose.msra.mxu0 %v1654
        %1688 = vmatprep.subr.mxu0 0.0
        %1689 = vmatpush2.xpose.msra.mxu0 0.0
        %1690 = vmatprep.subr.mxu0 0.0
        %1691 = vmatpush2.xpose.msra.mxu0 0.0
        %1692 = vmatprep.subr.mxu0 0.0
        %1693 = vmatpush2.xpose.msra.mxu0 0.0
        %1694 = vmatprep.subr.mxu0 0.0
        %1695 = vmatpush2.xpose.msra.mxu0 0.0
        %1696 = vmatprep.subr.mxu0 0.0
        %1697 = vmatpush2.xpose.msra.mxu0 0.0
        %1698 = vmatprep.subr.mxu0 0.0
        %1699 = vmatpush2.xpose.msra.mxu0 0.0
        %1700 = vmatprep.subr.mxu0 0.0
        %1701 = vmatpush2.xpose.msra.mxu0 0.0
        %1702 = vmatprep.subr.mxu0 0.0
        %1703 = vmatpush2.xpose.msra.mxu0 0.0
        %1704 = vmatprep.subr.mxu0 0.0
        %1705 = vmatpush2.xpose.msra.mxu0 0.0
        %1706 = vmatprep.subr.mxu0 0.0
        %1707 = vmatpush2.xpose.msra.mxu0 0.0
        %1708 = vmatprep.subr.mxu0 0.0
        %1709 = vmatpush2.xpose.msra.mxu0 0.0
        %1710 = vmatprep.subr.mxu0 0.0
        %1711 = vmatpush2.xpose.msra.mxu0 0.0
        %1712 = vmatprep.subr.mxu0 0.0
        %1713 = vmatpush2.xpose.msra.mxu0 0.0
        %1714 = vmatprep.subr.mxu0 0.0
        %1715 = vmatpush2.xpose.msra.mxu0 0.0
        %1716 = vmatprep.subr.mxu0 0.0
        %1717 = vmatpush2.xpose.msra.mxu0 0.0
        %1718 = vmatprep.subr.mxu0 0.0
        %1719 = vmatpush2.xpose.msra.mxu0 0.0
        %1720 = vmatprep.mubr.f32.mxu0 0.0
        %1721 = vmatmul.mubr.f32.gmra.mxu0 %v1652
        %v1722 = vpop.f32.mrf.mxu0
        %v1723 = vadd.f32 0.0, %v1722
        %v1724 = vpop.f32.mrf.mxu0
        %1725 = vdwg.mxu0
        %v1726 = vmul.f32 %v1645, 0.35355338
        %v1727 = vmul.f32 %v1723, 0.35355338
        %v1728 = vsel %vm1247, %v1726, -inf
        %1729 = vmax.xlane.f32.xlu0 %v1728
        %v1730 = vpop.xlane.xlu0 %1729
        %v1731 = vsel %vm1247, %v1727, -inf
        %1732 = vmax.xlane.f32.xlu0 %v1731
        %v1733 = vpop.xlane.xlu0 %1732
        %v1734 = vsub.f32 %v1726, %v1730
        %v1735 = vsub.f32 %v1727, %v1733
        %v1736 = vmul.f32 %v1734, 1.442695
        %v1737 = vpow.pop %v1736
        %v1738 = vmul.f32 %v1735, 1.442695
        %v1739 = vpow.pop %v1738
        %v1740 = vsel %vm1247, %v1737, 0.0
        %1741 = vadd.xlane.f32.xlu0 %v1740
        %v1742 = vpop.xlane.xlu0 %1741
        %v1743 = vsel %vm1247, %v1739, 0.0
        %1744 = vadd.xlane.f32.xlu0 %v1743
        %v1745 = vpop.xlane.xlu0 %1744
        %v1746 = vrcp.pop %v1742
        %v1747 = vmul.f32 %v1737, %v1746
        %v1748 = vrcp.pop %v1745
        %v1749 = vmul.f32 %v1739, %v1748
        %1751 = vrot.lane.b32.xlu0 %v1239, 120
        %v1752 = vpop.permute.xlu0 %1751
        %v1755 = vsel %vm1247, %v1747, 0
        %1757 = vmatprep.subr.mxu0 0.0
        %1758 = vmatpush1.msra.mxu0 0.0
        %1759 = vmatprep.subr.mxu0 0.0
        %1760 = vmatpush1.msra.mxu0 0.0
        %1761 = vmatprep.subr.mxu0 0.0
        %1762 = vmatpush1.msra.mxu0 0.0
        %1763 = vmatprep.subr.mxu0 0.0
        %1764 = vmatpush1.msra.mxu0 0.0
        %1765 = vmatprep.subr.mxu0 0.0
        %1766 = vmatpush1.msra.mxu0 0.0
        %1767 = vmatprep.subr.mxu0 0.0
        %1768 = vmatpush1.msra.mxu0 0.0
        %1769 = vmatprep.subr.mxu0 0.0
        %1770 = vmatpush1.msra.mxu0 0.0
        %1771 = vmatprep.subr.mxu0 0.0
        %1772 = vmatpush1.msra.mxu0 0.0
        %1773 = vmatprep.subr.mxu0 0.0
        %1774 = vmatpush1.msra.mxu0 0.0
        %1775 = vmatprep.subr.mxu0 0.0
        %1776 = vmatpush1.msra.mxu0 0.0
        %1777 = vmatprep.subr.mxu0 0.0
        %1778 = vmatpush1.msra.mxu0 0.0
        %1779 = vmatprep.subr.mxu0 0.0
        %1780 = vmatpush1.msra.mxu0 0.0
        %1781 = vmatprep.subr.mxu0 0.0
        %1782 = vmatpush1.msra.mxu0 0.0
        %1783 = vmatprep.subr.mxu0 0.0
        %1784 = vmatpush1.msra.mxu0 0.0
        %1785 = vmatprep.subr.mxu0 0.0
        %1786 = vmatpush1.msra.mxu0 0.0
        %1787 = vmatprep.subr.mxu0 0.0
        %1788 = vmatpush1.msra.mxu0 %v1752
        %1789 = vmatprep.subr.mxu0 0.0
        %1790 = vmatpush2.msra.mxu0 0.0
        %1791 = vmatprep.subr.mxu0 0.0
        %1792 = vmatpush2.msra.mxu0 0.0
        %1793 = vmatprep.subr.mxu0 0.0
        %1794 = vmatpush2.msra.mxu0 0.0
        %1795 = vmatprep.subr.mxu0 0.0
        %1796 = vmatpush2.msra.mxu0 0.0
        %1797 = vmatprep.subr.mxu0 0.0
        %1798 = vmatpush2.msra.mxu0 0.0
        %1799 = vmatprep.subr.mxu0 0.0
        %1800 = vmatpush2.msra.mxu0 0.0
        %1801 = vmatprep.subr.mxu0 0.0
        %1802 = vmatpush2.msra.mxu0 0.0
        %1803 = vmatprep.subr.mxu0 0.0
        %1804 = vmatpush2.msra.mxu0 0.0
        %1805 = vmatprep.subr.mxu0 0.0
        %1806 = vmatpush2.msra.mxu0 0.0
        %1807 = vmatprep.subr.mxu0 0.0
        %1808 = vmatpush2.msra.mxu0 0.0
        %1809 = vmatprep.subr.mxu0 0.0
        %1810 = vmatpush2.msra.mxu0 0.0
        %1811 = vmatprep.subr.mxu0 0.0
        %1812 = vmatpush2.msra.mxu0 0.0
        %1813 = vmatprep.subr.mxu0 0.0
        %1814 = vmatpush2.msra.mxu0 0.0
        %1815 = vmatprep.subr.mxu0 0.0
        %1816 = vmatpush2.msra.mxu0 0.0
        %1817 = vmatprep.subr.mxu0 0.0
        %1818 = vmatpush2.msra.mxu0 0.0
        %1819 = vmatprep.subr.mxu0 0.0
        %1820 = vmatpush2.msra.mxu0 0.0
        %1821 = vmatprep.mubr.f32.mxu0 0.0
        %1822 = vmatmul.mubr.f32.gmra.mxu0 %v1755
        %v1823 = vpop.f32.mrf.mxu0
        %v1824 = vadd.f32 0.0, %v1823
        %v1825 = vpop.f32.mrf.mxu0
        %1826 = vdwg.mxu0
        %1828 = vrot.lane.b32.xlu0 %v1244, 120
        %v1829 = vpop.permute.xlu0 %1828
        %v1832 = vsel %vm1247, %v1749, 0
        %1834 = vmatprep.subr.mxu0 0.0
        %1835 = vmatpush1.msra.mxu0 0.0
        %1836 = vmatprep.subr.mxu0 0.0
        %1837 = vmatpush1.msra.mxu0 0.0
        %1838 = vmatprep.subr.mxu0 0.0
        %1839 = vmatpush1.msra.mxu0 0.0
        %1840 = vmatprep.subr.mxu0 0.0
        %1841 = vmatpush1.msra.mxu0 0.0
        %1842 = vmatprep.subr.mxu0 0.0
        %1843 = vmatpush1.msra.mxu0 0.0
        %1844 = vmatprep.subr.mxu0 0.0
        %1845 = vmatpush1.msra.mxu0 0.0
        %1846 = vmatprep.subr.mxu0 0.0
        %1847 = vmatpush1.msra.mxu0 0.0
        %1848 = vmatprep.subr.mxu0 0.0
        %1849 = vmatpush1.msra.mxu0 0.0
        %1850 = vmatprep.subr.mxu0 0.0
        %1851 = vmatpush1.msra.mxu0 0.0
        %1852 = vmatprep.subr.mxu0 0.0
        %1853 = vmatpush1.msra.mxu0 0.0
        %1854 = vmatprep.subr.mxu0 0.0
        %1855 = vmatpush1.msra.mxu0 0.0
        %1856 = vmatprep.subr.mxu0 0.0
        %1857 = vmatpush1.msra.mxu0 0.0
        %1858 = vmatprep.subr.mxu0 0.0
        %1859 = vmatpush1.msra.mxu0 0.0
        %1860 = vmatprep.subr.mxu0 0.0
        %1861 = vmatpush1.msra.mxu0 0.0
        %1862 = vmatprep.subr.mxu0 0.0
        %1863 = vmatpush1.msra.mxu0 0.0
        %1864 = vmatprep.subr.mxu0 0.0
        %1865 = vmatpush1.msra.mxu0 %v1829
        %1866 = vmatprep.subr.mxu0 0.0
        %1867 = vmatpush2.msra.mxu0 0.0
        %1868 = vmatprep.subr.mxu0 0.0
        %1869 = vmatpush2.msra.mxu0 0.0
        %1870 = vmatprep.subr.mxu0 0.0
        %1871 = vmatpush2.msra.mxu0 0.0
        %1872 = vmatprep.subr.mxu0 0.0
        %1873 = vmatpush2.msra.mxu0 0.0
        %1874 = vmatprep.subr.mxu0 0.0
        %1875 = vmatpush2.msra.mxu0 0.0
        %1876 = vmatprep.subr.mxu0 0.0
        %1877 = vmatpush2.msra.mxu0 0.0
        %1878 = vmatprep.subr.mxu0 0.0
        %1879 = vmatpush2.msra.mxu0 0.0
        %1880 = vmatprep.subr.mxu0 0.0
        %1881 = vmatpush2.msra.mxu0 0.0
        %1882 = vmatprep.subr.mxu0 0.0
        %1883 = vmatpush2.msra.mxu0 0.0
        %1884 = vmatprep.subr.mxu0 0.0
        %1885 = vmatpush2.msra.mxu0 0.0
        %1886 = vmatprep.subr.mxu0 0.0
        %1887 = vmatpush2.msra.mxu0 0.0
        %1888 = vmatprep.subr.mxu0 0.0
        %1889 = vmatpush2.msra.mxu0 0.0
        %1890 = vmatprep.subr.mxu0 0.0
        %1891 = vmatpush2.msra.mxu0 0.0
        %1892 = vmatprep.subr.mxu0 0.0
        %1893 = vmatpush2.msra.mxu0 0.0
        %1894 = vmatprep.subr.mxu0 0.0
        %1895 = vmatpush2.msra.mxu0 0.0
        %1896 = vmatprep.subr.mxu0 0.0
        %1897 = vmatpush2.msra.mxu0 0.0
        %1898 = vmatprep.mubr.f32.mxu0 0.0
        %1899 = vmatmul.mubr.f32.gmra.mxu0 %v1832
        %v1900 = vpop.f32.mrf.mxu0
        %v1901 = vadd.f32 0.0, %v1900
        %v1902 = vpop.f32.mrf.mxu0
        %1903 = vdwg.mxu0
        %1904 = vrot.lane.b32.xlu0 %v1055, 112
        %v1905 = vpop.permute.xlu0 %1904
        %1906 = vrot.lane.b32.xlu0 %v1147, 112
        %v1907 = vpop.permute.xlu0 %1906
        %v1908 = vsel %vm1247, %v1905, 0
        %v1910 = vsel %vm1247, %v1907, 0
        %1912 = vmatprep.subr.mxu0 0.0
        %1913 = vmatpush1.xpose.msra.mxu0 0.0
        %1914 = vmatprep.subr.mxu0 0.0
        %1915 = vmatpush1.xpose.msra.mxu0 0.0
        %1916 = vmatprep.subr.mxu0 0.0
        %1917 = vmatpush1.xpose.msra.mxu0 0.0
        %1918 = vmatprep.subr.mxu0 0.0
        %1919 = vmatpush1.xpose.msra.mxu0 0.0
        %1920 = vmatprep.subr.mxu0 0.0
        %1921 = vmatpush1.xpose.msra.mxu0 0.0
        %1922 = vmatprep.subr.mxu0 0.0
        %1923 = vmatpush1.xpose.msra.mxu0 0.0
        %1924 = vmatprep.subr.mxu0 0.0
        %1925 = vmatpush1.xpose.msra.mxu0 0.0
        %1926 = vmatprep.subr.mxu0 0.0
        %1927 = vmatpush1.xpose.msra.mxu0 0.0
        %1928 = vmatprep.subr.mxu0 0.0
        %1929 = vmatpush1.xpose.msra.mxu0 0.0
        %1930 = vmatprep.subr.mxu0 0.0
        %1931 = vmatpush1.xpose.msra.mxu0 0.0
        %1932 = vmatprep.subr.mxu0 0.0
        %1933 = vmatpush1.xpose.msra.mxu0 0.0
        %1934 = vmatprep.subr.mxu0 0.0
        %1935 = vmatpush1.xpose.msra.mxu0 0.0
        %1936 = vmatprep.subr.mxu0 0.0
        %1937 = vmatpush1.xpose.msra.mxu0 0.0
        %1938 = vmatprep.subr.mxu0 0.0
        %1939 = vmatpush1.xpose.msra.mxu0 0.0
        %1940 = vmatprep.subr.mxu0 0.0
        %1941 = vmatpush1.xpose.msra.mxu0 0.0
        %1942 = vmatprep.subr.mxu0 0.0
        %1943 = vmatpush1.xpose.msra.mxu0 %v1910
        %1944 = vmatprep.subr.mxu0 0.0
        %1945 = vmatpush2.xpose.msra.mxu0 0.0
        %1946 = vmatprep.subr.mxu0 0.0
        %1947 = vmatpush2.xpose.msra.mxu0 0.0
        %1948 = vmatprep.subr.mxu0 0.0
        %1949 = vmatpush2.xpose.msra.mxu0 0.0
        %1950 = vmatprep.subr.mxu0 0.0
        %1951 = vmatpush2.xpose.msra.mxu0 0.0
        %1952 = vmatprep.subr.mxu0 0.0
        %1953 = vmatpush2.xpose.msra.mxu0 0.0
        %1954 = vmatprep.subr.mxu0 0.0
        %1955 = vmatpush2.xpose.msra.mxu0 0.0
        %1956 = vmatprep.subr.mxu0 0.0
        %1957 = vmatpush2.xpose.msra.mxu0 0.0
        %1958 = vmatprep.subr.mxu0 0.0
        %1959 = vmatpush2.xpose.msra.mxu0 0.0
        %1960 = vmatprep.subr.mxu0 0.0
        %1961 = vmatpush2.xpose.msra.mxu0 0.0
        %1962 = vmatprep.subr.mxu0 0.0
        %1963 = vmatpush2.xpose.msra.mxu0 0.0
        %1964 = vmatprep.subr.mxu0 0.0
        %1965 = vmatpush2.xpose.msra.mxu0 0.0
        %1966 = vmatprep.subr.mxu0 0.0
        %1967 = vmatpush2.xpose.msra.mxu0 0.0
        %1968 = vmatprep.subr.mxu0 0.0
        %1969 = vmatpush2.xpose.msra.mxu0 0.0
        %1970 = vmatprep.subr.mxu0 0.0
        %1971 = vmatpush2.xpose.msra.mxu0 0.0
        %1972 = vmatprep.subr.mxu0 0.0
        %1973 = vmatpush2.xpose.msra.mxu0 0.0
        %1974 = vmatprep.subr.mxu0 0.0
        %1975 = vmatpush2.xpose.msra.mxu0 0.0
        %1976 = vmatprep.mubr.f32.mxu0 0.0
        %1977 = vmatmul.mubr.f32.gmra.mxu0 %v1908
        %v1978 = vpop.f32.mrf.mxu0
        %v1979 = vadd.f32 0.0, %v1978
        %v1980 = vpop.f32.mrf.mxu0
        %1981 = vdwg.mxu0
        %1982 = vrot.lane.b32.xlu0 %v1060, 112
        %v1983 = vpop.permute.xlu0 %1982
        %1984 = vrot.lane.b32.xlu0 %v1152, 112
        %v1985 = vpop.permute.xlu0 %1984
        %v1986 = vsel %vm1247, %v1983, 0
        %v1988 = vsel %vm1247, %v1985, 0
        %1990 = vmatprep.subr.mxu0 0.0
        %1991 = vmatpush1.xpose.msra.mxu0 0.0
        %1992 = vmatprep.subr.mxu0 0.0
        %1993 = vmatpush1.xpose.msra.mxu0 0.0
        %1994 = vmatprep.subr.mxu0 0.0
        %1995 = vmatpush1.xpose.msra.mxu0 0.0
        %1996 = vmatprep.subr.mxu0 0.0
        %1997 = vmatpush1.xpose.msra.mxu0 0.0
        %1998 = vmatprep.subr.mxu0 0.0
        %1999 = vmatpush1.xpose.msra.mxu0 0.0
        %2000 = vmatprep.subr.mxu0 0.0
        %2001 = vmatpush1.xpose.msra.mxu0 0.0
        %2002 = vmatprep.subr.mxu0 0.0
        %2003 = vmatpush1.xpose.msra.mxu0 0.0
        %2004 = vmatprep.subr.mxu0 0.0
        %2005 = vmatpush1.xpose.msra.mxu0 0.0
        %2006 = vmatprep.subr.mxu0 0.0
        %2007 = vmatpush1.xpose.msra.mxu0 0.0
        %2008 = vmatprep.subr.mxu0 0.0
        %2009 = vmatpush1.xpose.msra.mxu0 0.0
        %2010 = vmatprep.subr.mxu0 0.0
        %2011 = vmatpush1.xpose.msra.mxu0 0.0
        %2012 = vmatprep.subr.mxu0 0.0
        %2013 = vmatpush1.xpose.msra.mxu0 0.0
        %2014 = vmatprep.subr.mxu0 0.0
        %2015 = vmatpush1.xpose.msra.mxu0 0.0
        %2016 = vmatprep.subr.mxu0 0.0
        %2017 = vmatpush1.xpose.msra.mxu0 0.0
        %2018 = vmatprep.subr.mxu0 0.0
        %2019 = vmatpush1.xpose.msra.mxu0 0.0
        %2020 = vmatprep.subr.mxu0 0.0
        %2021 = vmatpush1.xpose.msra.mxu0 %v1988
        %2022 = vmatprep.subr.mxu0 0.0
        %2023 = vmatpush2.xpose.msra.mxu0 0.0
        %2024 = vmatprep.subr.mxu0 0.0
        %2025 = vmatpush2.xpose.msra.mxu0 0.0
        %2026 = vmatprep.subr.mxu0 0.0
        %2027 = vmatpush2.xpose.msra.mxu0 0.0
        %2028 = vmatprep.subr.mxu0 0.0
        %2029 = vmatpush2.xpose.msra.mxu0 0.0
        %2030 = vmatprep.subr.mxu0 0.0
        %2031 = vmatpush2.xpose.msra.mxu0 0.0
        %2032 = vmatprep.subr.mxu0 0.0
        %2033 = vmatpush2.xpose.msra.mxu0 0.0
        %2034 = vmatprep.subr.mxu0 0.0
        %2035 = vmatpush2.xpose.msra.mxu0 0.0
        %2036 = vmatprep.subr.mxu0 0.0
        %2037 = vmatpush2.xpose.msra.mxu0 0.0
        %2038 = vmatprep.subr.mxu0 0.0
        %2039 = vmatpush2.xpose.msra.mxu0 0.0
        %2040 = vmatprep.subr.mxu0 0.0
        %2041 = vmatpush2.xpose.msra.mxu0 0.0
        %2042 = vmatprep.subr.mxu0 0.0
        %2043 = vmatpush2.xpose.msra.mxu0 0.0
        %2044 = vmatprep.subr.mxu0 0.0
        %2045 = vmatpush2.xpose.msra.mxu0 0.0
        %2046 = vmatprep.subr.mxu0 0.0
        %2047 = vmatpush2.xpose.msra.mxu0 0.0
        %2048 = vmatprep.subr.mxu0 0.0
        %2049 = vmatpush2.xpose.msra.mxu0 0.0
        %2050 = vmatprep.subr.mxu0 0.0
        %2051 = vmatpush2.xpose.msra.mxu0 0.0
        %2052 = vmatprep.subr.mxu0 0.0
        %2053 = vmatpush2.xpose.msra.mxu0 0.0
        %2054 = vmatprep.mubr.f32.mxu0 0.0
        %2055 = vmatmul.mubr.f32.gmra.mxu0 %v1986
        %v2056 = vpop.f32.mrf.mxu0
        %v2057 = vadd.f32 0.0, %v2056
        %v2058 = vpop.f32.mrf.mxu0
        %2059 = vdwg.mxu0
        %v2060 = vmul.f32 %v1979, 0.35355338
        %v2061 = vmul.f32 %v2057, 0.35355338
        %v2062 = vsel %vm1247, %v2060, -inf
        %2063 = vmax.xlane.f32.xlu0 %v2062
        %v2064 = vpop.xlane.xlu0 %2063
        %v2065 = vsel %vm1247, %v2061, -inf
        %2066 = vmax.xlane.f32.xlu0 %v2065
        %v2067 = vpop.xlane.xlu0 %2066
        %v2068 = vsub.f32 %v2060, %v2064
        %v2069 = vsub.f32 %v2061, %v2067
        %v2070 = vmul.f32 %v2068, 1.442695
        %v2071 = vpow.pop %v2070
        %v2072 = vmul.f32 %v2069, 1.442695
        %v2073 = vpow.pop %v2072
        %v2074 = vsel %vm1247, %v2071, 0.0
        %2075 = vadd.xlane.f32.xlu0 %v2074
        %v2076 = vpop.xlane.xlu0 %2075
        %v2077 = vsel %vm1247, %v2073, 0.0
        %2078 = vadd.xlane.f32.xlu0 %v2077
        %v2079 = vpop.xlane.xlu0 %2078
        %v2080 = vrcp.pop %v2076
        %v2081 = vmul.f32 %v2071, %v2080
        %v2082 = vrcp.pop %v2079
        %v2083 = vmul.f32 %v2073, %v2082
        %2084 = vrot.lane.b32.xlu0 %v1239, 112
        %v2085 = vpop.permute.xlu0 %2084
        %v2088 = vsel %vm1247, %v2081, 0
        %2090 = vmatprep.subr.mxu0 0.0
        %2091 = vmatpush1.msra.mxu0 0.0
        %2092 = vmatprep.subr.mxu0 0.0
        %2093 = vmatpush1.msra.mxu0 0.0
        %2094 = vmatprep.subr.mxu0 0.0
        %2095 = vmatpush1.msra.mxu0 0.0
        %2096 = vmatprep.subr.mxu0 0.0
        %2097 = vmatpush1.msra.mxu0 0.0
        %2098 = vmatprep.subr.mxu0 0.0
        %2099 = vmatpush1.msra.mxu0 0.0
        %2100 = vmatprep.subr.mxu0 0.0
        %2101 = vmatpush1.msra.mxu0 0.0
        %2102 = vmatprep.subr.mxu0 0.0
        %2103 = vmatpush1.msra.mxu0 0.0
        %2104 = vmatprep.subr.mxu0 0.0
        %2105 = vmatpush1.msra.mxu0 0.0
        %2106 = vmatprep.subr.mxu0 0.0
        %2107 = vmatpush1.msra.mxu0 0.0
        %2108 = vmatprep.subr.mxu0 0.0
        %2109 = vmatpush1.msra.mxu0 0.0
        %2110 = vmatprep.subr.mxu0 0.0
        %2111 = vmatpush1.msra.mxu0 0.0
        %2112 = vmatprep.subr.mxu0 0.0
        %2113 = vmatpush1.msra.mxu0 0.0
        %2114 = vmatprep.subr.mxu0 0.0
        %2115 = vmatpush1.msra.mxu0 0.0
        %2116 = vmatprep.subr.mxu0 0.0
        %2117 = vmatpush1.msra.mxu0 0.0
        %2118 = vmatprep.subr.mxu0 0.0
        %2119 = vmatpush1.msra.mxu0 0.0
        %2120 = vmatprep.subr.mxu0 0.0
        %2121 = vmatpush1.msra.mxu0 %v2085
        %2122 = vmatprep.subr.mxu0 0.0
        %2123 = vmatpush2.msra.mxu0 0.0
        %2124 = vmatprep.subr.mxu0 0.0
        %2125 = vmatpush2.msra.mxu0 0.0
        %2126 = vmatprep.subr.mxu0 0.0
        %2127 = vmatpush2.msra.mxu0 0.0
        %2128 = vmatprep.subr.mxu0 0.0
        %2129 = vmatpush2.msra.mxu0 0.0
        %2130 = vmatprep.subr.mxu0 0.0
        %2131 = vmatpush2.msra.mxu0 0.0
        %2132 = vmatprep.subr.mxu0 0.0
        %2133 = vmatpush2.msra.mxu0 0.0
        %2134 = vmatprep.subr.mxu0 0.0
        %2135 = vmatpush2.msra.mxu0 0.0
        %2136 = vmatprep.subr.mxu0 0.0
        %2137 = vmatpush2.msra.mxu0 0.0
        %2138 = vmatprep.subr.mxu0 0.0
        %2139 = vmatpush2.msra.mxu0 0.0
        %2140 = vmatprep.subr.mxu0 0.0
        %2141 = vmatpush2.msra.mxu0 0.0
        %2142 = vmatprep.subr.mxu0 0.0
        %2143 = vmatpush2.msra.mxu0 0.0
        %2144 = vmatprep.subr.mxu0 0.0
        %2145 = vmatpush2.msra.mxu0 0.0
        %2146 = vmatprep.subr.mxu0 0.0
        %2147 = vmatpush2.msra.mxu0 0.0
        %2148 = vmatprep.subr.mxu0 0.0
        %2149 = vmatpush2.msra.mxu0 0.0
        %2150 = vmatprep.subr.mxu0 0.0
        %2151 = vmatpush2.msra.mxu0 0.0
        %2152 = vmatprep.subr.mxu0 0.0
        %2153 = vmatpush2.msra.mxu0 0.0
        %2154 = vmatprep.mubr.f32.mxu0 0.0
        %2155 = vmatmul.mubr.f32.gmra.mxu0 %v2088
        %v2156 = vpop.f32.mrf.mxu0
        %v2157 = vadd.f32 0.0, %v2156
        %v2158 = vpop.f32.mrf.mxu0
        %2159 = vdwg.mxu0
        %2160 = vrot.lane.b32.xlu0 %v1244, 112
        %v2161 = vpop.permute.xlu0 %2160
        %v2164 = vsel %vm1247, %v2083, 0
        %2166 = vmatprep.subr.mxu0 0.0
        %2167 = vmatpush1.msra.mxu0 0.0
        %2168 = vmatprep.subr.mxu0 0.0
        %2169 = vmatpush1.msra.mxu0 0.0
        %2170 = vmatprep.subr.mxu0 0.0
        %2171 = vmatpush1.msra.mxu0 0.0
        %2172 = vmatprep.subr.mxu0 0.0
        %2173 = vmatpush1.msra.mxu0 0.0
        %2174 = vmatprep.subr.mxu0 0.0
        %2175 = vmatpush1.msra.mxu0 0.0
        %2176 = vmatprep.subr.mxu0 0.0
        %2177 = vmatpush1.msra.mxu0 0.0
        %2178 = vmatprep.subr.mxu0 0.0
        %2179 = vmatpush1.msra.mxu0 0.0
        %2180 = vmatprep.subr.mxu0 0.0
        %2181 = vmatpush1.msra.mxu0 0.0
        %2182 = vmatprep.subr.mxu0 0.0
        %2183 = vmatpush1.msra.mxu0 0.0
        %2184 = vmatprep.subr.mxu0 0.0
        %2185 = vmatpush1.msra.mxu0 0.0
        %2186 = vmatprep.subr.mxu0 0.0
        %2187 = vmatpush1.msra.mxu0 0.0
        %2188 = vmatprep.subr.mxu0 0.0
        %2189 = vmatpush1.msra.mxu0 0.0
        %2190 = vmatprep.subr.mxu0 0.0
        %2191 = vmatpush1.msra.mxu0 0.0
        %2192 = vmatprep.subr.mxu0 0.0
        %2193 = vmatpush1.msra.mxu0 0.0
        %2194 = vmatprep.subr.mxu0 0.0
        %2195 = vmatpush1.msra.mxu0 0.0
        %2196 = vmatprep.subr.mxu0 0.0
        %2197 = vmatpush1.msra.mxu0 %v2161
        %2198 = vmatprep.subr.mxu0 0.0
        %2199 = vmatpush2.msra.mxu0 0.0
        %2200 = vmatprep.subr.mxu0 0.0
        %2201 = vmatpush2.msra.mxu0 0.0
        %2202 = vmatprep.subr.mxu0 0.0
        %2203 = vmatpush2.msra.mxu0 0.0
        %2204 = vmatprep.subr.mxu0 0.0
        %2205 = vmatpush2.msra.mxu0 0.0
        %2206 = vmatprep.subr.mxu0 0.0
        %2207 = vmatpush2.msra.mxu0 0.0
        %2208 = vmatprep.subr.mxu0 0.0
        %2209 = vmatpush2.msra.mxu0 0.0
        %2210 = vmatprep.subr.mxu0 0.0
        %2211 = vmatpush2.msra.mxu0 0.0
        %2212 = vmatprep.subr.mxu0 0.0
        %2213 = vmatpush2.msra.mxu0 0.0
        %2214 = vmatprep.subr.mxu0 0.0
        %2215 = vmatpush2.msra.mxu0 0.0
        %2216 = vmatprep.subr.mxu0 0.0
        %2217 = vmatpush2.msra.mxu0 0.0
        %2218 = vmatprep.subr.mxu0 0.0
        %2219 = vmatpush2.msra.mxu0 0.0
        %2220 = vmatprep.subr.mxu0 0.0
        %2221 = vmatpush2.msra.mxu0 0.0
        %2222 = vmatprep.subr.mxu0 0.0
        %2223 = vmatpush2.msra.mxu0 0.0
        %2224 = vmatprep.subr.mxu0 0.0
        %2225 = vmatpush2.msra.mxu0 0.0
        %2226 = vmatprep.subr.mxu0 0.0
        %2227 = vmatpush2.msra.mxu0 0.0
        %2228 = vmatprep.subr.mxu0 0.0
        %2229 = vmatpush2.msra.mxu0 0.0
        %2230 = vmatprep.mubr.f32.mxu0 0.0
        %2231 = vmatmul.mubr.f32.gmra.mxu0 %v2164
        %v2232 = vpop.f32.mrf.mxu0
        %v2233 = vadd.f32 0.0, %v2232
        %v2234 = vpop.f32.mrf.mxu0
        %2235 = vdwg.mxu0
        %2236 = vrot.lane.b32.xlu0 %v1055, 104
        %v2237 = vpop.permute.xlu0 %2236
        %2238 = vrot.lane.b32.xlu0 %v1147, 104
        %v2239 = vpop.permute.xlu0 %2238
        %v2240 = vsel %vm1247, %v2237, 0
        %v2242 = vsel %vm1247, %v2239, 0
        %2244 = vmatprep.subr.mxu0 0.0
        %2245 = vmatpush1.xpose.msra.mxu0 0.0
        %2246 = vmatprep.subr.mxu0 0.0
        %2247 = vmatpush1.xpose.msra.mxu0 0.0
        %2248 = vmatprep.subr.mxu0 0.0
        %2249 = vmatpush1.xpose.msra.mxu0 0.0
        %2250 = vmatprep.subr.mxu0 0.0
        %2251 = vmatpush1.xpose.msra.mxu0 0.0
        %2252 = vmatprep.subr.mxu0 0.0
        %2253 = vmatpush1.xpose.msra.mxu0 0.0
        %2254 = vmatprep.subr.mxu0 0.0
        %2255 = vmatpush1.xpose.msra.mxu0 0.0
        %2256 = vmatprep.subr.mxu0 0.0
        %2257 = vmatpush1.xpose.msra.mxu0 0.0
        %2258 = vmatprep.subr.mxu0 0.0
        %2259 = vmatpush1.xpose.msra.mxu0 0.0
        %2260 = vmatprep.subr.mxu0 0.0
        %2261 = vmatpush1.xpose.msra.mxu0 0.0
        %2262 = vmatprep.subr.mxu0 0.0
        %2263 = vmatpush1.xpose.msra.mxu0 0.0
        %2264 = vmatprep.subr.mxu0 0.0
        %2265 = vmatpush1.xpose.msra.mxu0 0.0
        %2266 = vmatprep.subr.mxu0 0.0
        %2267 = vmatpush1.xpose.msra.mxu0 0.0
        %2268 = vmatprep.subr.mxu0 0.0
        %2269 = vmatpush1.xpose.msra.mxu0 0.0
        %2270 = vmatprep.subr.mxu0 0.0
        %2271 = vmatpush1.xpose.msra.mxu0 0.0
        %2272 = vmatprep.subr.mxu0 0.0
        %2273 = vmatpush1.xpose.msra.mxu0 0.0
        %2274 = vmatprep.subr.mxu0 0.0
        %2275 = vmatpush1.xpose.msra.mxu0 %v2242
        %2276 = vmatprep.subr.mxu0 0.0
        %2277 = vmatpush2.xpose.msra.mxu0 0.0
        %2278 = vmatprep.subr.mxu0 0.0
        %2279 = vmatpush2.xpose.msra.mxu0 0.0
        %2280 = vmatprep.subr.mxu0 0.0
        %2281 = vmatpush2.xpose.msra.mxu0 0.0
        %2282 = vmatprep.subr.mxu0 0.0
        %2283 = vmatpush2.xpose.msra.mxu0 0.0
        %2284 = vmatprep.subr.mxu0 0.0
        %2285 = vmatpush2.xpose.msra.mxu0 0.0
        %2286 = vmatprep.subr.mxu0 0.0
        %2287 = vmatpush2.xpose.msra.mxu0 0.0
        %2288 = vmatprep.subr.mxu0 0.0
        %2289 = vmatpush2.xpose.msra.mxu0 0.0
        %2290 = vmatprep.subr.mxu0 0.0
        %2291 = vmatpush2.xpose.msra.mxu0 0.0
        %2292 = vmatprep.subr.mxu0 0.0
        %2293 = vmatpush2.xpose.msra.mxu0 0.0
        %2294 = vmatprep.subr.mxu0 0.0
        %2295 = vmatpush2.xpose.msra.mxu0 0.0
        %2296 = vmatprep.subr.mxu0 0.0
        %2297 = vmatpush2.xpose.msra.mxu0 0.0
        %2298 = vmatprep.subr.mxu0 0.0
        %2299 = vmatpush2.xpose.msra.mxu0 0.0
        %2300 = vmatprep.subr.mxu0 0.0
        %2301 = vmatpush2.xpose.msra.mxu0 0.0
        %2302 = vmatprep.subr.mxu0 0.0
        %2303 = vmatpush2.xpose.msra.mxu0 0.0
        %2304 = vmatprep.subr.mxu0 0.0
        %2305 = vmatpush2.xpose.msra.mxu0 0.0
        %2306 = vmatprep.subr.mxu0 0.0
        %2307 = vmatpush2.xpose.msra.mxu0 0.0
        %2308 = vmatprep.mubr.f32.mxu0 0.0
        %2309 = vmatmul.mubr.f32.gmra.mxu0 %v2240
        %v2310 = vpop.f32.mrf.mxu0
        %v2311 = vadd.f32 0.0, %v2310
        %v2312 = vpop.f32.mrf.mxu0
        %2313 = vdwg.mxu0
        %2314 = vrot.lane.b32.xlu0 %v1060, 104
        %v2315 = vpop.permute.xlu0 %2314
        %2316 = vrot.lane.b32.xlu0 %v1152, 104
        %v2317 = vpop.permute.xlu0 %2316
        %v2318 = vsel %vm1247, %v2315, 0
        %v2320 = vsel %vm1247, %v2317, 0
        %2322 = vmatprep.subr.mxu0 0.0
        %2323 = vmatpush1.xpose.msra.mxu0 0.0
        %2324 = vmatprep.subr.mxu0 0.0
        %2325 = vmatpush1.xpose.msra.mxu0 0.0
        %2326 = vmatprep.subr.mxu0 0.0
        %2327 = vmatpush1.xpose.msra.mxu0 0.0
        %2328 = vmatprep.subr.mxu0 0.0
        %2329 = vmatpush1.xpose.msra.mxu0 0.0
        %2330 = vmatprep.subr.mxu0 0.0
        %2331 = vmatpush1.xpose.msra.mxu0 0.0
        %2332 = vmatprep.subr.mxu0 0.0
        %2333 = vmatpush1.xpose.msra.mxu0 0.0
        %2334 = vmatprep.subr.mxu0 0.0
        %2335 = vmatpush1.xpose.msra.mxu0 0.0
        %2336 = vmatprep.subr.mxu0 0.0
        %2337 = vmatpush1.xpose.msra.mxu0 0.0
        %2338 = vmatprep.subr.mxu0 0.0
        %2339 = vmatpush1.xpose.msra.mxu0 0.0
        %2340 = vmatprep.subr.mxu0 0.0
        %2341 = vmatpush1.xpose.msra.mxu0 0.0
        %2342 = vmatprep.subr.mxu0 0.0
        %2343 = vmatpush1.xpose.msra.mxu0 0.0
        %2344 = vmatprep.subr.mxu0 0.0
        %2345 = vmatpush1.xpose.msra.mxu0 0.0
        %2346 = vmatprep.subr.mxu0 0.0
        %2347 = vmatpush1.xpose.msra.mxu0 0.0
        %2348 = vmatprep.subr.mxu0 0.0
        %2349 = vmatpush1.xpose.msra.mxu0 0.0
        %2350 = vmatprep.subr.mxu0 0.0
        %2351 = vmatpush1.xpose.msra.mxu0 0.0
        %2352 = vmatprep.subr.mxu0 0.0
        %2353 = vmatpush1.xpose.msra.mxu0 %v2320
        %2354 = vmatprep.subr.mxu0 0.0
        %2355 = vmatpush2.xpose.msra.mxu0 0.0
        %2356 = vmatprep.subr.mxu0 0.0
        %2357 = vmatpush2.xpose.msra.mxu0 0.0
        %2358 = vmatprep.subr.mxu0 0.0
        %2359 = vmatpush2.xpose.msra.mxu0 0.0
        %2360 = vmatprep.subr.mxu0 0.0
        %2361 = vmatpush2.xpose.msra.mxu0 0.0
        %2362 = vmatprep.subr.mxu0 0.0
        %2363 = vmatpush2.xpose.msra.mxu0 0.0
        %2364 = vmatprep.subr.mxu0 0.0
        %2365 = vmatpush2.xpose.msra.mxu0 0.0
        %2366 = vmatprep.subr.mxu0 0.0
        %2367 = vmatpush2.xpose.msra.mxu0 0.0
        %2368 = vmatprep.subr.mxu0 0.0
        %2369 = vmatpush2.xpose.msra.mxu0 0.0
        %2370 = vmatprep.subr.mxu0 0.0
        %2371 = vmatpush2.xpose.msra.mxu0 0.0
        %2372 = vmatprep.subr.mxu0 0.0
        %2373 = vmatpush2.xpose.msra.mxu0 0.0
        %2374 = vmatprep.subr.mxu0 0.0
        %2375 = vmatpush2.xpose.msra.mxu0 0.0
        %2376 = vmatprep.subr.mxu0 0.0
        %2377 = vmatpush2.xpose.msra.mxu0 0.0
        %2378 = vmatprep.subr.mxu0 0.0
        %2379 = vmatpush2.xpose.msra.mxu0 0.0
        %2380 = vmatprep.subr.mxu0 0.0
        %2381 = vmatpush2.xpose.msra.mxu0 0.0
        %2382 = vmatprep.subr.mxu0 0.0
        %2383 = vmatpush2.xpose.msra.mxu0 0.0
        %2384 = vmatprep.subr.mxu0 0.0
        %2385 = vmatpush2.xpose.msra.mxu0 0.0
        %2386 = vmatprep.mubr.f32.mxu0 0.0
        %2387 = vmatmul.mubr.f32.gmra.mxu0 %v2318
        %v2388 = vpop.f32.mrf.mxu0
        %v2389 = vadd.f32 0.0, %v2388
        %v2390 = vpop.f32.mrf.mxu0
        %2391 = vdwg.mxu0
        %v2392 = vmul.f32 %v2311, 0.35355338
        %v2393 = vmul.f32 %v2389, 0.35355338
        %v2394 = vsel %vm1247, %v2392, -inf
        %2395 = vmax.xlane.f32.xlu0 %v2394
        %v2396 = vpop.xlane.xlu0 %2395
        %v2397 = vsel %vm1247, %v2393, -inf
        %2398 = vmax.xlane.f32.xlu0 %v2397
        %v2399 = vpop.xlane.xlu0 %2398
        %v2400 = vsub.f32 %v2392, %v2396
        %v2401 = vsub.f32 %v2393, %v2399
        %v2402 = vmul.f32 %v2400, 1.442695
        %v2403 = vpow.pop %v2402
        %v2404 = vmul.f32 %v2401, 1.442695
        %v2405 = vpow.pop %v2404
        %v2406 = vsel %vm1247, %v2403, 0.0
        %2407 = vadd.xlane.f32.xlu0 %v2406
        %v2408 = vpop.xlane.xlu0 %2407
        %v2409 = vsel %vm1247, %v2405, 0.0
        %2410 = vadd.xlane.f32.xlu0 %v2409
        %v2411 = vpop.xlane.xlu0 %2410
        %v2412 = vrcp.pop %v2408
        %v2413 = vmul.f32 %v2403, %v2412
        %v2414 = vrcp.pop %v2411
        %v2415 = vmul.f32 %v2405, %v2414
        %2416 = vrot.lane.b32.xlu0 %v1239, 104
        %v2417 = vpop.permute.xlu0 %2416
        %v2420 = vsel %vm1247, %v2413, 0
        %2422 = vmatprep.subr.mxu0 0.0
        %2423 = vmatpush1.msra.mxu0 0.0
        %2424 = vmatprep.subr.mxu0 0.0
        %2425 = vmatpush1.msra.mxu0 0.0
        %2426 = vmatprep.subr.mxu0 0.0
        %2427 = vmatpush1.msra.mxu0 0.0
        %2428 = vmatprep.subr.mxu0 0.0
        %2429 = vmatpush1.msra.mxu0 0.0
        %2430 = vmatprep.subr.mxu0 0.0
        %2431 = vmatpush1.msra.mxu0 0.0
        %2432 = vmatprep.subr.mxu0 0.0
        %2433 = vmatpush1.msra.mxu0 0.0
        %2434 = vmatprep.subr.mxu0 0.0
        %2435 = vmatpush1.msra.mxu0 0.0
        %2436 = vmatprep.subr.mxu0 0.0
        %2437 = vmatpush1.msra.mxu0 0.0
        %2438 = vmatprep.subr.mxu0 0.0
        %2439 = vmatpush1.msra.mxu0 0.0
        %2440 = vmatprep.subr.mxu0 0.0
        %2441 = vmatpush1.msra.mxu0 0.0
        %2442 = vmatprep.subr.mxu0 0.0
        %2443 = vmatpush1.msra.mxu0 0.0
        %2444 = vmatprep.subr.mxu0 0.0
        %2445 = vmatpush1.msra.mxu0 0.0
        %2446 = vmatprep.subr.mxu0 0.0
        %2447 = vmatpush1.msra.mxu0 0.0
        %2448 = vmatprep.subr.mxu0 0.0
        %2449 = vmatpush1.msra.mxu0 0.0
        %2450 = vmatprep.subr.mxu0 0.0
        %2451 = vmatpush1.msra.mxu0 0.0
        %2452 = vmatprep.subr.mxu0 0.0
        %2453 = vmatpush1.msra.mxu0 %v2417
        %2454 = vmatprep.subr.mxu0 0.0
        %2455 = vmatpush2.msra.mxu0 0.0
        %2456 = vmatprep.subr.mxu0 0.0
        %2457 = vmatpush2.msra.mxu0 0.0
        %2458 = vmatprep.subr.mxu0 0.0
        %2459 = vmatpush2.msra.mxu0 0.0
        %2460 = vmatprep.subr.mxu0 0.0
        %2461 = vmatpush2.msra.mxu0 0.0
        %2462 = vmatprep.subr.mxu0 0.0
        %2463 = vmatpush2.msra.mxu0 0.0
        %2464 = vmatprep.subr.mxu0 0.0
        %2465 = vmatpush2.msra.mxu0 0.0
        %2466 = vmatprep.subr.mxu0 0.0
        %2467 = vmatpush2.msra.mxu0 0.0
        %2468 = vmatprep.subr.mxu0 0.0
        %2469 = vmatpush2.msra.mxu0 0.0
        %2470 = vmatprep.subr.mxu0 0.0
        %2471 = vmatpush2.msra.mxu0 0.0
        %2472 = vmatprep.subr.mxu0 0.0
        %2473 = vmatpush2.msra.mxu0 0.0
        %2474 = vmatprep.subr.mxu0 0.0
        %2475 = vmatpush2.msra.mxu0 0.0
        %2476 = vmatprep.subr.mxu0 0.0
        %2477 = vmatpush2.msra.mxu0 0.0
        %2478 = vmatprep.subr.mxu0 0.0
        %2479 = vmatpush2.msra.mxu0 0.0
        %2480 = vmatprep.subr.mxu0 0.0
        %2481 = vmatpush2.msra.mxu0 0.0
        %2482 = vmatprep.subr.mxu0 0.0
        %2483 = vmatpush2.msra.mxu0 0.0
        %2484 = vmatprep.subr.mxu0 0.0
        %2485 = vmatpush2.msra.mxu0 0.0
        %2486 = vmatprep.mubr.f32.mxu0 0.0
        %2487 = vmatmul.mubr.f32.gmra.mxu0 %v2420
        %v2488 = vpop.f32.mrf.mxu0
        %v2489 = vadd.f32 0.0, %v2488
        %v2490 = vpop.f32.mrf.mxu0
        %2491 = vdwg.mxu0
        %2492 = vrot.lane.b32.xlu0 %v1244, 104
        %v2493 = vpop.permute.xlu0 %2492
        %v2496 = vsel %vm1247, %v2415, 0
        %2498 = vmatprep.subr.mxu0 0.0
        %2499 = vmatpush1.msra.mxu0 0.0
        %2500 = vmatprep.subr.mxu0 0.0
        %2501 = vmatpush1.msra.mxu0 0.0
        %2502 = vmatprep.subr.mxu0 0.0
        %2503 = vmatpush1.msra.mxu0 0.0
        %2504 = vmatprep.subr.mxu0 0.0
        %2505 = vmatpush1.msra.mxu0 0.0
        %2506 = vmatprep.subr.mxu0 0.0
        %2507 = vmatpush1.msra.mxu0 0.0
        %2508 = vmatprep.subr.mxu0 0.0
        %2509 = vmatpush1.msra.mxu0 0.0
        %2510 = vmatprep.subr.mxu0 0.0
        %2511 = vmatpush1.msra.mxu0 0.0
        %2512 = vmatprep.subr.mxu0 0.0
        %2513 = vmatpush1.msra.mxu0 0.0
        %2514 = vmatprep.subr.mxu0 0.0
        %2515 = vmatpush1.msra.mxu0 0.0
        %2516 = vmatprep.subr.mxu0 0.0
        %2517 = vmatpush1.msra.mxu0 0.0
        %2518 = vmatprep.subr.mxu0 0.0
        %2519 = vmatpush1.msra.mxu0 0.0
        %2520 = vmatprep.subr.mxu0 0.0
        %2521 = vmatpush1.msra.mxu0 0.0
        %2522 = vmatprep.subr.mxu0 0.0
        %2523 = vmatpush1.msra.mxu0 0.0
        %2524 = vmatprep.subr.mxu0 0.0
        %2525 = vmatpush1.msra.mxu0 0.0
        %2526 = vmatprep.subr.mxu0 0.0
        %2527 = vmatpush1.msra.mxu0 0.0
        %2528 = vmatprep.subr.mxu0 0.0
        %2529 = vmatpush1.msra.mxu0 %v2493
        %2530 = vmatprep.subr.mxu0 0.0
        %2531 = vmatpush2.msra.mxu0 0.0
        %2532 = vmatprep.subr.mxu0 0.0
        %2533 = vmatpush2.msra.mxu0 0.0
        %2534 = vmatprep.subr.mxu0 0.0
        %2535 = vmatpush2.msra.mxu0 0.0
        %2536 = vmatprep.subr.mxu0 0.0
        %2537 = vmatpush2.msra.mxu0 0.0
        %2538 = vmatprep.subr.mxu0 0.0
        %2539 = vmatpush2.msra.mxu0 0.0
        %2540 = vmatprep.subr.mxu0 0.0
        %2541 = vmatpush2.msra.mxu0 0.0
        %2542 = vmatprep.subr.mxu0 0.0
        %2543 = vmatpush2.msra.mxu0 0.0
        %2544 = vmatprep.subr.mxu0 0.0
        %2545 = vmatpush2.msra.mxu0 0.0
        %2546 = vmatprep.subr.mxu0 0.0
        %2547 = vmatpush2.msra.mxu0 0.0
        %2548 = vmatprep.subr.mxu0 0.0
        %2549 = vmatpush2.msra.mxu0 0.0
        %2550 = vmatprep.subr.mxu0 0.0
        %2551 = vmatpush2.msra.mxu0 0.0
        %2552 = vmatprep.subr.mxu0 0.0
        %2553 = vmatpush2.msra.mxu0 0.0
        %2554 = vmatprep.subr.mxu0 0.0
        %2555 = vmatpush2.msra.mxu0 0.0
        %2556 = vmatprep.subr.mxu0 0.0
        %2557 = vmatpush2.msra.mxu0 0.0
        %2558 = vmatprep.subr.mxu0 0.0
        %2559 = vmatpush2.msra.mxu0 0.0
        %2560 = vmatprep.subr.mxu0 0.0
        %2561 = vmatpush2.msra.mxu0 0.0
        %2562 = vmatprep.mubr.f32.mxu0 0.0
        %2563 = vmatmul.mubr.f32.gmra.mxu0 %v2496
        %v2564 = vpop.f32.mrf.mxu0
        %v2565 = vadd.f32 0.0, %v2564
        %v2566 = vpop.f32.mrf.mxu0
        %2567 = vdwg.mxu0
        %2570 = vrot.lane.b32.xlu0 %v1824, 8
        %v2571 = vpop.permute.xlu0 %2570
        %2572 = vrot.lane.b32.xlu0 %v1901, 8
        %v2573 = vpop.permute.xlu0 %2572
        %2578 = vrot.lane.b32.xlu0 %v2157, 16
        %v2579 = vpop.permute.xlu0 %2578
        %2580 = vrot.lane.b32.xlu0 %v2233, 16
        %v2581 = vpop.permute.xlu0 %2580
        %2586 = vrot.lane.b32.xlu0 %v2489, 24
        %v2587 = vpop.permute.xlu0 %2586
        %2588 = vrot.lane.b32.xlu0 %v2565, 24
        %v2589 = vpop.permute.xlu0 %2588
        %v2592 = vsel %vm1247, %v1494, %v2571
        %v2593 = vsel %vm1247, %v1567, %v2573
        %vm2594 = vcmask 130048
        %v2595 = vsel %vm2594, %v2592, %v2579
        %v2596 = vsel %vm2594, %v2593, %v2581
        %vm2597 = vcmask 195584
        %v2598 = vsel %vm2597, %v2595, %v2587
        %v2599 = vsel %vm2597, %v2596, %v2589
        %v2600 = vld [vmem:[%s787] sm:$0xff]
        %v2601 = vld [vmem:[%s787 + $0x8] sm:$0xff]
        %v2602 = vld [vmem:[%s787 + $0x10] sm:$0xff]
        %v2603 = vld [vmem:[%s787 + $0x18] sm:$0xff]
        %v2604 = vld [vmem:[%s930] sm:$0x1]
        %v2606 = vlaneseq
        %v2607 = vshrl.u32 %v2606, 7
        %v2608 = vsub.s32 0, %v2607
        %v2609 = vrot.slane %v2604, %v2608
        %v2612 = vsel %vm981, %v2598, 0
        %v2615 = vsel %vm981, %v2599, 0
        %2617 = vmatprep.subr.mxu0 0.0
        %2618 = vmatpush1.msra.mxu0 0.0
        %2619 = vmatprep.subr.mxu0 0.0
        %2620 = vmatpush1.msra.mxu0 0.0
        %2621 = vmatprep.subr.mxu0 0.0
        %2622 = vmatpush1.msra.mxu0 0.0
        %2623 = vmatprep.subr.mxu0 0.0
        %2624 = vmatpush1.msra.mxu0 0.0
        %2625 = vmatprep.subr.mxu0 0.0
        %2626 = vmatpush1.msra.mxu0 0.0
        %2627 = vmatprep.subr.mxu0 0.0
        %2628 = vmatpush1.msra.mxu0 0.0
        %2629 = vmatprep.subr.mxu0 0.0
        %2630 = vmatpush1.msra.mxu0 0.0
        %2631 = vmatprep.subr.mxu0 0.0
        %2632 = vmatpush1.msra.mxu0 0.0
        %2633 = vmatprep.subr.mxu0 0.0
        %2634 = vmatpush1.msra.mxu0 0.0
        %2635 = vmatprep.subr.mxu0 0.0
        %2636 = vmatpush1.msra.mxu0 0.0
        %2637 = vmatprep.subr.mxu0 0.0
        %2638 = vmatpush1.msra.mxu0 0.0
        %2639 = vmatprep.subr.mxu0 0.0
        %2640 = vmatpush1.msra.mxu0 0.0
        %2641 = vmatprep.subr.mxu0 0.0
        %2642 = vmatpush1.msra.mxu0 %v2603
        %2643 = vmatprep.subr.mxu0 0.0
        %2644 = vmatpush1.msra.mxu0 %v2602
        %2645 = vmatprep.subr.mxu0 0.0
        %2646 = vmatpush1.msra.mxu0 %v2601
        %2647 = vmatprep.subr.mxu0 0.0
        %2648 = vmatpush1.msra.mxu0 %v2600
        %2649 = vmatprep.subr.mxu0 0.0
        %2650 = vmatpush2.msra.mxu0 0.0
        %2651 = vmatprep.subr.mxu0 0.0
        %2652 = vmatpush2.msra.mxu0 0.0
        %2653 = vmatprep.subr.mxu0 0.0
        %2654 = vmatpush2.msra.mxu0 0.0
        %2655 = vmatprep.subr.mxu0 0.0
        %2656 = vmatpush2.msra.mxu0 0.0
        %2657 = vmatprep.subr.mxu0 0.0
        %2658 = vmatpush2.msra.mxu0 0.0
        %2659 = vmatprep.subr.mxu0 0.0
        %2660 = vmatpush2.msra.mxu0 0.0
        %2661 = vmatprep.subr.mxu0 0.0
        %2662 = vmatpush2.msra.mxu0 0.0
        %2663 = vmatprep.subr.mxu0 0.0
        %2664 = vmatpush2.msra.mxu0 0.0
        %2665 = vmatprep.subr.mxu0 0.0
        %2666 = vmatpush2.msra.mxu0 0.0
        %2667 = vmatprep.subr.mxu0 0.0
        %2668 = vmatpush2.msra.mxu0 0.0
        %2669 = vmatprep.subr.mxu0 0.0
        %2670 = vmatpush2.msra.mxu0 0.0
        %2671 = vmatprep.subr.mxu0 0.0
        %2672 = vmatpush2.msra.mxu0 0.0
        %2673 = vmatprep.subr.mxu0 0.0
        %2674 = vmatpush2.msra.mxu0 0.0
        %2675 = vmatprep.subr.mxu0 0.0
        %2676 = vmatpush2.msra.mxu0 0.0
        %2677 = vmatprep.subr.mxu0 0.0
        %2678 = vmatpush2.msra.mxu0 0.0
        %2679 = vmatprep.subr.mxu0 0.0
        %2680 = vmatpush2.msra.mxu0 0.0
        %2681 = vmatprep.mubr.f32.mxu0 0.0
        %2682 = vmatmul.mubr.f32.gmra.mxu0 %v2612
        %v2683 = vpop.f32.mrf.mxu0
        %v2684 = vadd.f32 %v2609, %v2683
        %v2685 = vpop.f32.mrf.mxu0
        %2686 = vmatprep.mubr.f32.mxu0 0.0
        %2687 = vmatmul.mubr.f32.gmra.mxu0 %v2615
        %v2688 = vpop.f32.mrf.mxu0
        %v2689 = vadd.f32 %v2609, %v2688
        %v2690 = vpop.f32.mrf.mxu0
        %2691 = vdwg.mxu0
        %v2692 = vadd.f32 %v964, %v2684
        %v2693 = vadd.f32 %v965, %v2689
        %v2694 = vsel %vm981, %v2692, 0.0
        %2695 = vadd.xlane.f32.xlu0 %v2694
        %v2696 = vpop.xlane.xlu0 %2695
        %v2697 = vsel %vm981, %v2693, 0.0
        %2698 = vadd.xlane.f32.xlu0 %v2697
        %v2699 = vpop.xlane.xlu0 %2698
        %v2700 = vrcp.pop 32.0
        %v2701 = vmul.f32 %v2696, %v2700
        %v2702 = vmul.f32 %v2699, %v2700
        %v2703 = vsub.f32 %v2692, %v2701
        %v2704 = vsub.f32 %v2693, %v2702
        %v2705 = vmul.f32 %v2703, %v2703
        %v2706 = vmul.f32 %v2704, %v2704
        %v2707 = vsel %vm981, %v2705, 0.0
        %2708 = vadd.xlane.f32.xlu0 %v2707
        %v2709 = vpop.xlane.xlu0 %2708
        %v2710 = vsel %vm981, %v2706, 0.0
        %2711 = vadd.xlane.f32.xlu0 %v2710
        %v2712 = vpop.xlane.xlu0 %2711
        %v2713 = vmul.f32 %v2709, %v2700
        %v2714 = vmul.f32 %v2712, %v2700
        %v2715 = vadd.f32 %v2713, 1e-05
        %v2716 = vadd.f32 %v2714, 1e-05
        %v2717 = vrsqrt.pop %v2715
        %v2718 = vrsqrt.pop %v2716
        %v2719 = vmul.f32 %v2703, %v2717
        %v2720 = vmul.f32 %v2704, %v2718
        %v2721 = vld [vmem:[%s944] sm:$0x1]
        %v2723 = vlaneseq
        %v2724 = vshrl.u32 %v2723, 7
        %v2725 = vsub.s32 0, %v2724
        %v2726 = vrot.slane %v2721, %v2725
        %v2728 = vmul.f32 %v2719, %v2726
        %v2729 = vmul.f32 %v2720, %v2726
        %v2730 = vld [vmem:[%s947] sm:$0x1]
        %v2732 = vlaneseq
        %v2733 = vshrl.u32 %v2732, 7
        %v2734 = vsub.s32 0, %v2733
        %v2735 = vrot.slane %v2730, %v2734
        %v2737 = vadd.f32 %v2728, %v2735
        %v2738 = vadd.f32 %v2729, %v2735
        %v2739 = vld [vmem:[%s796] sm:$0xff]
        %v2740 = vld [vmem:[%s796 + $0x8] sm:$0xff]
        %v2741 = vld [vmem:[%s796 + $0x10] sm:$0xff]
        %v2742 = vld [vmem:[%s796 + $0x18] sm:$0xff]
        %v2743 = vld [vmem:[%s933] sm:$0x1]
        %v2745 = vlaneseq
        %v2746 = vshrl.u32 %v2745, 7
        %v2747 = vsub.s32 0, %v2746
        %v2748 = vrot.slane %v2743, %v2747
        %v2751 = vsel %vm981, %v2737, 0
        %v2754 = vsel %vm981, %v2738, 0
        %2756 = vmatprep.subr.mxu0 0.0
        %2757 = vmatpush1.msra.mxu0 0.0
        %2758 = vmatprep.subr.mxu0 0.0
        %2759 = vmatpush1.msra.mxu0 0.0
        %2760 = vmatprep.subr.mxu0 0.0
        %2761 = vmatpush1.msra.mxu0 0.0
        %2762 = vmatprep.subr.mxu0 0.0
        %2763 = vmatpush1.msra.mxu0 0.0
        %2764 = vmatprep.subr.mxu0 0.0
        %2765 = vmatpush1.msra.mxu0 0.0
        %2766 = vmatprep.subr.mxu0 0.0
        %2767 = vmatpush1.msra.mxu0 0.0
        %2768 = vmatprep.subr.mxu0 0.0
        %2769 = vmatpush1.msra.mxu0 0.0
        %2770 = vmatprep.subr.mxu0 0.0
        %2771 = vmatpush1.msra.mxu0 0.0
        %2772 = vmatprep.subr.mxu0 0.0
        %2773 = vmatpush1.msra.mxu0 0.0
        %2774 = vmatprep.subr.mxu0 0.0
        %2775 = vmatpush1.msra.mxu0 0.0
        %2776 = vmatprep.subr.mxu0 0.0
        %2777 = vmatpush1.msra.mxu0 0.0
        %2778 = vmatprep.subr.mxu0 0.0
        %2779 = vmatpush1.msra.mxu0 0.0
        %2780 = vmatprep.subr.mxu0 0.0
        %2781 = vmatpush1.msra.mxu0 %v2742
        %2782 = vmatprep.subr.mxu0 0.0
        %2783 = vmatpush1.msra.mxu0 %v2741
        %2784 = vmatprep.subr.mxu0 0.0
        %2785 = vmatpush1.msra.mxu0 %v2740
        %2786 = vmatprep.subr.mxu0 0.0
        %2787 = vmatpush1.msra.mxu0 %v2739
        %2788 = vmatprep.subr.mxu0 0.0
        %2789 = vmatpush2.msra.mxu0 0.0
        %2790 = vmatprep.subr.mxu0 0.0
        %2791 = vmatpush2.msra.mxu0 0.0
        %2792 = vmatprep.subr.mxu0 0.0
        %2793 = vmatpush2.msra.mxu0 0.0
        %2794 = vmatprep.subr.mxu0 0.0
        %2795 = vmatpush2.msra.mxu0 0.0
        %2796 = vmatprep.subr.mxu0 0.0
        %2797 = vmatpush2.msra.mxu0 0.0
        %2798 = vmatprep.subr.mxu0 0.0
        %2799 = vmatpush2.msra.mxu0 0.0
        %2800 = vmatprep.subr.mxu0 0.0
        %2801 = vmatpush2.msra.mxu0 0.0
        %2802 = vmatprep.subr.mxu0 0.0
        %2803 = vmatpush2.msra.mxu0 0.0
        %2804 = vmatprep.subr.mxu0 0.0
        %2805 = vmatpush2.msra.mxu0 0.0
        %2806 = vmatprep.subr.mxu0 0.0
        %2807 = vmatpush2.msra.mxu0 0.0
        %2808 = vmatprep.subr.mxu0 0.0
        %2809 = vmatpush2.msra.mxu0 0.0
        %2810 = vmatprep.subr.mxu0 0.0
        %2811 = vmatpush2.msra.mxu0 0.0
        %2812 = vmatprep.subr.mxu0 0.0
        %2813 = vmatpush2.msra.mxu0 0.0
        %2814 = vmatprep.subr.mxu0 0.0
        %2815 = vmatpush2.msra.mxu0 0.0
        %2816 = vmatprep.subr.mxu0 0.0
        %2817 = vmatpush2.msra.mxu0 0.0
        %2818 = vmatprep.subr.mxu0 0.0
        %2819 = vmatpush2.msra.mxu0 0.0
        %2820 = vmatprep.mubr.f32.mxu0 0.0
        %2821 = vmatmul.mubr.f32.gmra.mxu0 %v2751
        %v2822 = vpop.f32.mrf.mxu0
        %v2823 = vadd.f32 %v2748, %v2822
        %v2824 = vpop.f32.mrf.mxu0
        %2825 = vmatprep.mubr.f32.mxu0 0.0
        %2826 = vmatmul.mubr.f32.gmra.mxu0 %v2754
        %v2827 = vpop.f32.mrf.mxu0
        %v2828 = vadd.f32 %v2748, %v2827
        %v2829 = vpop.f32.mrf.mxu0
        %2830 = vdwg.mxu0
        %v2831 = vmax.f32 %v2823, 0.0
        %v2832 = vmax.f32 %v2828, 0.0
        %v2833 = vld [vmem:[%s938] sm:$0xff]
        %v2834 = vld [vmem:[%s938 + $0x8] sm:$0xff]
        %v2835 = vld [vmem:[%s938 + $0x10] sm:$0xff]
        %v2836 = vld [vmem:[%s938 + $0x18] sm:$0xff]
        %v2837 = vld [vmem:[%s938 + $0x20] sm:$0xff]
        %v2838 = vld [vmem:[%s938 + $0x28] sm:$0xff]
        %v2839 = vld [vmem:[%s938 + $0x30] sm:$0xff]
        %v2840 = vld [vmem:[%s938 + $0x38] sm:$0xff]
        %v2841 = vld [vmem:[%s941] sm:$0x1]
        %v2843 = vlaneseq
        %v2844 = vshrl.u32 %v2843, 7
        %v2845 = vsub.s32 0, %v2844
        %v2846 = vrot.slane %v2841, %v2845
        %vm2848 = vcmask 523264
        %v2850 = vsel %vm2848, %v2831, 0
        %v2853 = vsel %vm2848, %v2832, 0
        %2855 = vmatprep.subr.mxu0 0.0
        %2856 = vmatpush1.msra.mxu0 0.0
        %2857 = vmatprep.subr.mxu0 0.0
        %2858 = vmatpush1.msra.mxu0 0.0
        %2859 = vmatprep.subr.mxu0 0.0
        %2860 = vmatpush1.msra.mxu0 0.0
        %2861 = vmatprep.subr.mxu0 0.0
        %2862 = vmatpush1.msra.mxu0 0.0
        %2863 = vmatprep.subr.mxu0 0.0
        %2864 = vmatpush1.msra.mxu0 0.0
        %2865 = vmatprep.subr.mxu0 0.0
        %2866 = vmatpush1.msra.mxu0 0.0
        %2867 = vmatprep.subr.mxu0 0.0
        %2868 = vmatpush1.msra.mxu0 0.0
        %2869 = vmatprep.subr.mxu0 0.0
        %2870 = vmatpush1.msra.mxu0 0.0
        %2871 = vmatprep.subr.mxu0 0.0
        %2872 = vmatpush1.msra.mxu0 %v2840
        %2873 = vmatprep.subr.mxu0 0.0
        %2874 = vmatpush1.msra.mxu0 %v2839
        %2875 = vmatprep.subr.mxu0 0.0
        %2876 = vmatpush1.msra.mxu0 %v2838
        %2877 = vmatprep.subr.mxu0 0.0
        %2878 = vmatpush1.msra.mxu0 %v2837
        %2879 = vmatprep.subr.mxu0 0.0
        %2880 = vmatpush1.msra.mxu0 %v2836
        %2881 = vmatprep.subr.mxu0 0.0
        %2882 = vmatpush1.msra.mxu0 %v2835
        %2883 = vmatprep.subr.mxu0 0.0
        %2884 = vmatpush1.msra.mxu0 %v2834
        %2885 = vmatprep.subr.mxu0 0.0
        %2886 = vmatpush1.msra.mxu0 %v2833
        %2887 = vmatprep.subr.mxu0 0.0
        %2888 = vmatpush2.msra.mxu0 0.0
        %2889 = vmatprep.subr.mxu0 0.0
        %2890 = vmatpush2.msra.mxu0 0.0
        %2891 = vmatprep.subr.mxu0 0.0
        %2892 = vmatpush2.msra.mxu0 0.0
        %2893 = vmatprep.subr.mxu0 0.0
        %2894 = vmatpush2.msra.mxu0 0.0
        %2895 = vmatprep.subr.mxu0 0.0
        %2896 = vmatpush2.msra.mxu0 0.0
        %2897 = vmatprep.subr.mxu0 0.0
        %2898 = vmatpush2.msra.mxu0 0.0
        %2899 = vmatprep.subr.mxu0 0.0
        %2900 = vmatpush2.msra.mxu0 0.0
        %2901 = vmatprep.subr.mxu0 0.0
        %2902 = vmatpush2.msra.mxu0 0.0
        %2903 = vmatprep.subr.mxu0 0.0
        %2904 = vmatpush2.msra.mxu0 0.0
        %2905 = vmatprep.subr.mxu0 0.0
        %2906 = vmatpush2.msra.mxu0 0.0
        %2907 = vmatprep.subr.mxu0 0.0
        %2908 = vmatpush2.msra.mxu0 0.0
        %2909 = vmatprep.subr.mxu0 0.0
        %2910 = vmatpush2.msra.mxu0 0.0
        %2911 = vmatprep.subr.mxu0 0.0
        %2912 = vmatpush2.msra.mxu0 0.0
        %2913 = vmatprep.subr.mxu0 0.0
        %2914 = vmatpush2.msra.mxu0 0.0
        %2915 = vmatprep.subr.mxu0 0.0
        %2916 = vmatpush2.msra.mxu0 0.0
        %2917 = vmatprep.subr.mxu0 0.0
        %2918 = vmatpush2.msra.mxu0 0.0
        %2919 = vmatprep.mubr.f32.mxu0 0.0
        %2920 = vmatmul.mubr.f32.gmra.mxu0 %v2850
        %v2921 = vpop.f32.mrf.mxu0
        %v2922 = vadd.f32 %v2846, %v2921
        %v2923 = vpop.f32.mrf.mxu0
        %2924 = vmatprep.mubr.f32.mxu0 0.0
        %2925 = vmatmul.mubr.f32.gmra.mxu0 %v2853
        %v2926 = vpop.f32.mrf.mxu0
        %v2927 = vadd.f32 %v2846, %v2926
        %v2928 = vpop.f32.mrf.mxu0
        %2929 = vdwg.mxu0
        %v2930 = vadd.f32 %v2737, %v2922
        %v2931 = vadd.f32 %v2738, %v2927
        %v2932 = vsel %vm981, %v2930, 0.0
        %2933 = vadd.xlane.f32.xlu0 %v2932
        %v2934 = vpop.xlane.xlu0 %2933
        %v2935 = vsel %vm981, %v2931, 0.0
        %2936 = vadd.xlane.f32.xlu0 %v2935
        %v2937 = vpop.xlane.xlu0 %2936
        %v2938 = vmul.f32 %v2934, %v2700
        %v2939 = vmul.f32 %v2937, %v2700
        %v2940 = vsub.f32 %v2930, %v2938
        %v2941 = vsub.f32 %v2931, %v2939
        %v2942 = vmul.f32 %v2940, %v2940
        %v2943 = vmul.f32 %v2941, %v2941
        %v2944 = vsel %vm981, %v2942, 0.0
        %2945 = vadd.xlane.f32.xlu0 %v2944
        %v2946 = vpop.xlane.xlu0 %2945
        %v2947 = vsel %vm981, %v2943, 0.0
        %2948 = vadd.xlane.f32.xlu0 %v2947
        %v2949 = vpop.xlane.xlu0 %2948
        %v2950 = vmul.f32 %v2946, %v2700
        %v2951 = vmul.f32 %v2949, %v2700
        %v2952 = vadd.f32 %v2950, 1e-05
        %v2953 = vadd.f32 %v2951, 1e-05
        %v2954 = vrsqrt.pop %v2952
        %v2955 = vrsqrt.pop %v2953
        %v2956 = vmul.f32 %v2940, %v2954
        %v2957 = vmul.f32 %v2941, %v2955
        %v2958 = vld [vmem:[%s950] sm:$0x1]
        %v2960 = vlaneseq
        %v2961 = vshrl.u32 %v2960, 7
        %v2962 = vsub.s32 0, %v2961
        %v2963 = vrot.slane %v2958, %v2962
        %v2965 = vmul.f32 %v2956, %v2963
        %v2966 = vmul.f32 %v2957, %v2963
        %v2967 = vld [vmem:[%s953] sm:$0x1]
        %v2969 = vlaneseq
        %v2970 = vshrl.u32 %v2969, 7
        %v2971 = vsub.s32 0, %v2970
        %v2972 = vrot.slane %v2967, %v2971
        %v2974 = vadd.f32 %v2965, %v2972
        %v2975 = vadd.f32 %v2966, %v2972
        %2976 = vst.msk [vmem:[#allocation2] sm:$0xff] %vm981, %v2974
        %2977 = vst.msk [vmem:[#allocation2 + $0x8] sm:$0xff] %vm981, %v2975
        %p2978 = scmp.eq.s32.totalorder %s41, 1
        // Predicated region
        $region121: #{tpu_custom_call.1} parent=95 // pred_check
          %p2979 = pneg %p2978
        $region122: #{tpu_custom_call.1} parent=95 // pred_check_branch
          %2981 = sbr.rel (%p2979) target = $region124
        $region123: #{tpu_custom_call.1} parent=95 // pred_region
          %2982 = vst.msk [vmem:[#allocation12] sm:$0xff] %vm981, %v2974
          %2983 = vst.msk [vmem:[#allocation12 + $0x8] sm:$0xff] %vm981, %v2975
        $region124: #{tpu_custom_call.1} parent=95 // pred_fallthru
          _
        // Predicated region
        $region125: #{tpu_custom_call.1} parent=95 // pred_check
          %p2984 = pneg %p560
        $region126: #{tpu_custom_call.1} parent=95 // pred_check_branch
          %2986 = sbr.rel (%p2984) target = $region128
        $region127: #{tpu_custom_call.1} parent=95 // pred_region
          %s2987 = smul.u32 2, %s40
          %s2989 = ssub.s32 256, 256
          %2990 = vsyncadd [#allocation5], %s2989
          %s2991 = smul.addr %s2987, 128
          %s2992 = scalar_lea.hbm %s19, %s2991
          %s2993 = sshll.u32 [#allocation12], 4
          %s2994 = int_to_ptr.vmem [resolvable:$true] %s2993
          %2999 = dma.vmem_to_hbm [thread:$0]  %s2994, 256, %s2992, [#allocation5], 128, 128, 8
        $region128: #{tpu_custom_call.1} parent=95 // pred_fallthru
          _
        // Predicated region
        $region129: #{tpu_custom_call.1} parent=95 // pred_check
          %p3000 = pneg %p560
        $region130: #{tpu_custom_call.1} parent=95 // pred_check_branch
          %3002 = sbr.rel (%p3000) target = $region132
        $region131: #{tpu_custom_call.1} parent=95 // pred_region
          %3003 = dma.done [#allocation5], 256
        $region132: #{tpu_custom_call.1} parent=95 // pred_fallthru
          _
      $region96: #{tpu_custom_call.1} parent=5 // pred_fallthru
        _
      %p3004 = scmp.le.s32.totalorder 2, %s31
      // Predicated region
      $region133: #{tpu_custom_call.1} parent=5 // pred_check
        %p3005 = pneg %p3004
      $region134: #{tpu_custom_call.1} parent=5 // pred_check_branch
        %3007 = sbr.rel (%p3005) target = $region136
      $region135: #{tpu_custom_call.1} parent=5 // pred_region
        %s3008 = ssub.s32 %s31, 2
      $region136: #{tpu_custom_call.1} parent=5 // pred_fallthru
        _
    $region6: #{tpu_custom_call.1} parent=1 // loop_footer
      %s35 = sadd.s32 1, %s31
    $region7: #{tpu_custom_call.1} parent=1 // loop_footer_branch
      %30 = sbr.rel target = $region3
    $region8: #{tpu_custom_call.1} parent=1 // loop_exit
      _
    %3009 = vsyncpa [#allocation4], 1
    %s3010 = scalar_lea.sflag [#allocation4], 1
    %3011 = vsyncpa %s3010, 1
    %3012 = vsyncpa [#allocation7], 1
    %3013 = vsyncpa [#allocation10], 1
    %s3014 = scalar_lea.sflag [#allocation10], 1
    %3015 = vsyncpa %s3014, 1
    %3016 = vsyncpa [#allocation5], 1
    %s3017 = scalar_lea.sflag [#allocation5], 1
    %3018 = vsyncpa %s3017, 1

</llo_original>
